<compile_context>
chip_gen: v7x
topology: tpu7x:2x2x1
jax: 0.10.0
libtpu: 0.0.40
codegen_flags: <defaults>
</compile_context>

<pallas_src>
import functools

import jax
import jax.numpy as jnp
from jax import lax
from jax.experimental import pallas as pl
from jax.experimental.pallas import tpu as pltpu

# ---- problem sizes (small, consistent with the module) ---------------------
B = 2              # batch (example)
D1 = 32            # input1 feature dim
D2 = 32            # input2 feature dim
H = 1024           # per-branch feature dim (2 * H == 2048 == fc2 in-features)
NUM_CLASSES = 16

HK = 128           # H-chunk width processed per inner-loop step
N_PAD = 128        # lane-dense padded output width (sliced back to NUM_CLASSES)


def two_inputs_kernel(x1_ref, x2_ref,
                      w1_ref, b1_ref,
                      w2_ref, b2_ref,
                      wft_ref, wfb_ref, bf_ref,
                      o_ref):
    tm = x1_ref.shape[0]          # rows in this batch tile (static)
    nk = w1_ref.shape[0]          # number of H chunks (static)

    x1 = x1_ref[...]              # (tm, D1) bf16
    x2 = x2_ref[...]              # (tm, D2) bf16

    def body(kk, acc):
        # branch matmuls restricted to one HK-wide column block of W1 / W2
        c = jnp.dot(x1, w1_ref[kk], preferred_element_type=jnp.float32) + b1_ref[kk]
        f = jnp.dot(x2, w2_ref[kk], preferred_element_type=jnp.float32) + b2_ref[kk]
        # relu per chunk (equivalent to relu(cat(c, f))), cast back to bf16 for MXU
        c = jnp.maximum(c, 0.0).astype(jnp.bfloat16)
        f = jnp.maximum(f, 0.0).astype(jnp.bfloat16)
        # fc2 split-K: accumulate this chunk's contribution into the f32 acc
        acc = acc + jnp.dot(c, wft_ref[kk], preferred_element_type=jnp.float32)
        acc = acc + jnp.dot(f, wfb_ref[kk], preferred_element_type=jnp.float32)
        return acc

    # fc2 bias folded into the accumulator init (added exactly once)
    acc0 = jnp.broadcast_to(bf_ref[...], (tm, bf_ref.shape[1]))
    acc = lax.fori_loop(0, nk, body, acc0, unroll=True)
    o_ref[...] = acc.astype(o_ref.dtype)


def two_inputs_net(x1, x2, w1, b1, w2, b2, wf, bf):
    """x1:(B,D1) x2:(B,D2) w1:(D1,H) w2:(D2,H) wf:(2H,NUM_CLASSES); biases (1,*)."""
    batch = x1.shape[0]
    d1 = x1.shape[1]
    d2 = x2.shape[1]
    h = w1.shape[1]
    nk = h // HK

    # --- adaptive batch tiling: multiple of 8 for tiny batches, 128 for big ---
    tile_m = min(128, pl.cdiv(batch, 8) * 8)
    bp = pl.cdiv(batch, tile_m) * tile_m
    pad_m = bp - batch

    # --- wrapper-side layout prep (pure data plumbing, no compute hoisting) ---
    # Activations in bf16 (halves DMA), padded to the tiled batch.
    x1p = jnp.pad(x1.astype(jnp.bfloat16), ((0, pad_m), (0, 0)))
    x2p = jnp.pad(x2.astype(jnp.bfloat16), ((0, pad_m), (0, 0)))

    # Chunk-major weight layouts so the kernel indexes whole HK blocks on the
    # leading axis (cheap dynamic leading-dim indexing, no lane-dim slicing).
    w1c = w1.astype(jnp.bfloat16).reshape(d1, nk, HK).transpose(1, 0, 2)   # (nk, D1, HK)
    w2c = w2.astype(jnp.bfloat16).reshape(d2, nk, HK).transpose(1, 0, 2)   # (nk, D2, HK)
    b1c = b1.reshape(nk, 1, HK)                                            # (nk, 1, HK) f32
    b2c = b2.reshape(nk, 1, HK)                                            # (nk, 1, HK) f32

    # fc2 weight split at K=H (removes the concat) and lane-padded to 128.
    pad_n = N_PAD - NUM_CLASSES
    wf_top = jnp.pad(wf[:h], ((0, 0), (0, pad_n))).astype(jnp.bfloat16).reshape(nk, HK, N_PAD)
    wf_bot = jnp.pad(wf[h:], ((0, 0), (0, pad_n))).astype(jnp.bfloat16).reshape(nk, HK, N_PAD)
    bf_p = jnp.pad(bf, ((0, 0), (0, pad_n)))                               # (1, N_PAD) f32

    grid = (bp // tile_m,)

    out_padded = pl.pallas_call(
        two_inputs_kernel,
        out_shape=jax.ShapeDtypeStruct((bp, N_PAD), jnp.bfloat16),
        grid=grid,
        in_specs=[
            # activations: tiled over the batch grid
            pl.BlockSpec((tile_m, d1), lambda i: (i, 0)),
            pl.BlockSpec((tile_m, d2), lambda i: (i, 0)),
            # parameters: constant index_map -> fetched once, VMEM-resident
            pl.BlockSpec((nk, d1, HK), lambda i: (0, 0, 0)),
            pl.BlockSpec((nk, 1, HK), lambda i: (0, 0, 0)),
            pl.BlockSpec((nk, d2, HK), lambda i: (0, 0, 0)),
            pl.BlockSpec((nk, 1, HK), lambda i: (0, 0, 0)),
            pl.BlockSpec((nk, HK, N_PAD), lambda i: (0, 0, 0)),
            pl.BlockSpec((nk, HK, N_PAD), lambda i: (0, 0, 0)),
            pl.BlockSpec((1, N_PAD), lambda i: (0, 0)),
        ],
        out_specs=pl.BlockSpec((tile_m, N_PAD), lambda i: (i, 0)),
        compiler_params=pltpu.CompilerParams(
            dimension_semantics=("parallel",)),
    )(x1p, x2p, w1c, b1c, w2c, b2c, wf_top, wf_bot, bf_p)

    # Slice off batch / lane padding and upcast the bf16 store back to f32.
    return out_padded[:batch, :NUM_CLASSES].astype(jnp.float32)


def _reference_bf16(x1, x2, w1, b1, w2, b2, wf, bf):
    """Pure-JAX reference emulating the kernel's bf16 numerics (tight check)."""
    h = w1.shape[1]
    c = jnp.dot(x1.astype(jnp.bfloat16), w1.astype(jnp.bfloat16),
                preferred_element_type=jnp.float32) + b1
    f = jnp.dot(x2.astype(jnp.bfloat16), w2.astype(jnp.bfloat16),
                preferred_element_type=jnp.float32) + b2
    c = jnp.maximum(c, 0.0).astype(jnp.bfloat16)
    f = jnp.maximum(f, 0.0).astype(jnp.bfloat16)
    o = (jnp.dot(c, wf[:h].astype(jnp.bfloat16), preferred_element_type=jnp.float32)
         + jnp.dot(f, wf[h:].astype(jnp.bfloat16), preferred_element_type=jnp.float32)
         + bf)
    # kernel stores its output in bf16; emulate that rounding
    return o.astype(jnp.bfloat16).astype(jnp.float32)


if __name__ == "__main__":
    key = jax.random.PRNGKey(0)
    k = jax.random.split(key, 8)

    # deterministic synthetic parameters (weights stored already-transposed:
    # [in_features, out_features], equivalent to torch's x @ W.T)
    # TODO(synk): model1/model2 are opaque nn.Modules in the spec; modeled here
    # as Linear(D -> 1024) branches so their concat matches fc2's 2048 inputs.
    x1 = jax.random.normal(k[0], (B, D1), dtype=jnp.float32)
    x2 = jax.random.normal(k[1], (B, D2), dtype=jnp.float32)
    w1 = jax.random.normal(k[2], (D1, H), dtype=jnp.float32) * 0.05
    b1 = jax.random.normal(k[3], (1, H), dtype=jnp.float32) * 0.05
    w2 = jax.random.normal(k[4], (D2, H), dtype=jnp.float32) * 0.05
    b2 = jax.random.normal(k[5], (1, H), dtype=jnp.float32) * 0.05
    wf = jax.random.normal(k[6], (2 * H, NUM_CLASSES), dtype=jnp.float32) * 0.02
    bf = jax.random.normal(k[7], (1, NUM_CLASSES), dtype=jnp.float32) * 0.02

    out = two_inputs_net(x1, x2, w1, b1, w2, b2, wf, bf)
    out = jax.block_until_ready(out)
    assert out.shape == (B, NUM_CLASSES)

    # tight check against a bf16-emulating reference (same casts as the kernel)
    ref_bf16 = _reference_bf16(x1, x2, w1, b1, w2, b2, wf, bf)
    assert jnp.allclose(out, ref_bf16, atol=1e-2, rtol=1e-2)

    # loose semantic sanity check against the full-f32 forward
    c_ref = jnp.maximum(x1 @ w1 + b1, 0.0)
    f_ref = jnp.maximum(x2 @ w2 + b2, 0.0)
    ref_f32 = jnp.concatenate([c_ref, f_ref], axis=1) @ wf + bf
    assert jnp.allclose(out, ref_f32, atol=5e-2, rtol=5e-2)

    print("KERNEL_OK")
</pallas_src>

<mosaic_0001>
module attributes {stable_mosaic.version = 11 : i64} {
  func.func @two_inputs_kernel(%arg0: i32, %arg1: memref<8x32xbf16, #tpu.memory_space<vmem>>, %arg2: memref<8x32xbf16, #tpu.memory_space<vmem>>, %arg3: memref<8x32x128xbf16, #tpu.memory_space<vmem>>, %arg4: memref<8x1x128xf32, #tpu.memory_space<vmem>>, %arg5: memref<8x32x128xbf16, #tpu.memory_space<vmem>>, %arg6: memref<8x1x128xf32, #tpu.memory_space<vmem>>, %arg7: memref<8x128x128xbf16, #tpu.memory_space<vmem>>, %arg8: memref<8x128x128xbf16, #tpu.memory_space<vmem>>, %arg9: memref<1x128xf32, #tpu.memory_space<vmem>>, %arg10: memref<8x128xbf16, #tpu.memory_space<vmem>>) attributes {dimension_semantics = [#tpu.dimension_semantics<parallel>], iteration_bounds = array<i64: 1>, scalar_prefetch = 0 : i64, scratch_operands = 0 : i64, tpu.core_type = #tpu.core_type<tc>, window_params = [{transform_indices = @transform_0, window_bounds = array<i64: 8, 32>}, {transform_indices = @transform_1, window_bounds = array<i64: 8, 32>}, {pipeline_mode = #tpu.pipeline_mode<synchronous>, transform_indices = @transform_2, window_bounds = array<i64: 8, 32, 128>}, {pipeline_mode = #tpu.pipeline_mode<synchronous>, transform_indices = @transform_3, window_bounds = array<i64: 8, 1, 128>}, {pipeline_mode = #tpu.pipeline_mode<synchronous>, transform_indices = @transform_4, window_bounds = array<i64: 8, 32, 128>}, {pipeline_mode = #tpu.pipeline_mode<synchronous>, transform_indices = @transform_5, window_bounds = array<i64: 8, 1, 128>}, {pipeline_mode = #tpu.pipeline_mode<synchronous>, transform_indices = @transform_6, window_bounds = array<i64: 8, 128, 128>}, {pipeline_mode = #tpu.pipeline_mode<synchronous>, transform_indices = @transform_7, window_bounds = array<i64: 8, 128, 128>}, {pipeline_mode = #tpu.pipeline_mode<synchronous>, transform_indices = @transform_8, window_bounds = array<i64: 1, 128>}, {transform_indices = @transform_9, window_bounds = array<i64: 8, 128>}]} {
    %c0 = arith.constant 0 : index
    %c0_0 = arith.constant 0 : index
    %0 = vector.load %arg1[%c0, %c0_0] : memref<8x32xbf16, #tpu.memory_space<vmem>>, vector<8x32xbf16>
    %c0_1 = arith.constant 0 : index
    %c0_2 = arith.constant 0 : index
    %1 = vector.load %arg2[%c0_1, %c0_2] : memref<8x32xbf16, #tpu.memory_space<vmem>>, vector<8x32xbf16>
    %c0_3 = arith.constant 0 : index
    %c0_4 = arith.constant 0 : index
    %2 = vector.load %arg9[%c0_3, %c0_4] : memref<1x128xf32, #tpu.memory_space<vmem>>, vector<1x128xf32>
    %3 = vector.shape_cast %2 : vector<1x128xf32> to vector<1x128xf32>
    %4 = vector.broadcast %3 : vector<1x128xf32> to vector<8x128xf32>
    %c0_i32 = arith.constant 0 : i32
    %5 = arith.index_cast %c0_i32 : i32 to index
    %c0_5 = arith.constant 0 : index
    %c0_6 = arith.constant 0 : index
    %6 = vector.load %arg3[%5, %c0_5, %c0_6] : memref<8x32x128xbf16, #tpu.memory_space<vmem>>, vector<1x32x128xbf16>
    %7 = vector.shape_cast %6 : vector<1x32x128xbf16> to vector<32x128xbf16>
    %cst = arith.constant dense<0.000000e+00> : vector<8x128xf32>
    %8 = tpu.matmul %0, %7, %cst {dimension_numbers = #tpu.dot_dimension_numbers<[1], [0], [0], [1], [0, 0, 1, 1], [], []>} : vector<8x32xbf16>, vector<32x128xbf16>, vector<8x128xf32> -> vector<8x128xf32>
    %9 = arith.index_cast %c0_i32 : i32 to index
    %c0_7 = arith.constant 0 : index
    %c0_8 = arith.constant 0 : index
    %10 = vector.load %arg4[%9, %c0_7, %c0_8] : memref<8x1x128xf32, #tpu.memory_space<vmem>>, vector<1x1x128xf32>
    %11 = vector.shape_cast %10 : vector<1x1x128xf32> to vector<1x128xf32>
    %12 = vector.broadcast %11 : vector<1x128xf32> to vector<8x128xf32>
    %13 = arith.addf %8, %12 : vector<8x128xf32>
    %14 = arith.index_cast %c0_i32 : i32 to index
    %c0_9 = arith.constant 0 : index
    %c0_10 = arith.constant 0 : index
    %15 = vector.load %arg5[%14, %c0_9, %c0_10] : memref<8x32x128xbf16, #tpu.memory_space<vmem>>, vector<1x32x128xbf16>
    %16 = vector.shape_cast %15 : vector<1x32x128xbf16> to vector<32x128xbf16>
    %cst_11 = arith.constant dense<0.000000e+00> : vector<8x128xf32>
    %17 = tpu.matmul %1, %16, %cst_11 {dimension_numbers = #tpu.dot_dimension_numbers<[1], [0], [0], [1], [0, 0, 1, 1], [], []>} : vector<8x32xbf16>, vector<32x128xbf16>, vector<8x128xf32> -> vector<8x128xf32>
    %18 = arith.index_cast %c0_i32 : i32 to index
    %c0_12 = arith.constant 0 : index
    %c0_13 = arith.constant 0 : index
    %19 = vector.load %arg6[%18, %c0_12, %c0_13] : memref<8x1x128xf32, #tpu.memory_space<vmem>>, vector<1x1x128xf32>
    %20 = vector.shape_cast %19 : vector<1x1x128xf32> to vector<1x128xf32>
    %21 = vector.broadcast %20 : vector<1x128xf32> to vector<8x128xf32>
    %22 = arith.addf %17, %21 : vector<8x128xf32>
    %cst_14 = arith.constant 0.000000e+00 : f32
    %23 = vector.broadcast %cst_14 : f32 to vector<8x128xf32>
    %24 = arith.maximumf %13, %23 : vector<8x128xf32>
    %25 = arith.truncf %24 : vector<8x128xf32> to vector<8x128xbf16>
    %cst_15 = arith.constant 0.000000e+00 : f32
    %26 = vector.broadcast %cst_15 : f32 to vector<8x128xf32>
    %27 = arith.maximumf %22, %26 : vector<8x128xf32>
    %28 = arith.truncf %27 : vector<8x128xf32> to vector<8x128xbf16>
    %29 = arith.index_cast %c0_i32 : i32 to index
    %c0_16 = arith.constant 0 : index
    %c0_17 = arith.constant 0 : index
    %30 = vector.load %arg7[%29, %c0_16, %c0_17] : memref<8x128x128xbf16, #tpu.memory_space<vmem>>, vector<1x128x128xbf16>
    %31 = vector.shape_cast %30 : vector<1x128x128xbf16> to vector<128x128xbf16>
    %cst_18 = arith.constant dense<0.000000e+00> : vector<8x128xf32>
    %32 = tpu.matmul %25, %31, %cst_18 {dimension_numbers = #tpu.dot_dimension_numbers<[1], [0], [0], [1], [0, 0, 1, 1], [], []>} : vector<8x128xbf16>, vector<128x128xbf16>, vector<8x128xf32> -> vector<8x128xf32>
    %33 = arith.addf %4, %32 : vector<8x128xf32>
    %34 = arith.index_cast %c0_i32 : i32 to index
    %c0_19 = arith.constant 0 : index
    %c0_20 = arith.constant 0 : index
    %35 = vector.load %arg8[%34, %c0_19, %c0_20] : memref<8x128x128xbf16, #tpu.memory_space<vmem>>, vector<1x128x128xbf16>
    %36 = vector.shape_cast %35 : vector<1x128x128xbf16> to vector<128x128xbf16>
    %cst_21 = arith.constant dense<0.000000e+00> : vector<8x128xf32>
    %37 = tpu.matmul %28, %36, %cst_21 {dimension_numbers = #tpu.dot_dimension_numbers<[1], [0], [0], [1], [0, 0, 1, 1], [], []>} : vector<8x128xbf16>, vector<128x128xbf16>, vector<8x128xf32> -> vector<8x128xf32>
    %38 = arith.addf %33, %37 : vector<8x128xf32>
    %c1_i32 = arith.constant 1 : i32
    %39 = arith.index_cast %c1_i32 : i32 to index
    %c0_22 = arith.constant 0 : index
    %c0_23 = arith.constant 0 : index
    %40 = vector.load %arg3[%39, %c0_22, %c0_23] : memref<8x32x128xbf16, #tpu.memory_space<vmem>>, vector<1x32x128xbf16>
    %41 = vector.shape_cast %40 : vector<1x32x128xbf16> to vector<32x128xbf16>
    %cst_24 = arith.constant dense<0.000000e+00> : vector<8x128xf32>
    %42 = tpu.matmul %0, %41, %cst_24 {dimension_numbers = #tpu.dot_dimension_numbers<[1], [0], [0], [1], [0, 0, 1, 1], [], []>} : vector<8x32xbf16>, vector<32x128xbf16>, vector<8x128xf32> -> vector<8x128xf32>
    %43 = arith.index_cast %c1_i32 : i32 to index
    %c0_25 = arith.constant 0 : index
    %c0_26 = arith.constant 0 : index
    %44 = vector.load %arg4[%43, %c0_25, %c0_26] : memref<8x1x128xf32, #tpu.memory_space<vmem>>, vector<1x1x128xf32>
    %45 = vector.shape_cast %44 : vector<1x1x128xf32> to vector<1x128xf32>
    %46 = vector.broadcast %45 : vector<1x128xf32> to vector<8x128xf32>
    %47 = arith.addf %42, %46 : vector<8x128xf32>
    %48 = arith.index_cast %c1_i32 : i32 to index
    %c0_27 = arith.constant 0 : index
    %c0_28 = arith.constant 0 : index
    %49 = vector.load %arg5[%48, %c0_27, %c0_28] : memref<8x32x128xbf16, #tpu.memory_space<vmem>>, vector<1x32x128xbf16>
    %50 = vector.shape_cast %49 : vector<1x32x128xbf16> to vector<32x128xbf16>
    %cst_29 = arith.constant dense<0.000000e+00> : vector<8x128xf32>
    %51 = tpu.matmul %1, %50, %cst_29 {dimension_numbers = #tpu.dot_dimension_numbers<[1], [0], [0], [1], [0, 0, 1, 1], [], []>} : vector<8x32xbf16>, vector<32x128xbf16>, vector<8x128xf32> -> vector<8x128xf32>
    %52 = arith.index_cast %c1_i32 : i32 to index
    %c0_30 = arith.constant 0 : index
    %c0_31 = arith.constant 0 : index
    %53 = vector.load %arg6[%52, %c0_30, %c0_31] : memref<8x1x128xf32, #tpu.memory_space<vmem>>, vector<1x1x128xf32>
    %54 = vector.shape_cast %53 : vector<1x1x128xf32> to vector<1x128xf32>
    %55 = vector.broadcast %54 : vector<1x128xf32> to vector<8x128xf32>
    %56 = arith.addf %51, %55 : vector<8x128xf32>
    %cst_32 = arith.constant 0.000000e+00 : f32
    %57 = vector.broadcast %cst_32 : f32 to vector<8x128xf32>
    %58 = arith.maximumf %47, %57 : vector<8x128xf32>
    %59 = arith.truncf %58 : vector<8x128xf32> to vector<8x128xbf16>
    %cst_33 = arith.constant 0.000000e+00 : f32
    %60 = vector.broadcast %cst_33 : f32 to vector<8x128xf32>
    %61 = arith.maximumf %56, %60 : vector<8x128xf32>
    %62 = arith.truncf %61 : vector<8x128xf32> to vector<8x128xbf16>
    %63 = arith.index_cast %c1_i32 : i32 to index
    %c0_34 = arith.constant 0 : index
    %c0_35 = arith.constant 0 : index
    %64 = vector.load %arg7[%63, %c0_34, %c0_35] : memref<8x128x128xbf16, #tpu.memory_space<vmem>>, vector<1x128x128xbf16>
    %65 = vector.shape_cast %64 : vector<1x128x128xbf16> to vector<128x128xbf16>
    %cst_36 = arith.constant dense<0.000000e+00> : vector<8x128xf32>
    %66 = tpu.matmul %59, %65, %cst_36 {dimension_numbers = #tpu.dot_dimension_numbers<[1], [0], [0], [1], [0, 0, 1, 1], [], []>} : vector<8x128xbf16>, vector<128x128xbf16>, vector<8x128xf32> -> vector<8x128xf32>
    %67 = arith.addf %38, %66 : vector<8x128xf32>
    %68 = arith.index_cast %c1_i32 : i32 to index
    %c0_37 = arith.constant 0 : index
    %c0_38 = arith.constant 0 : index
    %69 = vector.load %arg8[%68, %c0_37, %c0_38] : memref<8x128x128xbf16, #tpu.memory_space<vmem>>, vector<1x128x128xbf16>
    %70 = vector.shape_cast %69 : vector<1x128x128xbf16> to vector<128x128xbf16>
    %cst_39 = arith.constant dense<0.000000e+00> : vector<8x128xf32>
    %71 = tpu.matmul %62, %70, %cst_39 {dimension_numbers = #tpu.dot_dimension_numbers<[1], [0], [0], [1], [0, 0, 1, 1], [], []>} : vector<8x128xbf16>, vector<128x128xbf16>, vector<8x128xf32> -> vector<8x128xf32>
    %72 = arith.addf %67, %71 : vector<8x128xf32>
    %c2_i32 = arith.constant 2 : i32
    %73 = arith.index_cast %c2_i32 : i32 to index
    %c0_40 = arith.constant 0 : index
    %c0_41 = arith.constant 0 : index
    %74 = vector.load %arg3[%73, %c0_40, %c0_41] : memref<8x32x128xbf16, #tpu.memory_space<vmem>>, vector<1x32x128xbf16>
    %75 = vector.shape_cast %74 : vector<1x32x128xbf16> to vector<32x128xbf16>
    %cst_42 = arith.constant dense<0.000000e+00> : vector<8x128xf32>
    %76 = tpu.matmul %0, %75, %cst_42 {dimension_numbers = #tpu.dot_dimension_numbers<[1], [0], [0], [1], [0, 0, 1, 1], [], []>} : vector<8x32xbf16>, vector<32x128xbf16>, vector<8x128xf32> -> vector<8x128xf32>
    %77 = arith.index_cast %c2_i32 : i32 to index
    %c0_43 = arith.constant 0 : index
    %c0_44 = arith.constant 0 : index
    %78 = vector.load %arg4[%77, %c0_43, %c0_44] : memref<8x1x128xf32, #tpu.memory_space<vmem>>, vector<1x1x128xf32>
    %79 = vector.shape_cast %78 : vector<1x1x128xf32> to vector<1x128xf32>
    %80 = vector.broadcast %79 : vector<1x128xf32> to vector<8x128xf32>
    %81 = arith.addf %76, %80 : vector<8x128xf32>
    %82 = arith.index_cast %c2_i32 : i32 to index
    %c0_45 = arith.constant 0 : index
    %c0_46 = arith.constant 0 : index
    %83 = vector.load %arg5[%82, %c0_45, %c0_46] : memref<8x32x128xbf16, #tpu.memory_space<vmem>>, vector<1x32x128xbf16>
    %84 = vector.shape_cast %83 : vector<1x32x128xbf16> to vector<32x128xbf16>
    %cst_47 = arith.constant dense<0.000000e+00> : vector<8x128xf32>
    %85 = tpu.matmul %1, %84, %cst_47 {dimension_numbers = #tpu.dot_dimension_numbers<[1], [0], [0], [1], [0, 0, 1, 1], [], []>} : vector<8x32xbf16>, vector<32x128xbf16>, vector<8x128xf32> -> vector<8x128xf32>
    %86 = arith.index_cast %c2_i32 : i32 to index
    %c0_48 = arith.constant 0 : index
    %c0_49 = arith.constant 0 : index
    %87 = vector.load %arg6[%86, %c0_48, %c0_49] : memref<8x1x128xf32, #tpu.memory_space<vmem>>, vector<1x1x128xf32>
    %88 = vector.shape_cast %87 : vector<1x1x128xf32> to vector<1x128xf32>
    %89 = vector.broadcast %88 : vector<1x128xf32> to vector<8x128xf32>
    %90 = arith.addf %85, %89 : vector<8x128xf32>
    %cst_50 = arith.constant 0.000000e+00 : f32
    %91 = vector.broadcast %cst_50 : f32 to vector<8x128xf32>
    %92 = arith.maximumf %81, %91 : vector<8x128xf32>
    %93 = arith.truncf %92 : vector<8x128xf32> to vector<8x128xbf16>
    %cst_51 = arith.constant 0.000000e+00 : f32
    %94 = vector.broadcast %cst_51 : f32 to vector<8x128xf32>
    %95 = arith.maximumf %90, %94 : vector<8x128xf32>
    %96 = arith.truncf %95 : vector<8x128xf32> to vector<8x128xbf16>
    %97 = arith.index_cast %c2_i32 : i32 to index
    %c0_52 = arith.constant 0 : index
    %c0_53 = arith.constant 0 : index
    %98 = vector.load %arg7[%97, %c0_52, %c0_53] : memref<8x128x128xbf16, #tpu.memory_space<vmem>>, vector<1x128x128xbf16>
    %99 = vector.shape_cast %98 : vector<1x128x128xbf16> to vector<128x128xbf16>
    %cst_54 = arith.constant dense<0.000000e+00> : vector<8x128xf32>
    %100 = tpu.matmul %93, %99, %cst_54 {dimension_numbers = #tpu.dot_dimension_numbers<[1], [0], [0], [1], [0, 0, 1, 1], [], []>} : vector<8x128xbf16>, vector<128x128xbf16>, vector<8x128xf32> -> vector<8x128xf32>
    %101 = arith.addf %72, %100 : vector<8x128xf32>
    %102 = arith.index_cast %c2_i32 : i32 to index
    %c0_55 = arith.constant 0 : index
    %c0_56 = arith.constant 0 : index
    %103 = vector.load %arg8[%102, %c0_55, %c0_56] : memref<8x128x128xbf16, #tpu.memory_space<vmem>>, vector<1x128x128xbf16>
    %104 = vector.shape_cast %103 : vector<1x128x128xbf16> to vector<128x128xbf16>
    %cst_57 = arith.constant dense<0.000000e+00> : vector<8x128xf32>
    %105 = tpu.matmul %96, %104, %cst_57 {dimension_numbers = #tpu.dot_dimension_numbers<[1], [0], [0], [1], [0, 0, 1, 1], [], []>} : vector<8x128xbf16>, vector<128x128xbf16>, vector<8x128xf32> -> vector<8x128xf32>
    %106 = arith.addf %101, %105 : vector<8x128xf32>
    %c3_i32 = arith.constant 3 : i32
    %107 = arith.index_cast %c3_i32 : i32 to index
    %c0_58 = arith.constant 0 : index
    %c0_59 = arith.constant 0 : index
    %108 = vector.load %arg3[%107, %c0_58, %c0_59] : memref<8x32x128xbf16, #tpu.memory_space<vmem>>, vector<1x32x128xbf16>
    %109 = vector.shape_cast %108 : vector<1x32x128xbf16> to vector<32x128xbf16>
    %cst_60 = arith.constant dense<0.000000e+00> : vector<8x128xf32>
    %110 = tpu.matmul %0, %109, %cst_60 {dimension_numbers = #tpu.dot_dimension_numbers<[1], [0], [0], [1], [0, 0, 1, 1], [], []>} : vector<8x32xbf16>, vector<32x128xbf16>, vector<8x128xf32> -> vector<8x128xf32>
    %111 = arith.index_cast %c3_i32 : i32 to index
    %c0_61 = arith.constant 0 : index
    %c0_62 = arith.constant 0 : index
    %112 = vector.load %arg4[%111, %c0_61, %c0_62] : memref<8x1x128xf32, #tpu.memory_space<vmem>>, vector<1x1x128xf32>
    %113 = vector.shape_cast %112 : vector<1x1x128xf32> to vector<1x128xf32>
    %114 = vector.broadcast %113 : vector<1x128xf32> to vector<8x128xf32>
    %115 = arith.addf %110, %114 : vector<8x128xf32>
    %116 = arith.index_cast %c3_i32 : i32 to index
    %c0_63 = arith.constant 0 : index
    %c0_64 = arith.constant 0 : index
    %117 = vector.load %arg5[%116, %c0_63, %c0_64] : memref<8x32x128xbf16, #tpu.memory_space<vmem>>, vector<1x32x128xbf16>
    %118 = vector.shape_cast %117 : vector<1x32x128xbf16> to vector<32x128xbf16>
    %cst_65 = arith.constant dense<0.000000e+00> : vector<8x128xf32>
    %119 = tpu.matmul %1, %118, %cst_65 {dimension_numbers = #tpu.dot_dimension_numbers<[1], [0], [0], [1], [0, 0, 1, 1], [], []>} : vector<8x32xbf16>, vector<32x128xbf16>, vector<8x128xf32> -> vector<8x128xf32>
    %120 = arith.index_cast %c3_i32 : i32 to index
    %c0_66 = arith.constant 0 : index
    %c0_67 = arith.constant 0 : index
    %121 = vector.load %arg6[%120, %c0_66, %c0_67] : memref<8x1x128xf32, #tpu.memory_space<vmem>>, vector<1x1x128xf32>
    %122 = vector.shape_cast %121 : vector<1x1x128xf32> to vector<1x128xf32>
    %123 = vector.broadcast %122 : vector<1x128xf32> to vector<8x128xf32>
    %124 = arith.addf %119, %123 : vector<8x128xf32>
    %cst_68 = arith.constant 0.000000e+00 : f32
    %125 = vector.broadcast %cst_68 : f32 to vector<8x128xf32>
    %126 = arith.maximumf %115, %125 : vector<8x128xf32>
    %127 = arith.truncf %126 : vector<8x128xf32> to vector<8x128xbf16>
    %cst_69 = arith.constant 0.000000e+00 : f32
    %128 = vector.broadcast %cst_69 : f32 to vector<8x128xf32>
    %129 = arith.maximumf %124, %128 : vector<8x128xf32>
    %130 = arith.truncf %129 : vector<8x128xf32> to vector<8x128xbf16>
    %131 = arith.index_cast %c3_i32 : i32 to index
    %c0_70 = arith.constant 0 : index
    %c0_71 = arith.constant 0 : index
    %132 = vector.load %arg7[%131, %c0_70, %c0_71] : memref<8x128x128xbf16, #tpu.memory_space<vmem>>, vector<1x128x128xbf16>
    %133 = vector.shape_cast %132 : vector<1x128x128xbf16> to vector<128x128xbf16>
    %cst_72 = arith.constant dense<0.000000e+00> : vector<8x128xf32>
    %134 = tpu.matmul %127, %133, %cst_72 {dimension_numbers = #tpu.dot_dimension_numbers<[1], [0], [0], [1], [0, 0, 1, 1], [], []>} : vector<8x128xbf16>, vector<128x128xbf16>, vector<8x128xf32> -> vector<8x128xf32>
    %135 = arith.addf %106, %134 : vector<8x128xf32>
    %136 = arith.index_cast %c3_i32 : i32 to index
    %c0_73 = arith.constant 0 : index
    %c0_74 = arith.constant 0 : index
    %137 = vector.load %arg8[%136, %c0_73, %c0_74] : memref<8x128x128xbf16, #tpu.memory_space<vmem>>, vector<1x128x128xbf16>
    %138 = vector.shape_cast %137 : vector<1x128x128xbf16> to vector<128x128xbf16>
    %cst_75 = arith.constant dense<0.000000e+00> : vector<8x128xf32>
    %139 = tpu.matmul %130, %138, %cst_75 {dimension_numbers = #tpu.dot_dimension_numbers<[1], [0], [0], [1], [0, 0, 1, 1], [], []>} : vector<8x128xbf16>, vector<128x128xbf16>, vector<8x128xf32> -> vector<8x128xf32>
    %140 = arith.addf %135, %139 : vector<8x128xf32>
    %c4_i32 = arith.constant 4 : i32
    %141 = arith.index_cast %c4_i32 : i32 to index
    %c0_76 = arith.constant 0 : index
    %c0_77 = arith.constant 0 : index
    %142 = vector.load %arg3[%141, %c0_76, %c0_77] : memref<8x32x128xbf16, #tpu.memory_space<vmem>>, vector<1x32x128xbf16>
    %143 = vector.shape_cast %142 : vector<1x32x128xbf16> to vector<32x128xbf16>
    %cst_78 = arith.constant dense<0.000000e+00> : vector<8x128xf32>
    %144 = tpu.matmul %0, %143, %cst_78 {dimension_numbers = #tpu.dot_dimension_numbers<[1], [0], [0], [1], [0, 0, 1, 1], [], []>} : vector<8x32xbf16>, vector<32x128xbf16>, vector<8x128xf32> -> vector<8x128xf32>
    %145 = arith.index_cast %c4_i32 : i32 to index
    %c0_79 = arith.constant 0 : index
    %c0_80 = arith.constant 0 : index
    %146 = vector.load %arg4[%145, %c0_79, %c0_80] : memref<8x1x128xf32, #tpu.memory_space<vmem>>, vector<1x1x128xf32>
    %147 = vector.shape_cast %146 : vector<1x1x128xf32> to vector<1x128xf32>
    %148 = vector.broadcast %147 : vector<1x128xf32> to vector<8x128xf32>
    %149 = arith.addf %144, %148 : vector<8x128xf32>
    %150 = arith.index_cast %c4_i32 : i32 to index
    %c0_81 = arith.constant 0 : index
    %c0_82 = arith.constant 0 : index
    %151 = vector.load %arg5[%150, %c0_81, %c0_82] : memref<8x32x128xbf16, #tpu.memory_space<vmem>>, vector<1x32x128xbf16>
    %152 = vector.shape_cast %151 : vector<1x32x128xbf16> to vector<32x128xbf16>
    %cst_83 = arith.constant dense<0.000000e+00> : vector<8x128xf32>
    %153 = tpu.matmul %1, %152, %cst_83 {dimension_numbers = #tpu.dot_dimension_numbers<[1], [0], [0], [1], [0, 0, 1, 1], [], []>} : vector<8x32xbf16>, vector<32x128xbf16>, vector<8x128xf32> -> vector<8x128xf32>
    %154 = arith.index_cast %c4_i32 : i32 to index
    %c0_84 = arith.constant 0 : index
    %c0_85 = arith.constant 0 : index
    %155 = vector.load %arg6[%154, %c0_84, %c0_85] : memref<8x1x128xf32, #tpu.memory_space<vmem>>, vector<1x1x128xf32>
    %156 = vector.shape_cast %155 : vector<1x1x128xf32> to vector<1x128xf32>
    %157 = vector.broadcast %156 : vector<1x128xf32> to vector<8x128xf32>
    %158 = arith.addf %153, %157 : vector<8x128xf32>
    %cst_86 = arith.constant 0.000000e+00 : f32
    %159 = vector.broadcast %cst_86 : f32 to vector<8x128xf32>
    %160 = arith.maximumf %149, %159 : vector<8x128xf32>
    %161 = arith.truncf %160 : vector<8x128xf32> to vector<8x128xbf16>
    %cst_87 = arith.constant 0.000000e+00 : f32
    %162 = vector.broadcast %cst_87 : f32 to vector<8x128xf32>
    %163 = arith.maximumf %158, %162 : vector<8x128xf32>
    %164 = arith.truncf %163 : vector<8x128xf32> to vector<8x128xbf16>
    %165 = arith.index_cast %c4_i32 : i32 to index
    %c0_88 = arith.constant 0 : index
    %c0_89 = arith.constant 0 : index
    %166 = vector.load %arg7[%165, %c0_88, %c0_89] : memref<8x128x128xbf16, #tpu.memory_space<vmem>>, vector<1x128x128xbf16>
    %167 = vector.shape_cast %166 : vector<1x128x128xbf16> to vector<128x128xbf16>
    %cst_90 = arith.constant dense<0.000000e+00> : vector<8x128xf32>
    %168 = tpu.matmul %161, %167, %cst_90 {dimension_numbers = #tpu.dot_dimension_numbers<[1], [0], [0], [1], [0, 0, 1, 1], [], []>} : vector<8x128xbf16>, vector<128x128xbf16>, vector<8x128xf32> -> vector<8x128xf32>
    %169 = arith.addf %140, %168 : vector<8x128xf32>
    %170 = arith.index_cast %c4_i32 : i32 to index
    %c0_91 = arith.constant 0 : index
    %c0_92 = arith.constant 0 : index
    %171 = vector.load %arg8[%170, %c0_91, %c0_92] : memref<8x128x128xbf16, #tpu.memory_space<vmem>>, vector<1x128x128xbf16>
    %172 = vector.shape_cast %171 : vector<1x128x128xbf16> to vector<128x128xbf16>
    %cst_93 = arith.constant dense<0.000000e+00> : vector<8x128xf32>
    %173 = tpu.matmul %164, %172, %cst_93 {dimension_numbers = #tpu.dot_dimension_numbers<[1], [0], [0], [1], [0, 0, 1, 1], [], []>} : vector<8x128xbf16>, vector<128x128xbf16>, vector<8x128xf32> -> vector<8x128xf32>
    %174 = arith.addf %169, %173 : vector<8x128xf32>
    %c5_i32 = arith.constant 5 : i32
    %175 = arith.index_cast %c5_i32 : i32 to index
    %c0_94 = arith.constant 0 : index
    %c0_95 = arith.constant 0 : index
    %176 = vector.load %arg3[%175, %c0_94, %c0_95] : memref<8x32x128xbf16, #tpu.memory_space<vmem>>, vector<1x32x128xbf16>
    %177 = vector.shape_cast %176 : vector<1x32x128xbf16> to vector<32x128xbf16>
    %cst_96 = arith.constant dense<0.000000e+00> : vector<8x128xf32>
    %178 = tpu.matmul %0, %177, %cst_96 {dimension_numbers = #tpu.dot_dimension_numbers<[1], [0], [0], [1], [0, 0, 1, 1], [], []>} : vector<8x32xbf16>, vector<32x128xbf16>, vector<8x128xf32> -> vector<8x128xf32>
    %179 = arith.index_cast %c5_i32 : i32 to index
    %c0_97 = arith.constant 0 : index
    %c0_98 = arith.constant 0 : index
    %180 = vector.load %arg4[%179, %c0_97, %c0_98] : memref<8x1x128xf32, #tpu.memory_space<vmem>>, vector<1x1x128xf32>
    %181 = vector.shape_cast %180 : vector<1x1x128xf32> to vector<1x128xf32>
    %182 = vector.broadcast %181 : vector<1x128xf32> to vector<8x128xf32>
    %183 = arith.addf %178, %182 : vector<8x128xf32>
    %184 = arith.index_cast %c5_i32 : i32 to index
    %c0_99 = arith.constant 0 : index
    %c0_100 = arith.constant 0 : index
    %185 = vector.load %arg5[%184, %c0_99, %c0_100] : memref<8x32x128xbf16, #tpu.memory_space<vmem>>, vector<1x32x128xbf16>
    %186 = vector.shape_cast %185 : vector<1x32x128xbf16> to vector<32x128xbf16>
    %cst_101 = arith.constant dense<0.000000e+00> : vector<8x128xf32>
    %187 = tpu.matmul %1, %186, %cst_101 {dimension_numbers = #tpu.dot_dimension_numbers<[1], [0], [0], [1], [0, 0, 1, 1], [], []>} : vector<8x32xbf16>, vector<32x128xbf16>, vector<8x128xf32> -> vector<8x128xf32>
    %188 = arith.index_cast %c5_i32 : i32 to index
    %c0_102 = arith.constant 0 : index
    %c0_103 = arith.constant 0 : index
    %189 = vector.load %arg6[%188, %c0_102, %c0_103] : memref<8x1x128xf32, #tpu.memory_space<vmem>>, vector<1x1x128xf32>
    %190 = vector.shape_cast %189 : vector<1x1x128xf32> to vector<1x128xf32>
    %191 = vector.broadcast %190 : vector<1x128xf32> to vector<8x128xf32>
    %192 = arith.addf %187, %191 : vector<8x128xf32>
    %cst_104 = arith.constant 0.000000e+00 : f32
    %193 = vector.broadcast %cst_104 : f32 to vector<8x128xf32>
    %194 = arith.maximumf %183, %193 : vector<8x128xf32>
    %195 = arith.truncf %194 : vector<8x128xf32> to vector<8x128xbf16>
    %cst_105 = arith.constant 0.000000e+00 : f32
    %196 = vector.broadcast %cst_105 : f32 to vector<8x128xf32>
    %197 = arith.maximumf %192, %196 : vector<8x128xf32>
    %198 = arith.truncf %197 : vector<8x128xf32> to vector<8x128xbf16>
    %199 = arith.index_cast %c5_i32 : i32 to index
    %c0_106 = arith.constant 0 : index
    %c0_107 = arith.constant 0 : index
    %200 = vector.load %arg7[%199, %c0_106, %c0_107] : memref<8x128x128xbf16, #tpu.memory_space<vmem>>, vector<1x128x128xbf16>
    %201 = vector.shape_cast %200 : vector<1x128x128xbf16> to vector<128x128xbf16>
    %cst_108 = arith.constant dense<0.000000e+00> : vector<8x128xf32>
    %202 = tpu.matmul %195, %201, %cst_108 {dimension_numbers = #tpu.dot_dimension_numbers<[1], [0], [0], [1], [0, 0, 1, 1], [], []>} : vector<8x128xbf16>, vector<128x128xbf16>, vector<8x128xf32> -> vector<8x128xf32>
    %203 = arith.addf %174, %202 : vector<8x128xf32>
    %204 = arith.index_cast %c5_i32 : i32 to index
    %c0_109 = arith.constant 0 : index
    %c0_110 = arith.constant 0 : index
    %205 = vector.load %arg8[%204, %c0_109, %c0_110] : memref<8x128x128xbf16, #tpu.memory_space<vmem>>, vector<1x128x128xbf16>
    %206 = vector.shape_cast %205 : vector<1x128x128xbf16> to vector<128x128xbf16>
    %cst_111 = arith.constant dense<0.000000e+00> : vector<8x128xf32>
    %207 = tpu.matmul %198, %206, %cst_111 {dimension_numbers = #tpu.dot_dimension_numbers<[1], [0], [0], [1], [0, 0, 1, 1], [], []>} : vector<8x128xbf16>, vector<128x128xbf16>, vector<8x128xf32> -> vector<8x128xf32>
    %208 = arith.addf %203, %207 : vector<8x128xf32>
    %c6_i32 = arith.constant 6 : i32
    %209 = arith.index_cast %c6_i32 : i32 to index
    %c0_112 = arith.constant 0 : index
    %c0_113 = arith.constant 0 : index
    %210 = vector.load %arg3[%209, %c0_112, %c0_113] : memref<8x32x128xbf16, #tpu.memory_space<vmem>>, vector<1x32x128xbf16>
    %211 = vector.shape_cast %210 : vector<1x32x128xbf16> to vector<32x128xbf16>
    %cst_114 = arith.constant dense<0.000000e+00> : vector<8x128xf32>
    %212 = tpu.matmul %0, %211, %cst_114 {dimension_numbers = #tpu.dot_dimension_numbers<[1], [0], [0], [1], [0, 0, 1, 1], [], []>} : vector<8x32xbf16>, vector<32x128xbf16>, vector<8x128xf32> -> vector<8x128xf32>
    %213 = arith.index_cast %c6_i32 : i32 to index
    %c0_115 = arith.constant 0 : index
    %c0_116 = arith.constant 0 : index
    %214 = vector.load %arg4[%213, %c0_115, %c0_116] : memref<8x1x128xf32, #tpu.memory_space<vmem>>, vector<1x1x128xf32>
    %215 = vector.shape_cast %214 : vector<1x1x128xf32> to vector<1x128xf32>
    %216 = vector.broadcast %215 : vector<1x128xf32> to vector<8x128xf32>
    %217 = arith.addf %212, %216 : vector<8x128xf32>
    %218 = arith.index_cast %c6_i32 : i32 to index
    %c0_117 = arith.constant 0 : index
    %c0_118 = arith.constant 0 : index
    %219 = vector.load %arg5[%218, %c0_117, %c0_118] : memref<8x32x128xbf16, #tpu.memory_space<vmem>>, vector<1x32x128xbf16>
    %220 = vector.shape_cast %219 : vector<1x32x128xbf16> to vector<32x128xbf16>
    %cst_119 = arith.constant dense<0.000000e+00> : vector<8x128xf32>
    %221 = tpu.matmul %1, %220, %cst_119 {dimension_numbers = #tpu.dot_dimension_numbers<[1], [0], [0], [1], [0, 0, 1, 1], [], []>} : vector<8x32xbf16>, vector<32x128xbf16>, vector<8x128xf32> -> vector<8x128xf32>
    %222 = arith.index_cast %c6_i32 : i32 to index
    %c0_120 = arith.constant 0 : index
    %c0_121 = arith.constant 0 : index
    %223 = vector.load %arg6[%222, %c0_120, %c0_121] : memref<8x1x128xf32, #tpu.memory_space<vmem>>, vector<1x1x128xf32>
    %224 = vector.shape_cast %223 : vector<1x1x128xf32> to vector<1x128xf32>
    %225 = vector.broadcast %224 : vector<1x128xf32> to vector<8x128xf32>
    %226 = arith.addf %221, %225 : vector<8x128xf32>
    %cst_122 = arith.constant 0.000000e+00 : f32
    %227 = vector.broadcast %cst_122 : f32 to vector<8x128xf32>
    %228 = arith.maximumf %217, %227 : vector<8x128xf32>
    %229 = arith.truncf %228 : vector<8x128xf32> to vector<8x128xbf16>
    %cst_123 = arith.constant 0.000000e+00 : f32
    %230 = vector.broadcast %cst_123 : f32 to vector<8x128xf32>
    %231 = arith.maximumf %226, %230 : vector<8x128xf32>
    %232 = arith.truncf %231 : vector<8x128xf32> to vector<8x128xbf16>
    %233 = arith.index_cast %c6_i32 : i32 to index
    %c0_124 = arith.constant 0 : index
    %c0_125 = arith.constant 0 : index
    %234 = vector.load %arg7[%233, %c0_124, %c0_125] : memref<8x128x128xbf16, #tpu.memory_space<vmem>>, vector<1x128x128xbf16>
    %235 = vector.shape_cast %234 : vector<1x128x128xbf16> to vector<128x128xbf16>
    %cst_126 = arith.constant dense<0.000000e+00> : vector<8x128xf32>
    %236 = tpu.matmul %229, %235, %cst_126 {dimension_numbers = #tpu.dot_dimension_numbers<[1], [0], [0], [1], [0, 0, 1, 1], [], []>} : vector<8x128xbf16>, vector<128x128xbf16>, vector<8x128xf32> -> vector<8x128xf32>
    %237 = arith.addf %208, %236 : vector<8x128xf32>
    %238 = arith.index_cast %c6_i32 : i32 to index
    %c0_127 = arith.constant 0 : index
    %c0_128 = arith.constant 0 : index
    %239 = vector.load %arg8[%238, %c0_127, %c0_128] : memref<8x128x128xbf16, #tpu.memory_space<vmem>>, vector<1x128x128xbf16>
    %240 = vector.shape_cast %239 : vector<1x128x128xbf16> to vector<128x128xbf16>
    %cst_129 = arith.constant dense<0.000000e+00> : vector<8x128xf32>
    %241 = tpu.matmul %232, %240, %cst_129 {dimension_numbers = #tpu.dot_dimension_numbers<[1], [0], [0], [1], [0, 0, 1, 1], [], []>} : vector<8x128xbf16>, vector<128x128xbf16>, vector<8x128xf32> -> vector<8x128xf32>
    %242 = arith.addf %237, %241 : vector<8x128xf32>
    %c7_i32 = arith.constant 7 : i32
    %243 = arith.index_cast %c7_i32 : i32 to index
    %c0_130 = arith.constant 0 : index
    %c0_131 = arith.constant 0 : index
    %244 = vector.load %arg3[%243, %c0_130, %c0_131] : memref<8x32x128xbf16, #tpu.memory_space<vmem>>, vector<1x32x128xbf16>
    %245 = vector.shape_cast %244 : vector<1x32x128xbf16> to vector<32x128xbf16>
    %cst_132 = arith.constant dense<0.000000e+00> : vector<8x128xf32>
    %246 = tpu.matmul %0, %245, %cst_132 {dimension_numbers = #tpu.dot_dimension_numbers<[1], [0], [0], [1], [0, 0, 1, 1], [], []>} : vector<8x32xbf16>, vector<32x128xbf16>, vector<8x128xf32> -> vector<8x128xf32>
    %247 = arith.index_cast %c7_i32 : i32 to index
    %c0_133 = arith.constant 0 : index
    %c0_134 = arith.constant 0 : index
    %248 = vector.load %arg4[%247, %c0_133, %c0_134] : memref<8x1x128xf32, #tpu.memory_space<vmem>>, vector<1x1x128xf32>
    %249 = vector.shape_cast %248 : vector<1x1x128xf32> to vector<1x128xf32>
    %250 = vector.broadcast %249 : vector<1x128xf32> to vector<8x128xf32>
    %251 = arith.addf %246, %250 : vector<8x128xf32>
    %252 = arith.index_cast %c7_i32 : i32 to index
    %c0_135 = arith.constant 0 : index
    %c0_136 = arith.constant 0 : index
    %253 = vector.load %arg5[%252, %c0_135, %c0_136] : memref<8x32x128xbf16, #tpu.memory_space<vmem>>, vector<1x32x128xbf16>
    %254 = vector.shape_cast %253 : vector<1x32x128xbf16> to vector<32x128xbf16>
    %cst_137 = arith.constant dense<0.000000e+00> : vector<8x128xf32>
    %255 = tpu.matmul %1, %254, %cst_137 {dimension_numbers = #tpu.dot_dimension_numbers<[1], [0], [0], [1], [0, 0, 1, 1], [], []>} : vector<8x32xbf16>, vector<32x128xbf16>, vector<8x128xf32> -> vector<8x128xf32>
    %256 = arith.index_cast %c7_i32 : i32 to index
    %c0_138 = arith.constant 0 : index
    %c0_139 = arith.constant 0 : index
    %257 = vector.load %arg6[%256, %c0_138, %c0_139] : memref<8x1x128xf32, #tpu.memory_space<vmem>>, vector<1x1x128xf32>
    %258 = vector.shape_cast %257 : vector<1x1x128xf32> to vector<1x128xf32>
    %259 = vector.broadcast %258 : vector<1x128xf32> to vector<8x128xf32>
    %260 = arith.addf %255, %259 : vector<8x128xf32>
    %cst_140 = arith.constant 0.000000e+00 : f32
    %261 = vector.broadcast %cst_140 : f32 to vector<8x128xf32>
    %262 = arith.maximumf %251, %261 : vector<8x128xf32>
    %263 = arith.truncf %262 : vector<8x128xf32> to vector<8x128xbf16>
    %cst_141 = arith.constant 0.000000e+00 : f32
    %264 = vector.broadcast %cst_141 : f32 to vector<8x128xf32>
    %265 = arith.maximumf %260, %264 : vector<8x128xf32>
    %266 = arith.truncf %265 : vector<8x128xf32> to vector<8x128xbf16>
    %267 = arith.index_cast %c7_i32 : i32 to index
    %c0_142 = arith.constant 0 : index
    %c0_143 = arith.constant 0 : index
    %268 = vector.load %arg7[%267, %c0_142, %c0_143] : memref<8x128x128xbf16, #tpu.memory_space<vmem>>, vector<1x128x128xbf16>
    %269 = vector.shape_cast %268 : vector<1x128x128xbf16> to vector<128x128xbf16>
    %cst_144 = arith.constant dense<0.000000e+00> : vector<8x128xf32>
    %270 = tpu.matmul %263, %269, %cst_144 {dimension_numbers = #tpu.dot_dimension_numbers<[1], [0], [0], [1], [0, 0, 1, 1], [], []>} : vector<8x128xbf16>, vector<128x128xbf16>, vector<8x128xf32> -> vector<8x128xf32>
    %271 = arith.addf %242, %270 : vector<8x128xf32>
    %272 = arith.index_cast %c7_i32 : i32 to index
    %c0_145 = arith.constant 0 : index
    %c0_146 = arith.constant 0 : index
    %273 = vector.load %arg8[%272, %c0_145, %c0_146] : memref<8x128x128xbf16, #tpu.memory_space<vmem>>, vector<1x128x128xbf16>
    %274 = vector.shape_cast %273 : vector<1x128x128xbf16> to vector<128x128xbf16>
    %cst_147 = arith.constant dense<0.000000e+00> : vector<8x128xf32>
    %275 = tpu.matmul %266, %274, %cst_147 {dimension_numbers = #tpu.dot_dimension_numbers<[1], [0], [0], [1], [0, 0, 1, 1], [], []>} : vector<8x128xbf16>, vector<128x128xbf16>, vector<8x128xf32> -> vector<8x128xf32>
    %276 = arith.addf %271, %275 : vector<8x128xf32>
    %c8_i32 = arith.constant 8 : i32
    %277 = arith.truncf %276 : vector<8x128xf32> to vector<8x128xbf16>
    %c0_148 = arith.constant 0 : index
    %c0_149 = arith.constant 0 : index
    %278 = vector.load %arg10[%c0_148, %c0_149] : memref<8x128xbf16, #tpu.memory_space<vmem>>, vector<8x128xbf16>
    tpu.vector_store %arg10[%c0_148, %c0_149], %277 {strides = array<i32>} : memref<8x128xbf16, #tpu.memory_space<vmem>>, vector<8x128xbf16>,
    return
  }
  func.func @transform_0(%arg0: i32) -> (i32, i32) {
    %c0_i32 = arith.constant 0 : i32
    %c0_i32_0 = arith.constant 0 : i32
    return %arg0, %c0_i32 : i32, i32
  }
  func.func @transform_1(%arg0: i32) -> (i32, i32) {
    %c0_i32 = arith.constant 0 : i32
    %c0_i32_0 = arith.constant 0 : i32
    return %arg0, %c0_i32 : i32, i32
  }
  func.func @transform_2(%arg0: i32) -> (i32, i32, i32) {
    %c0_i32 = arith.constant 0 : i32
    %c0_i32_0 = arith.constant 0 : i32
    %c0_i32_1 = arith.constant 0 : i32
    %c0_i32_2 = arith.constant 0 : i32
    return %c0_i32, %c0_i32_0, %c0_i32_1 : i32, i32, i32
  }
  func.func @transform_3(%arg0: i32) -> (i32, i32, i32) {
    %c0_i32 = arith.constant 0 : i32
    %c0_i32_0 = arith.constant 0 : i32
    %c0_i32_1 = arith.constant 0 : i32
    %c0_i32_2 = arith.constant 0 : i32
    return %c0_i32, %c0_i32_0, %c0_i32_1 : i32, i32, i32
  }
  func.func @transform_4(%arg0: i32) -> (i32, i32, i32) {
    %c0_i32 = arith.constant 0 : i32
    %c0_i32_0 = arith.constant 0 : i32
    %c0_i32_1 = arith.constant 0 : i32
    %c0_i32_2 = arith.constant 0 : i32
    return %c0_i32, %c0_i32_0, %c0_i32_1 : i32, i32, i32
  }
  func.func @transform_5(%arg0: i32) -> (i32, i32, i32) {
    %c0_i32 = arith.constant 0 : i32
    %c0_i32_0 = arith.constant 0 : i32
    %c0_i32_1 = arith.constant 0 : i32
    %c0_i32_2 = arith.constant 0 : i32
    return %c0_i32, %c0_i32_0, %c0_i32_1 : i32, i32, i32
  }
  func.func @transform_6(%arg0: i32) -> (i32, i32, i32) {
    %c0_i32 = arith.constant 0 : i32
    %c0_i32_0 = arith.constant 0 : i32
    %c0_i32_1 = arith.constant 0 : i32
    %c0_i32_2 = arith.constant 0 : i32
    return %c0_i32, %c0_i32_0, %c0_i32_1 : i32, i32, i32
  }
  func.func @transform_7(%arg0: i32) -> (i32, i32, i32) {
    %c0_i32 = arith.constant 0 : i32
    %c0_i32_0 = arith.constant 0 : i32
    %c0_i32_1 = arith.constant 0 : i32
    %c0_i32_2 = arith.constant 0 : i32
    return %c0_i32, %c0_i32_0, %c0_i32_1 : i32, i32, i32
  }
  func.func @transform_8(%arg0: i32) -> (i32, i32) {
    %c0_i32 = arith.constant 0 : i32
    %c0_i32_0 = arith.constant 0 : i32
    %c0_i32_1 = arith.constant 0 : i32
    return %c0_i32, %c0_i32_0 : i32, i32
  }
  func.func @transform_9(%arg0: i32) -> (i32, i32) {
    %c0_i32 = arith.constant 0 : i32
    %c0_i32_0 = arith.constant 0 : i32
    return %arg0, %c0_i32 : i32, i32
  }
}

</mosaic_0001>

<llo_original>
// kernel: tpu_custom_call.1
$region0: #{tpu_custom_call.1}
  #allocation0 [shape = 'u32[]', space=smem, size = 0x4, offset = 0x4, fixed_abs, tag = 'smem constant byte address 0x4 - core index']
  #allocation1 [shape = 'u32[144,128]{1,0:T(1,128)}', space=vmem, size = 0x12000, scoped, tag = 'internal scratch']
  %s0 = inlined_call_operand.hbm [shape: bf16[8,32], index: 0, kind: input, shape index: {}]
  %s1 = inlined_call_operand.hbm [shape: bf16[8,32], index: 1, kind: input, shape index: {}]
  %s2 = inlined_call_operand.hbm [shape: bf16[8,32,128], index: 2, kind: input, shape index: {}]
  %s3 = inlined_call_operand.vmem [shape: f32[8,1,128], index: 3, kind: input, shape index: {}]
  %s4 = inlined_call_operand.hbm [shape: bf16[8,32,128], index: 4, kind: input, shape index: {}]
  %s5 = inlined_call_operand.vmem [shape: f32[8,1,128], index: 5, kind: input, shape index: {}]
  %s6 = inlined_call_operand.hbm [shape: bf16[8,128,128], index: 6, kind: input, shape index: {}]
  %s7 = inlined_call_operand.hbm [shape: bf16[8,128,128], index: 7, kind: input, shape index: {}]
  %s8 = inlined_call_operand.vmem [shape: f32[1,128], index: 8, kind: input, shape index: {}]
  %s9 = inlined_call_operand.hbm [shape: bf16[8,128], index: 9, kind: output, shape index: {}]
  %s10 = sld [smem:[#allocation0]]
  $region70: #{tpu_custom_call.1} parent=0
    _
  %s12 = ssub.s32 1, %s10
  %s13 = scalar_select 0, %s12, %s10
  $region1: #{tpu_custom_call.1} parent=0
    #allocation2 [shape = 'u8[2048]{0}', space=vmem, size = 0x800, scoped, tag = 'input window, operand 0, single buffered']
    #allocation3 [shape = 's32[1]{0}', space=sflag, size = 0x4, scoped, tag = 'scoped memory for tpu_custom_call.1']
    #allocation4 [shape = 's32[1]{0}', space=sflag, size = 0x4, scoped, tag = 'scoped memory for tpu_custom_call.1']
    #allocation5 [shape = 'u8[2048]{0}', space=vmem, size = 0x800, scoped, tag = 'input window, operand 1, single buffered']
    #allocation6 [shape = 's32[1]{0}', space=sflag, size = 0x4, scoped, tag = 'scoped memory for tpu_custom_call.1']
    #allocation7 [shape = 'u8[65536]{0}', space=vmem, size = 0x10000, scoped, tag = 'input window, operand 2, single buffered']
    #allocation8 [shape = 'u8[65536]{0}', space=vmem, size = 0x10000, scoped, tag = 'input window, operand 4, single buffered']
    #allocation9 [shape = 's32[1]{0}', space=sflag, size = 0x4, scoped, tag = 'scoped memory for tpu_custom_call.1']
    #allocation10 [shape = 'u8[262144]{0}', space=vmem, size = 0x40000, scoped, tag = 'input window, operand 6, single buffered']
    #allocation11 [shape = 'u8[262144]{0}', space=vmem, size = 0x40000, scoped, tag = 'input window, operand 7, single buffered']
    #allocation12 [shape = 's32[1]{0}', space=sflag, size = 0x4, scoped, tag = 'scoped memory for tpu_custom_call.1']
    #allocation13 [shape = 'u8[2048]{0}', space=vmem, size = 0x800, scoped, tag = 'output window, operand 0, single buffered']
    %14 = vsyncpa [#allocation3], 0
    %15 = vsyncpa [#allocation6], 0
    %16 = vsyncpa [#allocation9], 0
    %17 = vsyncpa [#allocation12], 0
    %18 = vsyncpa [#allocation4], 0
    // Predicated region
    $region2: #{tpu_custom_call.1} parent=1 // pred_check
      _
    $region3: #{tpu_custom_call.1} parent=1 // pred_check_branch
      %20 = sbr.rel (0) target = $region5
    $region4: #{tpu_custom_call.1} parent=1 // pred_region
      %s22 = ssub.s32 64, 64
      %23 = vsyncadd [#allocation3], %s22
      %s25 = sshll.u32 [#allocation2], 4
      %s26 = int_to_ptr.vmem [resolvable:$true] %s25
      %28 = dma.hbm_to_vmem [thread:$0]  %s0, 64, %s26, [#allocation3]
    $region5: #{tpu_custom_call.1} parent=1 // pred_fallthru
      _
    // Predicated region
    $region6: #{tpu_custom_call.1} parent=1 // pred_check
      _
    $region7: #{tpu_custom_call.1} parent=1 // pred_check_branch
      %30 = sbr.rel (0) target = $region9
    $region8: #{tpu_custom_call.1} parent=1 // pred_region
      %s32 = ssub.s32 64, 64
      %33 = vsyncadd [#allocation6], %s32
      %s35 = sshll.u32 [#allocation5], 4
      %s36 = int_to_ptr.vmem [resolvable:$true] %s35
      %38 = dma.hbm_to_vmem [thread:$0]  %s1, 64, %s36, [#allocation6]
    $region9: #{tpu_custom_call.1} parent=1 // pred_fallthru
      _
    // Predicated region
    $region10: #{tpu_custom_call.1} parent=1 // pred_check
      _
    $region11: #{tpu_custom_call.1} parent=1 // pred_check_branch
      %40 = sbr.rel (0) target = $region13
    $region12: #{tpu_custom_call.1} parent=1 // pred_region
      %s42 = ssub.s32 2048, 2048
      %43 = vsyncadd [#allocation6], %s42
      %s44 = sshll.u32 [#allocation7], 4
      %s45 = int_to_ptr.vmem [resolvable:$true] %s44
      %50 = dma.hbm_to_vmem [thread:$0]  %s2, 2048, %s45, [#allocation6], 64, 64, 4
    $region13: #{tpu_custom_call.1} parent=1 // pred_fallthru
      _
    // Predicated region
    $region14: #{tpu_custom_call.1} parent=1 // pred_check
      _
    $region15: #{tpu_custom_call.1} parent=1 // pred_check_branch
      %52 = sbr.rel (0) target = $region17
    $region16: #{tpu_custom_call.1} parent=1 // pred_region
      _
    $region17: #{tpu_custom_call.1} parent=1 // pred_fallthru
      _
    // Predicated region
    $region18: #{tpu_custom_call.1} parent=1 // pred_check
      _
    $region19: #{tpu_custom_call.1} parent=1 // pred_check_branch
      %54 = sbr.rel (0) target = $region21
    $region20: #{tpu_custom_call.1} parent=1 // pred_region
      %s56 = ssub.s32 2048, 2048
      %57 = vsyncadd [#allocation9], %s56
      %s58 = sshll.u32 [#allocation8], 4
      %s59 = int_to_ptr.vmem [resolvable:$true] %s58
      %64 = dma.hbm_to_vmem [thread:$0]  %s4, 2048, %s59, [#allocation9], 64, 64, 4
    $region21: #{tpu_custom_call.1} parent=1 // pred_fallthru
      _
    // Predicated region
    $region22: #{tpu_custom_call.1} parent=1 // pred_check
      _
    $region23: #{tpu_custom_call.1} parent=1 // pred_check_branch
      %66 = sbr.rel (0) target = $region25
    $region24: #{tpu_custom_call.1} parent=1 // pred_region
      _
    $region25: #{tpu_custom_call.1} parent=1 // pred_fallthru
      _
    // Predicated region
    $region26: #{tpu_custom_call.1} parent=1 // pred_check
      _
    $region27: #{tpu_custom_call.1} parent=1 // pred_check_branch
      %68 = sbr.rel (0) target = $region29
    $region28: #{tpu_custom_call.1} parent=1 // pred_region
      %s70 = ssub.s32 8192, 8192
      %71 = vsyncadd [#allocation9], %s70
      %s72 = sshll.u32 [#allocation10], 4
      %s73 = int_to_ptr.vmem [resolvable:$true] %s72
      %78 = dma.hbm_to_vmem [thread:$0]  %s6, 8192, %s73, [#allocation9], 64, 64, 4
    $region29: #{tpu_custom_call.1} parent=1 // pred_fallthru
      _
    // Predicated region
    $region30: #{tpu_custom_call.1} parent=1 // pred_check
      _
    $region31: #{tpu_custom_call.1} parent=1 // pred_check_branch
      %80 = sbr.rel (0) target = $region33
    $region32: #{tpu_custom_call.1} parent=1 // pred_region
      %s82 = ssub.s32 8192, 8192
      %83 = vsyncadd [#allocation12], %s82
      %s84 = sshll.u32 [#allocation11], 4
      %s85 = int_to_ptr.vmem [resolvable:$true] %s84
      %90 = dma.hbm_to_vmem [thread:$0]  %s7, 8192, %s85, [#allocation12], 64, 64, 4
    $region33: #{tpu_custom_call.1} parent=1 // pred_fallthru
      _
    // Predicated region
    $region34: #{tpu_custom_call.1} parent=1 // pred_check
      _
    $region35: #{tpu_custom_call.1} parent=1 // pred_check_branch
      %92 = sbr.rel (0) target = $region37
    $region36: #{tpu_custom_call.1} parent=1 // pred_region
      _
    $region37: #{tpu_custom_call.1} parent=1 // pred_fallthru
      _
    // Predicated region
    $region38: #{tpu_custom_call.1} parent=1 // pred_check
      _
    $region39: #{tpu_custom_call.1} parent=1 // pred_check_branch
      %94 = sbr.rel (0) target = $region41
    $region40: #{tpu_custom_call.1} parent=1 // pred_region
      %95 = dma.done [#allocation3], 64
    $region41: #{tpu_custom_call.1} parent=1 // pred_fallthru
      _
    // Predicated region
    $region42: #{tpu_custom_call.1} parent=1 // pred_check
      _
    $region43: #{tpu_custom_call.1} parent=1 // pred_check_branch
      %97 = sbr.rel (0) target = $region45
    $region44: #{tpu_custom_call.1} parent=1 // pred_region
      %98 = dma.done [#allocation6], 64
    $region45: #{tpu_custom_call.1} parent=1 // pred_fallthru
      _
    // Predicated region
    $region46: #{tpu_custom_call.1} parent=1 // pred_check
      _
    $region47: #{tpu_custom_call.1} parent=1 // pred_check_branch
      %100 = sbr.rel (0) target = $region49
    $region48: #{tpu_custom_call.1} parent=1 // pred_region
      %101 = dma.done [#allocation6], 2048
    $region49: #{tpu_custom_call.1} parent=1 // pred_fallthru
      _
    // Predicated region
    $region50: #{tpu_custom_call.1} parent=1 // pred_check
      _
    $region51: #{tpu_custom_call.1} parent=1 // pred_check_branch
      %103 = sbr.rel (0) target = $region53
    $region52: #{tpu_custom_call.1} parent=1 // pred_region
      %104 = dma.done [#allocation9], 2048
    $region53: #{tpu_custom_call.1} parent=1 // pred_fallthru
      _
    // Predicated region
    $region54: #{tpu_custom_call.1} parent=1 // pred_check
      _
    $region55: #{tpu_custom_call.1} parent=1 // pred_check_branch
      %106 = sbr.rel (0) target = $region57
    $region56: #{tpu_custom_call.1} parent=1 // pred_region
      %107 = dma.done [#allocation9], 8192
    $region57: #{tpu_custom_call.1} parent=1 // pred_fallthru
      _
    // Predicated region
    $region58: #{tpu_custom_call.1} parent=1 // pred_check
      _
    $region59: #{tpu_custom_call.1} parent=1 // pred_check_branch
      %109 = sbr.rel (0) target = $region61
    $region60: #{tpu_custom_call.1} parent=1 // pred_region
      %110 = dma.done [#allocation12], 8192
    $region61: #{tpu_custom_call.1} parent=1 // pred_fallthru
      _
    %v112 = vld [vmem:[#allocation2] sm:$0xf]
    %v113 = vld [vmem:[#allocation5] sm:$0xf]
    %v114 = vld [vmem:[%s8] sm:$0x1]
    %v116 = vlaneseq
    %v117 = vshrl.u32 %v116, 7
    %v118 = vsub.s32 0, %v117
    %v119 = vrot.slane %v114, %v118
    %v121 = vld [vmem:[#allocation7] sm:$0xf]
    %v122 = vld [vmem:[#allocation7 + $0x4] sm:$0xf]
    %v123 = vld [vmem:[#allocation7 + $0x8] sm:$0xf]
    %v124 = vld [vmem:[#allocation7 + $0xc] sm:$0xf]
    %v125 = vld [vmem:[%s3] sm:$0x1]
    %v127 = vlaneseq
    %v128 = vshrl.u32 %v127, 7
    %v129 = vsub.s32 0, %v128
    %v130 = vrot.slane %v125, %v129
    %v136 = vunpack.c.l.b16 %v121
    %v137 = vunpack.c.l.b16 %v122
    %v138 = vunpack.c.l.b16 %v123
    %v139 = vunpack.c.l.b16 %v124
    %v140 = vpack.c.b16 %v137, %v136
    %v141 = vpack.c.b16 %v139, %v138
    %vm144 = vcmask 261120
    %v146 = vsel %vm144, %v112, 0
    %148 = vmatprep.subr.bf16.mxu0 0
    %149 = vmatpush1.bf16.msra.mxu0 %v140
    %150 = vmatprep.subr.bf16.mxu0 0
    %151 = vmatpush1.bf16.msra.mxu0 %v141
    %152 = vmatprep.subr.bf16.mxu0 0
    %153 = vmatpush1.bf16.msra.mxu0 0
    %154 = vmatprep.subr.bf16.mxu0 0
    %155 = vmatpush1.bf16.msra.mxu0 0
    %156 = vmatprep.subr.bf16.mxu0 0
    %157 = vmatpush1.bf16.msra.mxu0 0
    %158 = vmatprep.subr.bf16.mxu0 0
    %159 = vmatpush1.bf16.msra.mxu0 0
    %160 = vmatprep.subr.bf16.mxu0 0
    %161 = vmatpush1.bf16.msra.mxu0 0
    %162 = vmatprep.subr.bf16.mxu0 0
    %163 = vmatpush1.bf16.msra.mxu0 0
    %164 = vmatprep.subr.bf16.mxu0 0
    %165 = vmatpush1.bf16.msra.mxu0 0
    %166 = vmatprep.subr.bf16.mxu0 0
    %167 = vmatpush1.bf16.msra.mxu0 0
    %168 = vmatprep.subr.bf16.mxu0 0
    %169 = vmatpush1.bf16.msra.mxu0 0
    %170 = vmatprep.subr.bf16.mxu0 0
    %171 = vmatpush1.bf16.msra.mxu0 0
    %172 = vmatprep.subr.bf16.mxu0 0
    %173 = vmatpush1.bf16.msra.mxu0 0
    %174 = vmatprep.subr.bf16.mxu0 0
    %175 = vmatpush1.bf16.msra.mxu0 0
    %176 = vmatprep.subr.bf16.mxu0 0
    %177 = vmatpush1.bf16.msra.mxu0 0
    %178 = vmatprep.subr.bf16.mxu0 0
    %179 = vmatpush1.bf16.msra.mxu0 0
    %180 = vmatprep.mubr.bf16.mxu0 0
    %181 = vmatmul.mubr.bf16.gmra.mrb[0].mxu0 %v146
    %v182 = vpop.f32.mrb[0].mxu0
    %v183 = vadd.f32 %v130, %v182
    %v184 = vpop.f32.mrb[0].mxu0
    %v185 = vpop.f32.mrb[0].mxu0
    %v186 = vpop.f32.mrb[0].mxu0
    %187 = vdwg.mxu0
    %v188 = vld [vmem:[#allocation8] sm:$0xf]
    %v189 = vld [vmem:[#allocation8 + $0x4] sm:$0xf]
    %v190 = vld [vmem:[#allocation8 + $0x8] sm:$0xf]
    %v191 = vld [vmem:[#allocation8 + $0xc] sm:$0xf]
    %v192 = vld [vmem:[%s5] sm:$0x1]
    %v194 = vlaneseq
    %v195 = vshrl.u32 %v194, 7
    %v196 = vsub.s32 0, %v195
    %v197 = vrot.slane %v192, %v196
    %v203 = vunpack.c.l.b16 %v188
    %v204 = vunpack.c.l.b16 %v189
    %v205 = vunpack.c.l.b16 %v190
    %v206 = vunpack.c.l.b16 %v191
    %v207 = vpack.c.b16 %v204, %v203
    %v208 = vpack.c.b16 %v206, %v205
    %v212 = vsel %vm144, %v113, 0
    %214 = vmatprep.subr.bf16.mxu0 0
    %215 = vmatpush1.bf16.msra.mxu0 %v207
    %216 = vmatprep.subr.bf16.mxu0 0
    %217 = vmatpush1.bf16.msra.mxu0 %v208
    %218 = vmatprep.subr.bf16.mxu0 0
    %219 = vmatpush1.bf16.msra.mxu0 0
    %220 = vmatprep.subr.bf16.mxu0 0
    %221 = vmatpush1.bf16.msra.mxu0 0
    %222 = vmatprep.subr.bf16.mxu0 0
    %223 = vmatpush1.bf16.msra.mxu0 0
    %224 = vmatprep.subr.bf16.mxu0 0
    %225 = vmatpush1.bf16.msra.mxu0 0
    %226 = vmatprep.subr.bf16.mxu0 0
    %227 = vmatpush1.bf16.msra.mxu0 0
    %228 = vmatprep.subr.bf16.mxu0 0
    %229 = vmatpush1.bf16.msra.mxu0 0
    %230 = vmatprep.subr.bf16.mxu0 0
    %231 = vmatpush1.bf16.msra.mxu0 0
    %232 = vmatprep.subr.bf16.mxu0 0
    %233 = vmatpush1.bf16.msra.mxu0 0
    %234 = vmatprep.subr.bf16.mxu0 0
    %235 = vmatpush1.bf16.msra.mxu0 0
    %236 = vmatprep.subr.bf16.mxu0 0
    %237 = vmatpush1.bf16.msra.mxu0 0
    %238 = vmatprep.subr.bf16.mxu0 0
    %239 = vmatpush1.bf16.msra.mxu0 0
    %240 = vmatprep.subr.bf16.mxu0 0
    %241 = vmatpush1.bf16.msra.mxu0 0
    %242 = vmatprep.subr.bf16.mxu0 0
    %243 = vmatpush1.bf16.msra.mxu0 0
    %244 = vmatprep.subr.bf16.mxu0 0
    %245 = vmatpush1.bf16.msra.mxu0 0
    %246 = vmatprep.mubr.bf16.mxu0 0
    %247 = vmatmul.mubr.bf16.gmra.mrb[0].mxu0 %v212
    %v248 = vpop.f32.mrb[0].mxu0
    %v249 = vadd.f32 %v197, %v248
    %v250 = vpop.f32.mrb[0].mxu0
    %v251 = vpop.f32.mrb[0].mxu0
    %v252 = vpop.f32.mrb[0].mxu0
    %253 = vdwg.mxu0
    %v254 = vmax.f32 %v183, 0.0
    %v255 = vpack.c.bf16 %v254, %v254
    %v256 = vmax.f32 %v249, 0.0
    %v257 = vpack.c.bf16 %v256, %v256
    %v258 = vld [vmem:[#allocation10] sm:$0xf]
    %v259 = vld [vmem:[#allocation10 + $0x4] sm:$0xf]
    %v260 = vld [vmem:[#allocation10 + $0x8] sm:$0xf]
    %v261 = vld [vmem:[#allocation10 + $0xc] sm:$0xf]
    %v262 = vld [vmem:[#allocation10 + $0x10] sm:$0xf]
    %v263 = vld [vmem:[#allocation10 + $0x14] sm:$0xf]
    %v264 = vld [vmem:[#allocation10 + $0x18] sm:$0xf]
    %v265 = vld [vmem:[#allocation10 + $0x1c] sm:$0xf]
    %v266 = vld [vmem:[#allocation10 + $0x20] sm:$0xf]
    %v267 = vld [vmem:[#allocation10 + $0x24] sm:$0xf]
    %v268 = vld [vmem:[#allocation10 + $0x28] sm:$0xf]
    %v269 = vld [vmem:[#allocation10 + $0x2c] sm:$0xf]
    %v270 = vld [vmem:[#allocation10 + $0x30] sm:$0xf]
    %v271 = vld [vmem:[#allocation10 + $0x34] sm:$0xf]
    %v272 = vld [vmem:[#allocation10 + $0x38] sm:$0xf]
    %v273 = vld [vmem:[#allocation10 + $0x3c] sm:$0xf]
    %v290 = vunpack.c.l.b16 %v258
    %v291 = vunpack.c.l.b16 %v259
    %v292 = vunpack.c.l.b16 %v260
    %v293 = vunpack.c.l.b16 %v261
    %v294 = vunpack.c.l.b16 %v262
    %v295 = vunpack.c.l.b16 %v263
    %v296 = vunpack.c.l.b16 %v264
    %v297 = vunpack.c.l.b16 %v265
    %v298 = vunpack.c.l.b16 %v266
    %v299 = vunpack.c.l.b16 %v267
    %v300 = vunpack.c.l.b16 %v268
    %v301 = vunpack.c.l.b16 %v269
    %v302 = vunpack.c.l.b16 %v270
    %v303 = vunpack.c.l.b16 %v271
    %v304 = vunpack.c.l.b16 %v272
    %v305 = vunpack.c.l.b16 %v273
    %v306 = vpack.c.b16 %v291, %v290
    %v307 = vpack.c.b16 %v293, %v292
    %v308 = vpack.c.b16 %v295, %v294
    %v309 = vpack.c.b16 %v297, %v296
    %v310 = vpack.c.b16 %v299, %v298
    %v311 = vpack.c.b16 %v301, %v300
    %v312 = vpack.c.b16 %v303, %v302
    %v313 = vpack.c.b16 %v305, %v304
    %322 = vmatprep.subr.bf16.mxu0 0
    %323 = vmatpush1.bf16.msra.mxu0 %v306
    %324 = vmatprep.subr.bf16.mxu0 0
    %325 = vmatpush1.bf16.msra.mxu0 %v307
    %326 = vmatprep.subr.bf16.mxu0 0
    %327 = vmatpush1.bf16.msra.mxu0 %v308
    %328 = vmatprep.subr.bf16.mxu0 0
    %329 = vmatpush1.bf16.msra.mxu0 %v309
    %330 = vmatprep.subr.bf16.mxu0 0
    %331 = vmatpush1.bf16.msra.mxu0 %v310
    %332 = vmatprep.subr.bf16.mxu0 0
    %333 = vmatpush1.bf16.msra.mxu0 %v311
    %334 = vmatprep.subr.bf16.mxu0 0
    %335 = vmatpush1.bf16.msra.mxu0 %v312
    %336 = vmatprep.subr.bf16.mxu0 0
    %337 = vmatpush1.bf16.msra.mxu0 %v313
    %338 = vmatprep.subr.bf16.mxu0 0
    %339 = vmatpush1.bf16.msra.mxu0 0
    %340 = vmatprep.subr.bf16.mxu0 0
    %341 = vmatpush1.bf16.msra.mxu0 0
    %342 = vmatprep.subr.bf16.mxu0 0
    %343 = vmatpush1.bf16.msra.mxu0 0
    %344 = vmatprep.subr.bf16.mxu0 0
    %345 = vmatpush1.bf16.msra.mxu0 0
    %346 = vmatprep.subr.bf16.mxu0 0
    %347 = vmatpush1.bf16.msra.mxu0 0
    %348 = vmatprep.subr.bf16.mxu0 0
    %349 = vmatpush1.bf16.msra.mxu0 0
    %350 = vmatprep.subr.bf16.mxu0 0
    %351 = vmatpush1.bf16.msra.mxu0 0
    %352 = vmatprep.subr.bf16.mxu0 0
    %353 = vmatpush1.bf16.msra.mxu0 0
    %354 = vmatprep.mubr.bf16.mxu0 0
    %355 = vmatmul.mubr.bf16.gmra.mrb[0].mxu0 %v255
    %v356 = vpop.f32.mrb[0].mxu0
    %v357 = vadd.f32 0.0, %v356
    %v358 = vpop.f32.mrb[0].mxu0
    %v359 = vpop.f32.mrb[0].mxu0
    %v360 = vpop.f32.mrb[0].mxu0
    %361 = vdwg.mxu0
    %v362 = vadd.f32 %v119, %v357
    %v363 = vld [vmem:[#allocation11] sm:$0xf]
    %v364 = vld [vmem:[#allocation11 + $0x4] sm:$0xf]
    %v365 = vld [vmem:[#allocation11 + $0x8] sm:$0xf]
    %v366 = vld [vmem:[#allocation11 + $0xc] sm:$0xf]
    %v367 = vld [vmem:[#allocation11 + $0x10] sm:$0xf]
    %v368 = vld [vmem:[#allocation11 + $0x14] sm:$0xf]
    %v369 = vld [vmem:[#allocation11 + $0x18] sm:$0xf]
    %v370 = vld [vmem:[#allocation11 + $0x1c] sm:$0xf]
    %v371 = vld [vmem:[#allocation11 + $0x20] sm:$0xf]
    %v372 = vld [vmem:[#allocation11 + $0x24] sm:$0xf]
    %v373 = vld [vmem:[#allocation11 + $0x28] sm:$0xf]
    %v374 = vld [vmem:[#allocation11 + $0x2c] sm:$0xf]
    %v375 = vld [vmem:[#allocation11 + $0x30] sm:$0xf]
    %v376 = vld [vmem:[#allocation11 + $0x34] sm:$0xf]
    %v377 = vld [vmem:[#allocation11 + $0x38] sm:$0xf]
    %v378 = vld [vmem:[#allocation11 + $0x3c] sm:$0xf]
    %v395 = vunpack.c.l.b16 %v363
    %v396 = vunpack.c.l.b16 %v364
    %v397 = vunpack.c.l.b16 %v365
    %v398 = vunpack.c.l.b16 %v366
    %v399 = vunpack.c.l.b16 %v367
    %v400 = vunpack.c.l.b16 %v368
    %v401 = vunpack.c.l.b16 %v369
    %v402 = vunpack.c.l.b16 %v370
    %v403 = vunpack.c.l.b16 %v371
    %v404 = vunpack.c.l.b16 %v372
    %v405 = vunpack.c.l.b16 %v373
    %v406 = vunpack.c.l.b16 %v374
    %v407 = vunpack.c.l.b16 %v375
    %v408 = vunpack.c.l.b16 %v376
    %v409 = vunpack.c.l.b16 %v377
    %v410 = vunpack.c.l.b16 %v378
    %v411 = vpack.c.b16 %v396, %v395
    %v412 = vpack.c.b16 %v398, %v397
    %v413 = vpack.c.b16 %v400, %v399
    %v414 = vpack.c.b16 %v402, %v401
    %v415 = vpack.c.b16 %v404, %v403
    %v416 = vpack.c.b16 %v406, %v405
    %v417 = vpack.c.b16 %v408, %v407
    %v418 = vpack.c.b16 %v410, %v409
    %427 = vmatprep.subr.bf16.mxu0 0
    %428 = vmatpush1.bf16.msra.mxu0 %v411
    %429 = vmatprep.subr.bf16.mxu0 0
    %430 = vmatpush1.bf16.msra.mxu0 %v412
    %431 = vmatprep.subr.bf16.mxu0 0
    %432 = vmatpush1.bf16.msra.mxu0 %v413
    %433 = vmatprep.subr.bf16.mxu0 0
    %434 = vmatpush1.bf16.msra.mxu0 %v414
    %435 = vmatprep.subr.bf16.mxu0 0
    %436 = vmatpush1.bf16.msra.mxu0 %v415
    %437 = vmatprep.subr.bf16.mxu0 0
    %438 = vmatpush1.bf16.msra.mxu0 %v416
    %439 = vmatprep.subr.bf16.mxu0 0
    %440 = vmatpush1.bf16.msra.mxu0 %v417
    %441 = vmatprep.subr.bf16.mxu0 0
    %442 = vmatpush1.bf16.msra.mxu0 %v418
    %443 = vmatprep.subr.bf16.mxu0 0
    %444 = vmatpush1.bf16.msra.mxu0 0
    %445 = vmatprep.subr.bf16.mxu0 0
    %446 = vmatpush1.bf16.msra.mxu0 0
    %447 = vmatprep.subr.bf16.mxu0 0
    %448 = vmatpush1.bf16.msra.mxu0 0
    %449 = vmatprep.subr.bf16.mxu0 0
    %450 = vmatpush1.bf16.msra.mxu0 0
    %451 = vmatprep.subr.bf16.mxu0 0
    %452 = vmatpush1.bf16.msra.mxu0 0
    %453 = vmatprep.subr.bf16.mxu0 0
    %454 = vmatpush1.bf16.msra.mxu0 0
    %455 = vmatprep.subr.bf16.mxu0 0
    %456 = vmatpush1.bf16.msra.mxu0 0
    %457 = vmatprep.subr.bf16.mxu0 0
    %458 = vmatpush1.bf16.msra.mxu0 0
    %459 = vmatprep.mubr.bf16.mxu0 0
    %460 = vmatmul.mubr.bf16.gmra.mrb[0].mxu0 %v257
    %v461 = vpop.f32.mrb[0].mxu0
    %v462 = vadd.f32 0.0, %v461
    %v463 = vpop.f32.mrb[0].mxu0
    %v464 = vpop.f32.mrb[0].mxu0
    %v465 = vpop.f32.mrb[0].mxu0
    %466 = vdwg.mxu0
    %v467 = vadd.f32 %v362, %v462
    %s468 = scalar_lea.vmem [#allocation7], 16
    %v469 = vld [vmem:[%s468] sm:$0xf]
    %v470 = vld [vmem:[%s468 + $0x4] sm:$0xf]
    %v471 = vld [vmem:[%s468 + $0x8] sm:$0xf]
    %v472 = vld [vmem:[%s468 + $0xc] sm:$0xf]
    %s473 = scalar_lea.vmem %s3, 1
    %v474 = vld [vmem:[%s473] sm:$0x1]
    %v476 = vlaneseq
    %v477 = vshrl.u32 %v476, 7
    %v478 = vsub.s32 0, %v477
    %v479 = vrot.slane %v474, %v478
    %v485 = vunpack.c.l.b16 %v469
    %v486 = vunpack.c.l.b16 %v470
    %v487 = vunpack.c.l.b16 %v471
    %v488 = vunpack.c.l.b16 %v472
    %v489 = vpack.c.b16 %v486, %v485
    %v490 = vpack.c.b16 %v488, %v487
    %493 = vmatprep.subr.bf16.mxu0 0
    %494 = vmatpush1.bf16.msra.mxu0 %v489
    %495 = vmatprep.subr.bf16.mxu0 0
    %496 = vmatpush1.bf16.msra.mxu0 %v490
    %497 = vmatprep.subr.bf16.mxu0 0
    %498 = vmatpush1.bf16.msra.mxu0 0
    %499 = vmatprep.subr.bf16.mxu0 0
    %500 = vmatpush1.bf16.msra.mxu0 0
    %501 = vmatprep.subr.bf16.mxu0 0
    %502 = vmatpush1.bf16.msra.mxu0 0
    %503 = vmatprep.subr.bf16.mxu0 0
    %504 = vmatpush1.bf16.msra.mxu0 0
    %505 = vmatprep.subr.bf16.mxu0 0
    %506 = vmatpush1.bf16.msra.mxu0 0
    %507 = vmatprep.subr.bf16.mxu0 0
    %508 = vmatpush1.bf16.msra.mxu0 0
    %509 = vmatprep.subr.bf16.mxu0 0
    %510 = vmatpush1.bf16.msra.mxu0 0
    %511 = vmatprep.subr.bf16.mxu0 0
    %512 = vmatpush1.bf16.msra.mxu0 0
    %513 = vmatprep.subr.bf16.mxu0 0
    %514 = vmatpush1.bf16.msra.mxu0 0
    %515 = vmatprep.subr.bf16.mxu0 0
    %516 = vmatpush1.bf16.msra.mxu0 0
    %517 = vmatprep.subr.bf16.mxu0 0
    %518 = vmatpush1.bf16.msra.mxu0 0
    %519 = vmatprep.subr.bf16.mxu0 0
    %520 = vmatpush1.bf16.msra.mxu0 0
    %521 = vmatprep.subr.bf16.mxu0 0
    %522 = vmatpush1.bf16.msra.mxu0 0
    %523 = vmatprep.subr.bf16.mxu0 0
    %524 = vmatpush1.bf16.msra.mxu0 0
    %525 = vmatprep.mubr.bf16.mxu0 0
    %526 = vmatmul.mubr.bf16.gmra.mrb[0].mxu0 %v146
    %v527 = vpop.f32.mrb[0].mxu0
    %v528 = vadd.f32 %v479, %v527
    %v529 = vpop.f32.mrb[0].mxu0
    %v530 = vpop.f32.mrb[0].mxu0
    %v531 = vpop.f32.mrb[0].mxu0
    %532 = vdwg.mxu0
    %s533 = scalar_lea.vmem [#allocation8], 16
    %v534 = vld [vmem:[%s533] sm:$0xf]
    %v535 = vld [vmem:[%s533 + $0x4] sm:$0xf]
    %v536 = vld [vmem:[%s533 + $0x8] sm:$0xf]
    %v537 = vld [vmem:[%s533 + $0xc] sm:$0xf]
    %s538 = scalar_lea.vmem %s5, 1
    %v539 = vld [vmem:[%s538] sm:$0x1]
    %v541 = vlaneseq
    %v542 = vshrl.u32 %v541, 7
    %v543 = vsub.s32 0, %v542
    %v544 = vrot.slane %v539, %v543
    %v550 = vunpack.c.l.b16 %v534
    %v551 = vunpack.c.l.b16 %v535
    %v552 = vunpack.c.l.b16 %v536
    %v553 = vunpack.c.l.b16 %v537
    %v554 = vpack.c.b16 %v551, %v550
    %v555 = vpack.c.b16 %v553, %v552
    %558 = vmatprep.subr.bf16.mxu0 0
    %559 = vmatpush1.bf16.msra.mxu0 %v554
    %560 = vmatprep.subr.bf16.mxu0 0
    %561 = vmatpush1.bf16.msra.mxu0 %v555
    %562 = vmatprep.subr.bf16.mxu0 0
    %563 = vmatpush1.bf16.msra.mxu0 0
    %564 = vmatprep.subr.bf16.mxu0 0
    %565 = vmatpush1.bf16.msra.mxu0 0
    %566 = vmatprep.subr.bf16.mxu0 0
    %567 = vmatpush1.bf16.msra.mxu0 0
    %568 = vmatprep.subr.bf16.mxu0 0
    %569 = vmatpush1.bf16.msra.mxu0 0
    %570 = vmatprep.subr.bf16.mxu0 0
    %571 = vmatpush1.bf16.msra.mxu0 0
    %572 = vmatprep.subr.bf16.mxu0 0
    %573 = vmatpush1.bf16.msra.mxu0 0
    %574 = vmatprep.subr.bf16.mxu0 0
    %575 = vmatpush1.bf16.msra.mxu0 0
    %576 = vmatprep.subr.bf16.mxu0 0
    %577 = vmatpush1.bf16.msra.mxu0 0
    %578 = vmatprep.subr.bf16.mxu0 0
    %579 = vmatpush1.bf16.msra.mxu0 0
    %580 = vmatprep.subr.bf16.mxu0 0
    %581 = vmatpush1.bf16.msra.mxu0 0
    %582 = vmatprep.subr.bf16.mxu0 0
    %583 = vmatpush1.bf16.msra.mxu0 0
    %584 = vmatprep.subr.bf16.mxu0 0
    %585 = vmatpush1.bf16.msra.mxu0 0
    %586 = vmatprep.subr.bf16.mxu0 0
    %587 = vmatpush1.bf16.msra.mxu0 0
    %588 = vmatprep.subr.bf16.mxu0 0
    %589 = vmatpush1.bf16.msra.mxu0 0
    %590 = vmatprep.mubr.bf16.mxu0 0
    %591 = vmatmul.mubr.bf16.gmra.mrb[0].mxu0 %v212
    %v592 = vpop.f32.mrb[0].mxu0
    %v593 = vadd.f32 %v544, %v592
    %v594 = vpop.f32.mrb[0].mxu0
    %v595 = vpop.f32.mrb[0].mxu0
    %v596 = vpop.f32.mrb[0].mxu0
    %597 = vdwg.mxu0
    %v598 = vmax.f32 %v528, 0.0
    %v599 = vpack.c.bf16 %v598, %v598
    %v600 = vmax.f32 %v593, 0.0
    %v601 = vpack.c.bf16 %v600, %v600
    %s602 = scalar_lea.vmem [#allocation10], 64
    %v603 = vld [vmem:[%s602] sm:$0xf]
    %v604 = vld [vmem:[%s602 + $0x4] sm:$0xf]
    %v605 = vld [vmem:[%s602 + $0x8] sm:$0xf]
    %v606 = vld [vmem:[%s602 + $0xc] sm:$0xf]
    %v607 = vld [vmem:[%s602 + $0x10] sm:$0xf]
    %v608 = vld [vmem:[%s602 + $0x14] sm:$0xf]
    %v609 = vld [vmem:[%s602 + $0x18] sm:$0xf]
    %v610 = vld [vmem:[%s602 + $0x1c] sm:$0xf]
    %v611 = vld [vmem:[%s602 + $0x20] sm:$0xf]
    %v612 = vld [vmem:[%s602 + $0x24] sm:$0xf]
    %v613 = vld [vmem:[%s602 + $0x28] sm:$0xf]
    %v614 = vld [vmem:[%s602 + $0x2c] sm:$0xf]
    %v615 = vld [vmem:[%s602 + $0x30] sm:$0xf]
    %v616 = vld [vmem:[%s602 + $0x34] sm:$0xf]
    %v617 = vld [vmem:[%s602 + $0x38] sm:$0xf]
    %v618 = vld [vmem:[%s602 + $0x3c] sm:$0xf]
    %v635 = vunpack.c.l.b16 %v603
    %v636 = vunpack.c.l.b16 %v604
    %v637 = vunpack.c.l.b16 %v605
    %v638 = vunpack.c.l.b16 %v606
    %v639 = vunpack.c.l.b16 %v607
    %v640 = vunpack.c.l.b16 %v608
    %v641 = vunpack.c.l.b16 %v609
    %v642 = vunpack.c.l.b16 %v610
    %v643 = vunpack.c.l.b16 %v611
    %v644 = vunpack.c.l.b16 %v612
    %v645 = vunpack.c.l.b16 %v613
    %v646 = vunpack.c.l.b16 %v614
    %v647 = vunpack.c.l.b16 %v615
    %v648 = vunpack.c.l.b16 %v616
    %v649 = vunpack.c.l.b16 %v617
    %v650 = vunpack.c.l.b16 %v618
    %v651 = vpack.c.b16 %v636, %v635
    %v652 = vpack.c.b16 %v638, %v637
    %v653 = vpack.c.b16 %v640, %v639
    %v654 = vpack.c.b16 %v642, %v641
    %v655 = vpack.c.b16 %v644, %v643
    %v656 = vpack.c.b16 %v646, %v645
    %v657 = vpack.c.b16 %v648, %v647
    %v658 = vpack.c.b16 %v650, %v649
    %667 = vmatprep.subr.bf16.mxu0 0
    %668 = vmatpush1.bf16.msra.mxu0 %v651
    %669 = vmatprep.subr.bf16.mxu0 0
    %670 = vmatpush1.bf16.msra.mxu0 %v652
    %671 = vmatprep.subr.bf16.mxu0 0
    %672 = vmatpush1.bf16.msra.mxu0 %v653
    %673 = vmatprep.subr.bf16.mxu0 0
    %674 = vmatpush1.bf16.msra.mxu0 %v654
    %675 = vmatprep.subr.bf16.mxu0 0
    %676 = vmatpush1.bf16.msra.mxu0 %v655
    %677 = vmatprep.subr.bf16.mxu0 0
    %678 = vmatpush1.bf16.msra.mxu0 %v656
    %679 = vmatprep.subr.bf16.mxu0 0
    %680 = vmatpush1.bf16.msra.mxu0 %v657
    %681 = vmatprep.subr.bf16.mxu0 0
    %682 = vmatpush1.bf16.msra.mxu0 %v658
    %683 = vmatprep.subr.bf16.mxu0 0
    %684 = vmatpush1.bf16.msra.mxu0 0
    %685 = vmatprep.subr.bf16.mxu0 0
    %686 = vmatpush1.bf16.msra.mxu0 0
    %687 = vmatprep.subr.bf16.mxu0 0
    %688 = vmatpush1.bf16.msra.mxu0 0
    %689 = vmatprep.subr.bf16.mxu0 0
    %690 = vmatpush1.bf16.msra.mxu0 0
    %691 = vmatprep.subr.bf16.mxu0 0
    %692 = vmatpush1.bf16.msra.mxu0 0
    %693 = vmatprep.subr.bf16.mxu0 0
    %694 = vmatpush1.bf16.msra.mxu0 0
    %695 = vmatprep.subr.bf16.mxu0 0
    %696 = vmatpush1.bf16.msra.mxu0 0
    %697 = vmatprep.subr.bf16.mxu0 0
    %698 = vmatpush1.bf16.msra.mxu0 0
    %699 = vmatprep.mubr.bf16.mxu0 0
    %700 = vmatmul.mubr.bf16.gmra.mrb[0].mxu0 %v599
    %v701 = vpop.f32.mrb[0].mxu0
    %v702 = vadd.f32 0.0, %v701
    %v703 = vpop.f32.mrb[0].mxu0
    %v704 = vpop.f32.mrb[0].mxu0
    %v705 = vpop.f32.mrb[0].mxu0
    %706 = vdwg.mxu0
    %v707 = vadd.f32 %v467, %v702
    %s708 = scalar_lea.vmem [#allocation11], 64
    %v709 = vld [vmem:[%s708] sm:$0xf]
    %v710 = vld [vmem:[%s708 + $0x4] sm:$0xf]
    %v711 = vld [vmem:[%s708 + $0x8] sm:$0xf]
    %v712 = vld [vmem:[%s708 + $0xc] sm:$0xf]
    %v713 = vld [vmem:[%s708 + $0x10] sm:$0xf]
    %v714 = vld [vmem:[%s708 + $0x14] sm:$0xf]
    %v715 = vld [vmem:[%s708 + $0x18] sm:$0xf]
    %v716 = vld [vmem:[%s708 + $0x1c] sm:$0xf]
    %v717 = vld [vmem:[%s708 + $0x20] sm:$0xf]
    %v718 = vld [vmem:[%s708 + $0x24] sm:$0xf]
    %v719 = vld [vmem:[%s708 + $0x28] sm:$0xf]
    %v720 = vld [vmem:[%s708 + $0x2c] sm:$0xf]
    %v721 = vld [vmem:[%s708 + $0x30] sm:$0xf]
    %v722 = vld [vmem:[%s708 + $0x34] sm:$0xf]
    %v723 = vld [vmem:[%s708 + $0x38] sm:$0xf]
    %v724 = vld [vmem:[%s708 + $0x3c] sm:$0xf]
    %v741 = vunpack.c.l.b16 %v709
    %v742 = vunpack.c.l.b16 %v710
    %v743 = vunpack.c.l.b16 %v711
    %v744 = vunpack.c.l.b16 %v712
    %v745 = vunpack.c.l.b16 %v713
    %v746 = vunpack.c.l.b16 %v714
    %v747 = vunpack.c.l.b16 %v715
    %v748 = vunpack.c.l.b16 %v716
    %v749 = vunpack.c.l.b16 %v717
    %v750 = vunpack.c.l.b16 %v718
    %v751 = vunpack.c.l.b16 %v719
    %v752 = vunpack.c.l.b16 %v720
    %v753 = vunpack.c.l.b16 %v721
    %v754 = vunpack.c.l.b16 %v722
    %v755 = vunpack.c.l.b16 %v723
    %v756 = vunpack.c.l.b16 %v724
    %v757 = vpack.c.b16 %v742, %v741
    %v758 = vpack.c.b16 %v744, %v743
    %v759 = vpack.c.b16 %v746, %v745
    %v760 = vpack.c.b16 %v748, %v747
    %v761 = vpack.c.b16 %v750, %v749
    %v762 = vpack.c.b16 %v752, %v751
    %v763 = vpack.c.b16 %v754, %v753
    %v764 = vpack.c.b16 %v756, %v755
    %773 = vmatprep.subr.bf16.mxu0 0
    %774 = vmatpush1.bf16.msra.mxu0 %v757
    %775 = vmatprep.subr.bf16.mxu0 0
    %776 = vmatpush1.bf16.msra.mxu0 %v758
    %777 = vmatprep.subr.bf16.mxu0 0
    %778 = vmatpush1.bf16.msra.mxu0 %v759
    %779 = vmatprep.subr.bf16.mxu0 0
    %780 = vmatpush1.bf16.msra.mxu0 %v760
    %781 = vmatprep.subr.bf16.mxu0 0
    %782 = vmatpush1.bf16.msra.mxu0 %v761
    %783 = vmatprep.subr.bf16.mxu0 0
    %784 = vmatpush1.bf16.msra.mxu0 %v762
    %785 = vmatprep.subr.bf16.mxu0 0
    %786 = vmatpush1.bf16.msra.mxu0 %v763
    %787 = vmatprep.subr.bf16.mxu0 0
    %788 = vmatpush1.bf16.msra.mxu0 %v764
    %789 = vmatprep.subr.bf16.mxu0 0
    %790 = vmatpush1.bf16.msra.mxu0 0
    %791 = vmatprep.subr.bf16.mxu0 0
    %792 = vmatpush1.bf16.msra.mxu0 0
    %793 = vmatprep.subr.bf16.mxu0 0
    %794 = vmatpush1.bf16.msra.mxu0 0
    %795 = vmatprep.subr.bf16.mxu0 0
    %796 = vmatpush1.bf16.msra.mxu0 0
    %797 = vmatprep.subr.bf16.mxu0 0
    %798 = vmatpush1.bf16.msra.mxu0 0
    %799 = vmatprep.subr.bf16.mxu0 0
    %800 = vmatpush1.bf16.msra.mxu0 0
    %801 = vmatprep.subr.bf16.mxu0 0
    %802 = vmatpush1.bf16.msra.mxu0 0
    %803 = vmatprep.subr.bf16.mxu0 0
    %804 = vmatpush1.bf16.msra.mxu0 0
    %805 = vmatprep.mubr.bf16.mxu0 0
    %806 = vmatmul.mubr.bf16.gmra.mrb[0].mxu0 %v601
    %v807 = vpop.f32.mrb[0].mxu0
    %v808 = vadd.f32 0.0, %v807
    %v809 = vpop.f32.mrb[0].mxu0
    %v810 = vpop.f32.mrb[0].mxu0
    %v811 = vpop.f32.mrb[0].mxu0
    %812 = vdwg.mxu0
    %v813 = vadd.f32 %v707, %v808
    %s814 = scalar_lea.vmem [#allocation7], 32
    %v815 = vld [vmem:[%s814] sm:$0xf]
    %v816 = vld [vmem:[%s814 + $0x4] sm:$0xf]
    %v817 = vld [vmem:[%s814 + $0x8] sm:$0xf]
    %v818 = vld [vmem:[%s814 + $0xc] sm:$0xf]
    %s819 = scalar_lea.vmem %s3, 2
    %v820 = vld [vmem:[%s819] sm:$0x1]
    %v822 = vlaneseq
    %v823 = vshrl.u32 %v822, 7
    %v824 = vsub.s32 0, %v823
    %v825 = vrot.slane %v820, %v824
    %v831 = vunpack.c.l.b16 %v815
    %v832 = vunpack.c.l.b16 %v816
    %v833 = vunpack.c.l.b16 %v817
    %v834 = vunpack.c.l.b16 %v818
    %v835 = vpack.c.b16 %v832, %v831
    %v836 = vpack.c.b16 %v834, %v833
    %839 = vmatprep.subr.bf16.mxu0 0
    %840 = vmatpush1.bf16.msra.mxu0 %v835
    %841 = vmatprep.subr.bf16.mxu0 0
    %842 = vmatpush1.bf16.msra.mxu0 %v836
    %843 = vmatprep.subr.bf16.mxu0 0
    %844 = vmatpush1.bf16.msra.mxu0 0
    %845 = vmatprep.subr.bf16.mxu0 0
    %846 = vmatpush1.bf16.msra.mxu0 0
    %847 = vmatprep.subr.bf16.mxu0 0
    %848 = vmatpush1.bf16.msra.mxu0 0
    %849 = vmatprep.subr.bf16.mxu0 0
    %850 = vmatpush1.bf16.msra.mxu0 0
    %851 = vmatprep.subr.bf16.mxu0 0
    %852 = vmatpush1.bf16.msra.mxu0 0
    %853 = vmatprep.subr.bf16.mxu0 0
    %854 = vmatpush1.bf16.msra.mxu0 0
    %855 = vmatprep.subr.bf16.mxu0 0
    %856 = vmatpush1.bf16.msra.mxu0 0
    %857 = vmatprep.subr.bf16.mxu0 0
    %858 = vmatpush1.bf16.msra.mxu0 0
    %859 = vmatprep.subr.bf16.mxu0 0
    %860 = vmatpush1.bf16.msra.mxu0 0
    %861 = vmatprep.subr.bf16.mxu0 0
    %862 = vmatpush1.bf16.msra.mxu0 0
    %863 = vmatprep.subr.bf16.mxu0 0
    %864 = vmatpush1.bf16.msra.mxu0 0
    %865 = vmatprep.subr.bf16.mxu0 0
    %866 = vmatpush1.bf16.msra.mxu0 0
    %867 = vmatprep.subr.bf16.mxu0 0
    %868 = vmatpush1.bf16.msra.mxu0 0
    %869 = vmatprep.subr.bf16.mxu0 0
    %870 = vmatpush1.bf16.msra.mxu0 0
    %871 = vmatprep.mubr.bf16.mxu0 0
    %872 = vmatmul.mubr.bf16.gmra.mrb[0].mxu0 %v146
    %v873 = vpop.f32.mrb[0].mxu0
    %v874 = vadd.f32 %v825, %v873
    %v875 = vpop.f32.mrb[0].mxu0
    %v876 = vpop.f32.mrb[0].mxu0
    %v877 = vpop.f32.mrb[0].mxu0
    %878 = vdwg.mxu0
    %s879 = scalar_lea.vmem [#allocation8], 32
    %v880 = vld [vmem:[%s879] sm:$0xf]
    %v881 = vld [vmem:[%s879 + $0x4] sm:$0xf]
    %v882 = vld [vmem:[%s879 + $0x8] sm:$0xf]
    %v883 = vld [vmem:[%s879 + $0xc] sm:$0xf]
    %s884 = scalar_lea.vmem %s5, 2
    %v885 = vld [vmem:[%s884] sm:$0x1]
    %v887 = vlaneseq
    %v888 = vshrl.u32 %v887, 7
    %v889 = vsub.s32 0, %v888
    %v890 = vrot.slane %v885, %v889
    %v896 = vunpack.c.l.b16 %v880
    %v897 = vunpack.c.l.b16 %v881
    %v898 = vunpack.c.l.b16 %v882
    %v899 = vunpack.c.l.b16 %v883
    %v900 = vpack.c.b16 %v897, %v896
    %v901 = vpack.c.b16 %v899, %v898
    %904 = vmatprep.subr.bf16.mxu0 0
    %905 = vmatpush1.bf16.msra.mxu0 %v900
    %906 = vmatprep.subr.bf16.mxu0 0
    %907 = vmatpush1.bf16.msra.mxu0 %v901
    %908 = vmatprep.subr.bf16.mxu0 0
    %909 = vmatpush1.bf16.msra.mxu0 0
    %910 = vmatprep.subr.bf16.mxu0 0
    %911 = vmatpush1.bf16.msra.mxu0 0
    %912 = vmatprep.subr.bf16.mxu0 0
    %913 = vmatpush1.bf16.msra.mxu0 0
    %914 = vmatprep.subr.bf16.mxu0 0
    %915 = vmatpush1.bf16.msra.mxu0 0
    %916 = vmatprep.subr.bf16.mxu0 0
    %917 = vmatpush1.bf16.msra.mxu0 0
    %918 = vmatprep.subr.bf16.mxu0 0
    %919 = vmatpush1.bf16.msra.mxu0 0
    %920 = vmatprep.subr.bf16.mxu0 0
    %921 = vmatpush1.bf16.msra.mxu0 0
    %922 = vmatprep.subr.bf16.mxu0 0
    %923 = vmatpush1.bf16.msra.mxu0 0
    %924 = vmatprep.subr.bf16.mxu0 0
    %925 = vmatpush1.bf16.msra.mxu0 0
    %926 = vmatprep.subr.bf16.mxu0 0
    %927 = vmatpush1.bf16.msra.mxu0 0
    %928 = vmatprep.subr.bf16.mxu0 0
    %929 = vmatpush1.bf16.msra.mxu0 0
    %930 = vmatprep.subr.bf16.mxu0 0
    %931 = vmatpush1.bf16.msra.mxu0 0
    %932 = vmatprep.subr.bf16.mxu0 0
    %933 = vmatpush1.bf16.msra.mxu0 0
    %934 = vmatprep.subr.bf16.mxu0 0
    %935 = vmatpush1.bf16.msra.mxu0 0
    %936 = vmatprep.mubr.bf16.mxu0 0
    %937 = vmatmul.mubr.bf16.gmra.mrb[0].mxu0 %v212
    %v938 = vpop.f32.mrb[0].mxu0
    %v939 = vadd.f32 %v890, %v938
    %v940 = vpop.f32.mrb[0].mxu0
    %v941 = vpop.f32.mrb[0].mxu0
    %v942 = vpop.f32.mrb[0].mxu0
    %943 = vdwg.mxu0
    %v944 = vmax.f32 %v874, 0.0
    %v945 = vpack.c.bf16 %v944, %v944
    %v946 = vmax.f32 %v939, 0.0
    %v947 = vpack.c.bf16 %v946, %v946
    %s948 = scalar_lea.vmem [#allocation10], 128
    %v949 = vld [vmem:[%s948] sm:$0xf]
    %v950 = vld [vmem:[%s948 + $0x4] sm:$0xf]
    %v951 = vld [vmem:[%s948 + $0x8] sm:$0xf]
    %v952 = vld [vmem:[%s948 + $0xc] sm:$0xf]
    %v953 = vld [vmem:[%s948 + $0x10] sm:$0xf]
    %v954 = vld [vmem:[%s948 + $0x14] sm:$0xf]
    %v955 = vld [vmem:[%s948 + $0x18] sm:$0xf]
    %v956 = vld [vmem:[%s948 + $0x1c] sm:$0xf]
    %v957 = vld [vmem:[%s948 + $0x20] sm:$0xf]
    %v958 = vld [vmem:[%s948 + $0x24] sm:$0xf]
    %v959 = vld [vmem:[%s948 + $0x28] sm:$0xf]
    %v960 = vld [vmem:[%s948 + $0x2c] sm:$0xf]
    %v961 = vld [vmem:[%s948 + $0x30] sm:$0xf]
    %v962 = vld [vmem:[%s948 + $0x34] sm:$0xf]
    %v963 = vld [vmem:[%s948 + $0x38] sm:$0xf]
    %v964 = vld [vmem:[%s948 + $0x3c] sm:$0xf]
    %v981 = vunpack.c.l.b16 %v949
    %v982 = vunpack.c.l.b16 %v950
    %v983 = vunpack.c.l.b16 %v951
    %v984 = vunpack.c.l.b16 %v952
    %v985 = vunpack.c.l.b16 %v953
    %v986 = vunpack.c.l.b16 %v954
    %v987 = vunpack.c.l.b16 %v955
    %v988 = vunpack.c.l.b16 %v956
    %v989 = vunpack.c.l.b16 %v957
    %v990 = vunpack.c.l.b16 %v958
    %v991 = vunpack.c.l.b16 %v959
    %v992 = vunpack.c.l.b16 %v960
    %v993 = vunpack.c.l.b16 %v961
    %v994 = vunpack.c.l.b16 %v962
    %v995 = vunpack.c.l.b16 %v963
    %v996 = vunpack.c.l.b16 %v964
    %v997 = vpack.c.b16 %v982, %v981
    %v998 = vpack.c.b16 %v984, %v983
    %v999 = vpack.c.b16 %v986, %v985
    %v1000 = vpack.c.b16 %v988, %v987
    %v1001 = vpack.c.b16 %v990, %v989
    %v1002 = vpack.c.b16 %v992, %v991
    %v1003 = vpack.c.b16 %v994, %v993
    %v1004 = vpack.c.b16 %v996, %v995
    %1013 = vmatprep.subr.bf16.mxu0 0
    %1014 = vmatpush1.bf16.msra.mxu0 %v997
    %1015 = vmatprep.subr.bf16.mxu0 0
    %1016 = vmatpush1.bf16.msra.mxu0 %v998
    %1017 = vmatprep.subr.bf16.mxu0 0
    %1018 = vmatpush1.bf16.msra.mxu0 %v999
    %1019 = vmatprep.subr.bf16.mxu0 0
    %1020 = vmatpush1.bf16.msra.mxu0 %v1000
    %1021 = vmatprep.subr.bf16.mxu0 0
    %1022 = vmatpush1.bf16.msra.mxu0 %v1001
    %1023 = vmatprep.subr.bf16.mxu0 0
    %1024 = vmatpush1.bf16.msra.mxu0 %v1002
    %1025 = vmatprep.subr.bf16.mxu0 0
    %1026 = vmatpush1.bf16.msra.mxu0 %v1003
    %1027 = vmatprep.subr.bf16.mxu0 0
    %1028 = vmatpush1.bf16.msra.mxu0 %v1004
    %1029 = vmatprep.subr.bf16.mxu0 0
    %1030 = vmatpush1.bf16.msra.mxu0 0
    %1031 = vmatprep.subr.bf16.mxu0 0
    %1032 = vmatpush1.bf16.msra.mxu0 0
    %1033 = vmatprep.subr.bf16.mxu0 0
    %1034 = vmatpush1.bf16.msra.mxu0 0
    %1035 = vmatprep.subr.bf16.mxu0 0
    %1036 = vmatpush1.bf16.msra.mxu0 0
    %1037 = vmatprep.subr.bf16.mxu0 0
    %1038 = vmatpush1.bf16.msra.mxu0 0
    %1039 = vmatprep.subr.bf16.mxu0 0
    %1040 = vmatpush1.bf16.msra.mxu0 0
    %1041 = vmatprep.subr.bf16.mxu0 0
    %1042 = vmatpush1.bf16.msra.mxu0 0
    %1043 = vmatprep.subr.bf16.mxu0 0
    %1044 = vmatpush1.bf16.msra.mxu0 0
    %1045 = vmatprep.mubr.bf16.mxu0 0
    %1046 = vmatmul.mubr.bf16.gmra.mrb[0].mxu0 %v945
    %v1047 = vpop.f32.mrb[0].mxu0
    %v1048 = vadd.f32 0.0, %v1047
    %v1049 = vpop.f32.mrb[0].mxu0
    %v1050 = vpop.f32.mrb[0].mxu0
    %v1051 = vpop.f32.mrb[0].mxu0
    %1052 = vdwg.mxu0
    %v1053 = vadd.f32 %v813, %v1048
    %s1054 = scalar_lea.vmem [#allocation11], 128
    %v1055 = vld [vmem:[%s1054] sm:$0xf]
    %v1056 = vld [vmem:[%s1054 + $0x4] sm:$0xf]
    %v1057 = vld [vmem:[%s1054 + $0x8] sm:$0xf]
    %v1058 = vld [vmem:[%s1054 + $0xc] sm:$0xf]
    %v1059 = vld [vmem:[%s1054 + $0x10] sm:$0xf]
    %v1060 = vld [vmem:[%s1054 + $0x14] sm:$0xf]
    %v1061 = vld [vmem:[%s1054 + $0x18] sm:$0xf]
    %v1062 = vld [vmem:[%s1054 + $0x1c] sm:$0xf]
    %v1063 = vld [vmem:[%s1054 + $0x20] sm:$0xf]
    %v1064 = vld [vmem:[%s1054 + $0x24] sm:$0xf]
    %v1065 = vld [vmem:[%s1054 + $0x28] sm:$0xf]
    %v1066 = vld [vmem:[%s1054 + $0x2c] sm:$0xf]
    %v1067 = vld [vmem:[%s1054 + $0x30] sm:$0xf]
    %v1068 = vld [vmem:[%s1054 + $0x34] sm:$0xf]
    %v1069 = vld [vmem:[%s1054 + $0x38] sm:$0xf]
    %v1070 = vld [vmem:[%s1054 + $0x3c] sm:$0xf]
    %v1087 = vunpack.c.l.b16 %v1055
    %v1088 = vunpack.c.l.b16 %v1056
    %v1089 = vunpack.c.l.b16 %v1057
    %v1090 = vunpack.c.l.b16 %v1058
    %v1091 = vunpack.c.l.b16 %v1059
    %v1092 = vunpack.c.l.b16 %v1060
    %v1093 = vunpack.c.l.b16 %v1061
    %v1094 = vunpack.c.l.b16 %v1062
    %v1095 = vunpack.c.l.b16 %v1063
    %v1096 = vunpack.c.l.b16 %v1064
    %v1097 = vunpack.c.l.b16 %v1065
    %v1098 = vunpack.c.l.b16 %v1066
    %v1099 = vunpack.c.l.b16 %v1067
    %v1100 = vunpack.c.l.b16 %v1068
    %v1101 = vunpack.c.l.b16 %v1069
    %v1102 = vunpack.c.l.b16 %v1070
    %v1103 = vpack.c.b16 %v1088, %v1087
    %v1104 = vpack.c.b16 %v1090, %v1089
    %v1105 = vpack.c.b16 %v1092, %v1091
    %v1106 = vpack.c.b16 %v1094, %v1093
    %v1107 = vpack.c.b16 %v1096, %v1095
    %v1108 = vpack.c.b16 %v1098, %v1097
    %v1109 = vpack.c.b16 %v1100, %v1099
    %v1110 = vpack.c.b16 %v1102, %v1101
    %1119 = vmatprep.subr.bf16.mxu0 0
    %1120 = vmatpush1.bf16.msra.mxu0 %v1103
    %1121 = vmatprep.subr.bf16.mxu0 0
    %1122 = vmatpush1.bf16.msra.mxu0 %v1104
    %1123 = vmatprep.subr.bf16.mxu0 0
    %1124 = vmatpush1.bf16.msra.mxu0 %v1105
    %1125 = vmatprep.subr.bf16.mxu0 0
    %1126 = vmatpush1.bf16.msra.mxu0 %v1106
    %1127 = vmatprep.subr.bf16.mxu0 0
    %1128 = vmatpush1.bf16.msra.mxu0 %v1107
    %1129 = vmatprep.subr.bf16.mxu0 0
    %1130 = vmatpush1.bf16.msra.mxu0 %v1108
    %1131 = vmatprep.subr.bf16.mxu0 0
    %1132 = vmatpush1.bf16.msra.mxu0 %v1109
    %1133 = vmatprep.subr.bf16.mxu0 0
    %1134 = vmatpush1.bf16.msra.mxu0 %v1110
    %1135 = vmatprep.subr.bf16.mxu0 0
    %1136 = vmatpush1.bf16.msra.mxu0 0
    %1137 = vmatprep.subr.bf16.mxu0 0
    %1138 = vmatpush1.bf16.msra.mxu0 0
    %1139 = vmatprep.subr.bf16.mxu0 0
    %1140 = vmatpush1.bf16.msra.mxu0 0
    %1141 = vmatprep.subr.bf16.mxu0 0
    %1142 = vmatpush1.bf16.msra.mxu0 0
    %1143 = vmatprep.subr.bf16.mxu0 0
    %1144 = vmatpush1.bf16.msra.mxu0 0
    %1145 = vmatprep.subr.bf16.mxu0 0
    %1146 = vmatpush1.bf16.msra.mxu0 0
    %1147 = vmatprep.subr.bf16.mxu0 0
    %1148 = vmatpush1.bf16.msra.mxu0 0
    %1149 = vmatprep.subr.bf16.mxu0 0
    %1150 = vmatpush1.bf16.msra.mxu0 0
    %1151 = vmatprep.mubr.bf16.mxu0 0
    %1152 = vmatmul.mubr.bf16.gmra.mrb[0].mxu0 %v947
    %v1153 = vpop.f32.mrb[0].mxu0
    %v1154 = vadd.f32 0.0, %v1153
    %v1155 = vpop.f32.mrb[0].mxu0
    %v1156 = vpop.f32.mrb[0].mxu0
    %v1157 = vpop.f32.mrb[0].mxu0
    %1158 = vdwg.mxu0
    %v1159 = vadd.f32 %v1053, %v1154
    %s1160 = scalar_lea.vmem [#allocation7], 48
    %v1161 = vld [vmem:[%s1160] sm:$0xf]
    %v1162 = vld [vmem:[%s1160 + $0x4] sm:$0xf]
    %v1163 = vld [vmem:[%s1160 + $0x8] sm:$0xf]
    %v1164 = vld [vmem:[%s1160 + $0xc] sm:$0xf]
    %s1165 = scalar_lea.vmem %s3, 3
    %v1166 = vld [vmem:[%s1165] sm:$0x1]
    %v1168 = vlaneseq
    %v1169 = vshrl.u32 %v1168, 7
    %v1170 = vsub.s32 0, %v1169
    %v1171 = vrot.slane %v1166, %v1170
    %v1177 = vunpack.c.l.b16 %v1161
    %v1178 = vunpack.c.l.b16 %v1162
    %v1179 = vunpack.c.l.b16 %v1163
    %v1180 = vunpack.c.l.b16 %v1164
    %v1181 = vpack.c.b16 %v1178, %v1177
    %v1182 = vpack.c.b16 %v1180, %v1179
    %1185 = vmatprep.subr.bf16.mxu0 0
    %1186 = vmatpush1.bf16.msra.mxu0 %v1181
    %1187 = vmatprep.subr.bf16.mxu0 0
    %1188 = vmatpush1.bf16.msra.mxu0 %v1182
    %1189 = vmatprep.subr.bf16.mxu0 0
    %1190 = vmatpush1.bf16.msra.mxu0 0
    %1191 = vmatprep.subr.bf16.mxu0 0
    %1192 = vmatpush1.bf16.msra.mxu0 0
    %1193 = vmatprep.subr.bf16.mxu0 0
    %1194 = vmatpush1.bf16.msra.mxu0 0
    %1195 = vmatprep.subr.bf16.mxu0 0
    %1196 = vmatpush1.bf16.msra.mxu0 0
    %1197 = vmatprep.subr.bf16.mxu0 0
    %1198 = vmatpush1.bf16.msra.mxu0 0
    %1199 = vmatprep.subr.bf16.mxu0 0
    %1200 = vmatpush1.bf16.msra.mxu0 0
    %1201 = vmatprep.subr.bf16.mxu0 0
    %1202 = vmatpush1.bf16.msra.mxu0 0
    %1203 = vmatprep.subr.bf16.mxu0 0
    %1204 = vmatpush1.bf16.msra.mxu0 0
    %1205 = vmatprep.subr.bf16.mxu0 0
    %1206 = vmatpush1.bf16.msra.mxu0 0
    %1207 = vmatprep.subr.bf16.mxu0 0
    %1208 = vmatpush1.bf16.msra.mxu0 0
    %1209 = vmatprep.subr.bf16.mxu0 0
    %1210 = vmatpush1.bf16.msra.mxu0 0
    %1211 = vmatprep.subr.bf16.mxu0 0
    %1212 = vmatpush1.bf16.msra.mxu0 0
    %1213 = vmatprep.subr.bf16.mxu0 0
    %1214 = vmatpush1.bf16.msra.mxu0 0
    %1215 = vmatprep.subr.bf16.mxu0 0
    %1216 = vmatpush1.bf16.msra.mxu0 0
    %1217 = vmatprep.mubr.bf16.mxu0 0
    %1218 = vmatmul.mubr.bf16.gmra.mrb[0].mxu0 %v146
    %v1219 = vpop.f32.mrb[0].mxu0
    %v1220 = vadd.f32 %v1171, %v1219
    %v1221 = vpop.f32.mrb[0].mxu0
    %v1222 = vpop.f32.mrb[0].mxu0
    %v1223 = vpop.f32.mrb[0].mxu0
    %1224 = vdwg.mxu0
    %s1225 = scalar_lea.vmem [#allocation8], 48
    %v1226 = vld [vmem:[%s1225] sm:$0xf]
    %v1227 = vld [vmem:[%s1225 + $0x4] sm:$0xf]
    %v1228 = vld [vmem:[%s1225 + $0x8] sm:$0xf]
    %v1229 = vld [vmem:[%s1225 + $0xc] sm:$0xf]
    %s1230 = scalar_lea.vmem %s5, 3
    %v1231 = vld [vmem:[%s1230] sm:$0x1]
    %v1233 = vlaneseq
    %v1234 = vshrl.u32 %v1233, 7
    %v1235 = vsub.s32 0, %v1234
    %v1236 = vrot.slane %v1231, %v1235
    %v1242 = vunpack.c.l.b16 %v1226
    %v1243 = vunpack.c.l.b16 %v1227
    %v1244 = vunpack.c.l.b16 %v1228
    %v1245 = vunpack.c.l.b16 %v1229
    %v1246 = vpack.c.b16 %v1243, %v1242
    %v1247 = vpack.c.b16 %v1245, %v1244
    %1250 = vmatprep.subr.bf16.mxu0 0
    %1251 = vmatpush1.bf16.msra.mxu0 %v1246
    %1252 = vmatprep.subr.bf16.mxu0 0
    %1253 = vmatpush1.bf16.msra.mxu0 %v1247
    %1254 = vmatprep.subr.bf16.mxu0 0
    %1255 = vmatpush1.bf16.msra.mxu0 0
    %1256 = vmatprep.subr.bf16.mxu0 0
    %1257 = vmatpush1.bf16.msra.mxu0 0
    %1258 = vmatprep.subr.bf16.mxu0 0
    %1259 = vmatpush1.bf16.msra.mxu0 0
    %1260 = vmatprep.subr.bf16.mxu0 0
    %1261 = vmatpush1.bf16.msra.mxu0 0
    %1262 = vmatprep.subr.bf16.mxu0 0
    %1263 = vmatpush1.bf16.msra.mxu0 0
    %1264 = vmatprep.subr.bf16.mxu0 0
    %1265 = vmatpush1.bf16.msra.mxu0 0
    %1266 = vmatprep.subr.bf16.mxu0 0
    %1267 = vmatpush1.bf16.msra.mxu0 0
    %1268 = vmatprep.subr.bf16.mxu0 0
    %1269 = vmatpush1.bf16.msra.mxu0 0
    %1270 = vmatprep.subr.bf16.mxu0 0
    %1271 = vmatpush1.bf16.msra.mxu0 0
    %1272 = vmatprep.subr.bf16.mxu0 0
    %1273 = vmatpush1.bf16.msra.mxu0 0
    %1274 = vmatprep.subr.bf16.mxu0 0
    %1275 = vmatpush1.bf16.msra.mxu0 0
    %1276 = vmatprep.subr.bf16.mxu0 0
    %1277 = vmatpush1.bf16.msra.mxu0 0
    %1278 = vmatprep.subr.bf16.mxu0 0
    %1279 = vmatpush1.bf16.msra.mxu0 0
    %1280 = vmatprep.subr.bf16.mxu0 0
    %1281 = vmatpush1.bf16.msra.mxu0 0
    %1282 = vmatprep.mubr.bf16.mxu0 0
    %1283 = vmatmul.mubr.bf16.gmra.mrb[0].mxu0 %v212
    %v1284 = vpop.f32.mrb[0].mxu0
    %v1285 = vadd.f32 %v1236, %v1284
    %v1286 = vpop.f32.mrb[0].mxu0
    %v1287 = vpop.f32.mrb[0].mxu0
    %v1288 = vpop.f32.mrb[0].mxu0
    %1289 = vdwg.mxu0
    %v1290 = vmax.f32 %v1220, 0.0
    %v1291 = vpack.c.bf16 %v1290, %v1290
    %v1292 = vmax.f32 %v1285, 0.0
    %v1293 = vpack.c.bf16 %v1292, %v1292
    %s1294 = scalar_lea.vmem [#allocation10], 192
    %v1295 = vld [vmem:[%s1294] sm:$0xf]
    %v1296 = vld [vmem:[%s1294 + $0x4] sm:$0xf]
    %v1297 = vld [vmem:[%s1294 + $0x8] sm:$0xf]
    %v1298 = vld [vmem:[%s1294 + $0xc] sm:$0xf]
    %v1299 = vld [vmem:[%s1294 + $0x10] sm:$0xf]
    %v1300 = vld [vmem:[%s1294 + $0x14] sm:$0xf]
    %v1301 = vld [vmem:[%s1294 + $0x18] sm:$0xf]
    %v1302 = vld [vmem:[%s1294 + $0x1c] sm:$0xf]
    %v1303 = vld [vmem:[%s1294 + $0x20] sm:$0xf]
    %v1304 = vld [vmem:[%s1294 + $0x24] sm:$0xf]
    %v1305 = vld [vmem:[%s1294 + $0x28] sm:$0xf]
    %v1306 = vld [vmem:[%s1294 + $0x2c] sm:$0xf]
    %v1307 = vld [vmem:[%s1294 + $0x30] sm:$0xf]
    %v1308 = vld [vmem:[%s1294 + $0x34] sm:$0xf]
    %v1309 = vld [vmem:[%s1294 + $0x38] sm:$0xf]
    %v1310 = vld [vmem:[%s1294 + $0x3c] sm:$0xf]
    %v1327 = vunpack.c.l.b16 %v1295
    %v1328 = vunpack.c.l.b16 %v1296
    %v1329 = vunpack.c.l.b16 %v1297
    %v1330 = vunpack.c.l.b16 %v1298
    %v1331 = vunpack.c.l.b16 %v1299
    %v1332 = vunpack.c.l.b16 %v1300
    %v1333 = vunpack.c.l.b16 %v1301
    %v1334 = vunpack.c.l.b16 %v1302
    %v1335 = vunpack.c.l.b16 %v1303
    %v1336 = vunpack.c.l.b16 %v1304
    %v1337 = vunpack.c.l.b16 %v1305
    %v1338 = vunpack.c.l.b16 %v1306
    %v1339 = vunpack.c.l.b16 %v1307
    %v1340 = vunpack.c.l.b16 %v1308
    %v1341 = vunpack.c.l.b16 %v1309
    %v1342 = vunpack.c.l.b16 %v1310
    %v1343 = vpack.c.b16 %v1328, %v1327
    %v1344 = vpack.c.b16 %v1330, %v1329
    %v1345 = vpack.c.b16 %v1332, %v1331
    %v1346 = vpack.c.b16 %v1334, %v1333
    %v1347 = vpack.c.b16 %v1336, %v1335
    %v1348 = vpack.c.b16 %v1338, %v1337
    %v1349 = vpack.c.b16 %v1340, %v1339
    %v1350 = vpack.c.b16 %v1342, %v1341
    %1359 = vmatprep.subr.bf16.mxu0 0
    %1360 = vmatpush1.bf16.msra.mxu0 %v1343
    %1361 = vmatprep.subr.bf16.mxu0 0
    %1362 = vmatpush1.bf16.msra.mxu0 %v1344
    %1363 = vmatprep.subr.bf16.mxu0 0
    %1364 = vmatpush1.bf16.msra.mxu0 %v1345
    %1365 = vmatprep.subr.bf16.mxu0 0
    %1366 = vmatpush1.bf16.msra.mxu0 %v1346
    %1367 = vmatprep.subr.bf16.mxu0 0
    %1368 = vmatpush1.bf16.msra.mxu0 %v1347
    %1369 = vmatprep.subr.bf16.mxu0 0
    %1370 = vmatpush1.bf16.msra.mxu0 %v1348
    %1371 = vmatprep.subr.bf16.mxu0 0
    %1372 = vmatpush1.bf16.msra.mxu0 %v1349
    %1373 = vmatprep.subr.bf16.mxu0 0
    %1374 = vmatpush1.bf16.msra.mxu0 %v1350
    %1375 = vmatprep.subr.bf16.mxu0 0
    %1376 = vmatpush1.bf16.msra.mxu0 0
    %1377 = vmatprep.subr.bf16.mxu0 0
    %1378 = vmatpush1.bf16.msra.mxu0 0
    %1379 = vmatprep.subr.bf16.mxu0 0
    %1380 = vmatpush1.bf16.msra.mxu0 0
    %1381 = vmatprep.subr.bf16.mxu0 0
    %1382 = vmatpush1.bf16.msra.mxu0 0
    %1383 = vmatprep.subr.bf16.mxu0 0
    %1384 = vmatpush1.bf16.msra.mxu0 0
    %1385 = vmatprep.subr.bf16.mxu0 0
    %1386 = vmatpush1.bf16.msra.mxu0 0
    %1387 = vmatprep.subr.bf16.mxu0 0
    %1388 = vmatpush1.bf16.msra.mxu0 0
    %1389 = vmatprep.subr.bf16.mxu0 0
    %1390 = vmatpush1.bf16.msra.mxu0 0
    %1391 = vmatprep.mubr.bf16.mxu0 0
    %1392 = vmatmul.mubr.bf16.gmra.mrb[0].mxu0 %v1291
    %v1393 = vpop.f32.mrb[0].mxu0
    %v1394 = vadd.f32 0.0, %v1393
    %v1395 = vpop.f32.mrb[0].mxu0
    %v1396 = vpop.f32.mrb[0].mxu0
    %v1397 = vpop.f32.mrb[0].mxu0
    %1398 = vdwg.mxu0
    %v1399 = vadd.f32 %v1159, %v1394
    %s1400 = scalar_lea.vmem [#allocation11], 192
    %v1401 = vld [vmem:[%s1400] sm:$0xf]
    %v1402 = vld [vmem:[%s1400 + $0x4] sm:$0xf]
    %v1403 = vld [vmem:[%s1400 + $0x8] sm:$0xf]
    %v1404 = vld [vmem:[%s1400 + $0xc] sm:$0xf]
    %v1405 = vld [vmem:[%s1400 + $0x10] sm:$0xf]
    %v1406 = vld [vmem:[%s1400 + $0x14] sm:$0xf]
    %v1407 = vld [vmem:[%s1400 + $0x18] sm:$0xf]
    %v1408 = vld [vmem:[%s1400 + $0x1c] sm:$0xf]
    %v1409 = vld [vmem:[%s1400 + $0x20] sm:$0xf]
    %v1410 = vld [vmem:[%s1400 + $0x24] sm:$0xf]
    %v1411 = vld [vmem:[%s1400 + $0x28] sm:$0xf]
    %v1412 = vld [vmem:[%s1400 + $0x2c] sm:$0xf]
    %v1413 = vld [vmem:[%s1400 + $0x30] sm:$0xf]
    %v1414 = vld [vmem:[%s1400 + $0x34] sm:$0xf]
    %v1415 = vld [vmem:[%s1400 + $0x38] sm:$0xf]
    %v1416 = vld [vmem:[%s1400 + $0x3c] sm:$0xf]
    %v1433 = vunpack.c.l.b16 %v1401
    %v1434 = vunpack.c.l.b16 %v1402
    %v1435 = vunpack.c.l.b16 %v1403
    %v1436 = vunpack.c.l.b16 %v1404
    %v1437 = vunpack.c.l.b16 %v1405
    %v1438 = vunpack.c.l.b16 %v1406
    %v1439 = vunpack.c.l.b16 %v1407
    %v1440 = vunpack.c.l.b16 %v1408
    %v1441 = vunpack.c.l.b16 %v1409
    %v1442 = vunpack.c.l.b16 %v1410
    %v1443 = vunpack.c.l.b16 %v1411
    %v1444 = vunpack.c.l.b16 %v1412
    %v1445 = vunpack.c.l.b16 %v1413
    %v1446 = vunpack.c.l.b16 %v1414
    %v1447 = vunpack.c.l.b16 %v1415
    %v1448 = vunpack.c.l.b16 %v1416
    %v1449 = vpack.c.b16 %v1434, %v1433
    %v1450 = vpack.c.b16 %v1436, %v1435
    %v1451 = vpack.c.b16 %v1438, %v1437
    %v1452 = vpack.c.b16 %v1440, %v1439
    %v1453 = vpack.c.b16 %v1442, %v1441
    %v1454 = vpack.c.b16 %v1444, %v1443
    %v1455 = vpack.c.b16 %v1446, %v1445
    %v1456 = vpack.c.b16 %v1448, %v1447
    %1465 = vmatprep.subr.bf16.mxu0 0
    %1466 = vmatpush1.bf16.msra.mxu0 %v1449
    %1467 = vmatprep.subr.bf16.mxu0 0
    %1468 = vmatpush1.bf16.msra.mxu0 %v1450
    %1469 = vmatprep.subr.bf16.mxu0 0
    %1470 = vmatpush1.bf16.msra.mxu0 %v1451
    %1471 = vmatprep.subr.bf16.mxu0 0
    %1472 = vmatpush1.bf16.msra.mxu0 %v1452
    %1473 = vmatprep.subr.bf16.mxu0 0
    %1474 = vmatpush1.bf16.msra.mxu0 %v1453
    %1475 = vmatprep.subr.bf16.mxu0 0
    %1476 = vmatpush1.bf16.msra.mxu0 %v1454
    %1477 = vmatprep.subr.bf16.mxu0 0
    %1478 = vmatpush1.bf16.msra.mxu0 %v1455
    %1479 = vmatprep.subr.bf16.mxu0 0
    %1480 = vmatpush1.bf16.msra.mxu0 %v1456
    %1481 = vmatprep.subr.bf16.mxu0 0
    %1482 = vmatpush1.bf16.msra.mxu0 0
    %1483 = vmatprep.subr.bf16.mxu0 0
    %1484 = vmatpush1.bf16.msra.mxu0 0
    %1485 = vmatprep.subr.bf16.mxu0 0
    %1486 = vmatpush1.bf16.msra.mxu0 0
    %1487 = vmatprep.subr.bf16.mxu0 0
    %1488 = vmatpush1.bf16.msra.mxu0 0
    %1489 = vmatprep.subr.bf16.mxu0 0
    %1490 = vmatpush1.bf16.msra.mxu0 0
    %1491 = vmatprep.subr.bf16.mxu0 0
    %1492 = vmatpush1.bf16.msra.mxu0 0
    %1493 = vmatprep.subr.bf16.mxu0 0
    %1494 = vmatpush1.bf16.msra.mxu0 0
    %1495 = vmatprep.subr.bf16.mxu0 0
    %1496 = vmatpush1.bf16.msra.mxu0 0
    %1497 = vmatprep.mubr.bf16.mxu0 0
    %1498 = vmatmul.mubr.bf16.gmra.mrb[0].mxu0 %v1293
    %v1499 = vpop.f32.mrb[0].mxu0
    %v1500 = vadd.f32 0.0, %v1499
    %v1501 = vpop.f32.mrb[0].mxu0
    %v1502 = vpop.f32.mrb[0].mxu0
    %v1503 = vpop.f32.mrb[0].mxu0
    %1504 = vdwg.mxu0
    %v1505 = vadd.f32 %v1399, %v1500
    %s1506 = scalar_lea.vmem [#allocation7], 64
    %v1507 = vld [vmem:[%s1506] sm:$0xf]
    %v1508 = vld [vmem:[%s1506 + $0x4] sm:$0xf]
    %v1509 = vld [vmem:[%s1506 + $0x8] sm:$0xf]
    %v1510 = vld [vmem:[%s1506 + $0xc] sm:$0xf]
    %s1511 = scalar_lea.vmem %s3, 4
    %v1512 = vld [vmem:[%s1511] sm:$0x1]
    %v1514 = vlaneseq
    %v1515 = vshrl.u32 %v1514, 7
    %v1516 = vsub.s32 0, %v1515
    %v1517 = vrot.slane %v1512, %v1516
    %v1523 = vunpack.c.l.b16 %v1507
    %v1524 = vunpack.c.l.b16 %v1508
    %v1525 = vunpack.c.l.b16 %v1509
    %v1526 = vunpack.c.l.b16 %v1510
    %v1527 = vpack.c.b16 %v1524, %v1523
    %v1528 = vpack.c.b16 %v1526, %v1525
    %1531 = vmatprep.subr.bf16.mxu0 0
    %1532 = vmatpush1.bf16.msra.mxu0 %v1527
    %1533 = vmatprep.subr.bf16.mxu0 0
    %1534 = vmatpush1.bf16.msra.mxu0 %v1528
    %1535 = vmatprep.subr.bf16.mxu0 0
    %1536 = vmatpush1.bf16.msra.mxu0 0
    %1537 = vmatprep.subr.bf16.mxu0 0
    %1538 = vmatpush1.bf16.msra.mxu0 0
    %1539 = vmatprep.subr.bf16.mxu0 0
    %1540 = vmatpush1.bf16.msra.mxu0 0
    %1541 = vmatprep.subr.bf16.mxu0 0
    %1542 = vmatpush1.bf16.msra.mxu0 0
    %1543 = vmatprep.subr.bf16.mxu0 0
    %1544 = vmatpush1.bf16.msra.mxu0 0
    %1545 = vmatprep.subr.bf16.mxu0 0
    %1546 = vmatpush1.bf16.msra.mxu0 0
    %1547 = vmatprep.subr.bf16.mxu0 0
    %1548 = vmatpush1.bf16.msra.mxu0 0
    %1549 = vmatprep.subr.bf16.mxu0 0
    %1550 = vmatpush1.bf16.msra.mxu0 0
    %1551 = vmatprep.subr.bf16.mxu0 0
    %1552 = vmatpush1.bf16.msra.mxu0 0
    %1553 = vmatprep.subr.bf16.mxu0 0
    %1554 = vmatpush1.bf16.msra.mxu0 0
    %1555 = vmatprep.subr.bf16.mxu0 0
    %1556 = vmatpush1.bf16.msra.mxu0 0
    %1557 = vmatprep.subr.bf16.mxu0 0
    %1558 = vmatpush1.bf16.msra.mxu0 0
    %1559 = vmatprep.subr.bf16.mxu0 0
    %1560 = vmatpush1.bf16.msra.mxu0 0
    %1561 = vmatprep.subr.bf16.mxu0 0
    %1562 = vmatpush1.bf16.msra.mxu0 0
    %1563 = vmatprep.mubr.bf16.mxu0 0
    %1564 = vmatmul.mubr.bf16.gmra.mrb[0].mxu0 %v146
    %v1565 = vpop.f32.mrb[0].mxu0
    %v1566 = vadd.f32 %v1517, %v1565
    %v1567 = vpop.f32.mrb[0].mxu0
    %v1568 = vpop.f32.mrb[0].mxu0
    %v1569 = vpop.f32.mrb[0].mxu0
    %1570 = vdwg.mxu0
    %s1571 = scalar_lea.vmem [#allocation8], 64
    %v1572 = vld [vmem:[%s1571] sm:$0xf]
    %v1573 = vld [vmem:[%s1571 + $0x4] sm:$0xf]
    %v1574 = vld [vmem:[%s1571 + $0x8] sm:$0xf]
    %v1575 = vld [vmem:[%s1571 + $0xc] sm:$0xf]
    %s1576 = scalar_lea.vmem %s5, 4
    %v1577 = vld [vmem:[%s1576] sm:$0x1]
    %v1579 = vlaneseq
    %v1580 = vshrl.u32 %v1579, 7
    %v1581 = vsub.s32 0, %v1580
    %v1582 = vrot.slane %v1577, %v1581
    %v1588 = vunpack.c.l.b16 %v1572
    %v1589 = vunpack.c.l.b16 %v1573
    %v1590 = vunpack.c.l.b16 %v1574
    %v1591 = vunpack.c.l.b16 %v1575
    %v1592 = vpack.c.b16 %v1589, %v1588
    %v1593 = vpack.c.b16 %v1591, %v1590
    %1596 = vmatprep.subr.bf16.mxu0 0
    %1597 = vmatpush1.bf16.msra.mxu0 %v1592
    %1598 = vmatprep.subr.bf16.mxu0 0
    %1599 = vmatpush1.bf16.msra.mxu0 %v1593
    %1600 = vmatprep.subr.bf16.mxu0 0
    %1601 = vmatpush1.bf16.msra.mxu0 0
    %1602 = vmatprep.subr.bf16.mxu0 0
    %1603 = vmatpush1.bf16.msra.mxu0 0
    %1604 = vmatprep.subr.bf16.mxu0 0
    %1605 = vmatpush1.bf16.msra.mxu0 0
    %1606 = vmatprep.subr.bf16.mxu0 0
    %1607 = vmatpush1.bf16.msra.mxu0 0
    %1608 = vmatprep.subr.bf16.mxu0 0
    %1609 = vmatpush1.bf16.msra.mxu0 0
    %1610 = vmatprep.subr.bf16.mxu0 0
    %1611 = vmatpush1.bf16.msra.mxu0 0
    %1612 = vmatprep.subr.bf16.mxu0 0
    %1613 = vmatpush1.bf16.msra.mxu0 0
    %1614 = vmatprep.subr.bf16.mxu0 0
    %1615 = vmatpush1.bf16.msra.mxu0 0
    %1616 = vmatprep.subr.bf16.mxu0 0
    %1617 = vmatpush1.bf16.msra.mxu0 0
    %1618 = vmatprep.subr.bf16.mxu0 0
    %1619 = vmatpush1.bf16.msra.mxu0 0
    %1620 = vmatprep.subr.bf16.mxu0 0
    %1621 = vmatpush1.bf16.msra.mxu0 0
    %1622 = vmatprep.subr.bf16.mxu0 0
    %1623 = vmatpush1.bf16.msra.mxu0 0
    %1624 = vmatprep.subr.bf16.mxu0 0
    %1625 = vmatpush1.bf16.msra.mxu0 0
    %1626 = vmatprep.subr.bf16.mxu0 0
    %1627 = vmatpush1.bf16.msra.mxu0 0
    %1628 = vmatprep.mubr.bf16.mxu0 0
    %1629 = vmatmul.mubr.bf16.gmra.mrb[0].mxu0 %v212
    %v1630 = vpop.f32.mrb[0].mxu0
    %v1631 = vadd.f32 %v1582, %v1630
    %v1632 = vpop.f32.mrb[0].mxu0
    %v1633 = vpop.f32.mrb[0].mxu0
    %v1634 = vpop.f32.mrb[0].mxu0
    %1635 = vdwg.mxu0
    %v1636 = vmax.f32 %v1566, 0.0
    %v1637 = vpack.c.bf16 %v1636, %v1636
    %v1638 = vmax.f32 %v1631, 0.0
    %v1639 = vpack.c.bf16 %v1638, %v1638
    %s1640 = scalar_lea.vmem [#allocation10], 256
    %v1641 = vld [vmem:[%s1640] sm:$0xf]
    %v1642 = vld [vmem:[%s1640 + $0x4] sm:$0xf]
    %v1643 = vld [vmem:[%s1640 + $0x8] sm:$0xf]
    %v1644 = vld [vmem:[%s1640 + $0xc] sm:$0xf]
    %v1645 = vld [vmem:[%s1640 + $0x10] sm:$0xf]
    %v1646 = vld [vmem:[%s1640 + $0x14] sm:$0xf]
    %v1647 = vld [vmem:[%s1640 + $0x18] sm:$0xf]
    %v1648 = vld [vmem:[%s1640 + $0x1c] sm:$0xf]
    %v1649 = vld [vmem:[%s1640 + $0x20] sm:$0xf]
    %v1650 = vld [vmem:[%s1640 + $0x24] sm:$0xf]
    %v1651 = vld [vmem:[%s1640 + $0x28] sm:$0xf]
    %v1652 = vld [vmem:[%s1640 + $0x2c] sm:$0xf]
    %v1653 = vld [vmem:[%s1640 + $0x30] sm:$0xf]
    %v1654 = vld [vmem:[%s1640 + $0x34] sm:$0xf]
    %v1655 = vld [vmem:[%s1640 + $0x38] sm:$0xf]
    %v1656 = vld [vmem:[%s1640 + $0x3c] sm:$0xf]
    %v1673 = vunpack.c.l.b16 %v1641
    %v1674 = vunpack.c.l.b16 %v1642
    %v1675 = vunpack.c.l.b16 %v1643
    %v1676 = vunpack.c.l.b16 %v1644
    %v1677 = vunpack.c.l.b16 %v1645
    %v1678 = vunpack.c.l.b16 %v1646
    %v1679 = vunpack.c.l.b16 %v1647
    %v1680 = vunpack.c.l.b16 %v1648
    %v1681 = vunpack.c.l.b16 %v1649
    %v1682 = vunpack.c.l.b16 %v1650
    %v1683 = vunpack.c.l.b16 %v1651
    %v1684 = vunpack.c.l.b16 %v1652
    %v1685 = vunpack.c.l.b16 %v1653
    %v1686 = vunpack.c.l.b16 %v1654
    %v1687 = vunpack.c.l.b16 %v1655
    %v1688 = vunpack.c.l.b16 %v1656
    %v1689 = vpack.c.b16 %v1674, %v1673
    %v1690 = vpack.c.b16 %v1676, %v1675
    %v1691 = vpack.c.b16 %v1678, %v1677
    %v1692 = vpack.c.b16 %v1680, %v1679
    %v1693 = vpack.c.b16 %v1682, %v1681
    %v1694 = vpack.c.b16 %v1684, %v1683
    %v1695 = vpack.c.b16 %v1686, %v1685
    %v1696 = vpack.c.b16 %v1688, %v1687
    %1705 = vmatprep.subr.bf16.mxu0 0
    %1706 = vmatpush1.bf16.msra.mxu0 %v1689
    %1707 = vmatprep.subr.bf16.mxu0 0
    %1708 = vmatpush1.bf16.msra.mxu0 %v1690
    %1709 = vmatprep.subr.bf16.mxu0 0
    %1710 = vmatpush1.bf16.msra.mxu0 %v1691
    %1711 = vmatprep.subr.bf16.mxu0 0
    %1712 = vmatpush1.bf16.msra.mxu0 %v1692
    %1713 = vmatprep.subr.bf16.mxu0 0
    %1714 = vmatpush1.bf16.msra.mxu0 %v1693
    %1715 = vmatprep.subr.bf16.mxu0 0
    %1716 = vmatpush1.bf16.msra.mxu0 %v1694
    %1717 = vmatprep.subr.bf16.mxu0 0
    %1718 = vmatpush1.bf16.msra.mxu0 %v1695
    %1719 = vmatprep.subr.bf16.mxu0 0
    %1720 = vmatpush1.bf16.msra.mxu0 %v1696
    %1721 = vmatprep.subr.bf16.mxu0 0
    %1722 = vmatpush1.bf16.msra.mxu0 0
    %1723 = vmatprep.subr.bf16.mxu0 0
    %1724 = vmatpush1.bf16.msra.mxu0 0
    %1725 = vmatprep.subr.bf16.mxu0 0
    %1726 = vmatpush1.bf16.msra.mxu0 0
    %1727 = vmatprep.subr.bf16.mxu0 0
    %1728 = vmatpush1.bf16.msra.mxu0 0
    %1729 = vmatprep.subr.bf16.mxu0 0
    %1730 = vmatpush1.bf16.msra.mxu0 0
    %1731 = vmatprep.subr.bf16.mxu0 0
    %1732 = vmatpush1.bf16.msra.mxu0 0
    %1733 = vmatprep.subr.bf16.mxu0 0
    %1734 = vmatpush1.bf16.msra.mxu0 0
    %1735 = vmatprep.subr.bf16.mxu0 0
    %1736 = vmatpush1.bf16.msra.mxu0 0
    %1737 = vmatprep.mubr.bf16.mxu0 0
    %1738 = vmatmul.mubr.bf16.gmra.mrb[0].mxu0 %v1637
    %v1739 = vpop.f32.mrb[0].mxu0
    %v1740 = vadd.f32 0.0, %v1739
    %v1741 = vpop.f32.mrb[0].mxu0
    %v1742 = vpop.f32.mrb[0].mxu0
    %v1743 = vpop.f32.mrb[0].mxu0
    %1744 = vdwg.mxu0
    %v1745 = vadd.f32 %v1505, %v1740
    %s1746 = scalar_lea.vmem [#allocation11], 256
    %v1747 = vld [vmem:[%s1746] sm:$0xf]
    %v1748 = vld [vmem:[%s1746 + $0x4] sm:$0xf]
    %v1749 = vld [vmem:[%s1746 + $0x8] sm:$0xf]
    %v1750 = vld [vmem:[%s1746 + $0xc] sm:$0xf]
    %v1751 = vld [vmem:[%s1746 + $0x10] sm:$0xf]
    %v1752 = vld [vmem:[%s1746 + $0x14] sm:$0xf]
    %v1753 = vld [vmem:[%s1746 + $0x18] sm:$0xf]
    %v1754 = vld [vmem:[%s1746 + $0x1c] sm:$0xf]
    %v1755 = vld [vmem:[%s1746 + $0x20] sm:$0xf]
    %v1756 = vld [vmem:[%s1746 + $0x24] sm:$0xf]
    %v1757 = vld [vmem:[%s1746 + $0x28] sm:$0xf]
    %v1758 = vld [vmem:[%s1746 + $0x2c] sm:$0xf]
    %v1759 = vld [vmem:[%s1746 + $0x30] sm:$0xf]
    %v1760 = vld [vmem:[%s1746 + $0x34] sm:$0xf]
    %v1761 = vld [vmem:[%s1746 + $0x38] sm:$0xf]
    %v1762 = vld [vmem:[%s1746 + $0x3c] sm:$0xf]
    %v1779 = vunpack.c.l.b16 %v1747
    %v1780 = vunpack.c.l.b16 %v1748
    %v1781 = vunpack.c.l.b16 %v1749
    %v1782 = vunpack.c.l.b16 %v1750
    %v1783 = vunpack.c.l.b16 %v1751
    %v1784 = vunpack.c.l.b16 %v1752
    %v1785 = vunpack.c.l.b16 %v1753
    %v1786 = vunpack.c.l.b16 %v1754
    %v1787 = vunpack.c.l.b16 %v1755
    %v1788 = vunpack.c.l.b16 %v1756
    %v1789 = vunpack.c.l.b16 %v1757
    %v1790 = vunpack.c.l.b16 %v1758
    %v1791 = vunpack.c.l.b16 %v1759
    %v1792 = vunpack.c.l.b16 %v1760
    %v1793 = vunpack.c.l.b16 %v1761
    %v1794 = vunpack.c.l.b16 %v1762
    %v1795 = vpack.c.b16 %v1780, %v1779
    %v1796 = vpack.c.b16 %v1782, %v1781
    %v1797 = vpack.c.b16 %v1784, %v1783
    %v1798 = vpack.c.b16 %v1786, %v1785
    %v1799 = vpack.c.b16 %v1788, %v1787
    %v1800 = vpack.c.b16 %v1790, %v1789
    %v1801 = vpack.c.b16 %v1792, %v1791
    %v1802 = vpack.c.b16 %v1794, %v1793
    %1811 = vmatprep.subr.bf16.mxu0 0
    %1812 = vmatpush1.bf16.msra.mxu0 %v1795
    %1813 = vmatprep.subr.bf16.mxu0 0
    %1814 = vmatpush1.bf16.msra.mxu0 %v1796
    %1815 = vmatprep.subr.bf16.mxu0 0
    %1816 = vmatpush1.bf16.msra.mxu0 %v1797
    %1817 = vmatprep.subr.bf16.mxu0 0
    %1818 = vmatpush1.bf16.msra.mxu0 %v1798
    %1819 = vmatprep.subr.bf16.mxu0 0
    %1820 = vmatpush1.bf16.msra.mxu0 %v1799
    %1821 = vmatprep.subr.bf16.mxu0 0
    %1822 = vmatpush1.bf16.msra.mxu0 %v1800
    %1823 = vmatprep.subr.bf16.mxu0 0
    %1824 = vmatpush1.bf16.msra.mxu0 %v1801
    %1825 = vmatprep.subr.bf16.mxu0 0
    %1826 = vmatpush1.bf16.msra.mxu0 %v1802
    %1827 = vmatprep.subr.bf16.mxu0 0
    %1828 = vmatpush1.bf16.msra.mxu0 0
    %1829 = vmatprep.subr.bf16.mxu0 0
    %1830 = vmatpush1.bf16.msra.mxu0 0
    %1831 = vmatprep.subr.bf16.mxu0 0
    %1832 = vmatpush1.bf16.msra.mxu0 0
    %1833 = vmatprep.subr.bf16.mxu0 0
    %1834 = vmatpush1.bf16.msra.mxu0 0
    %1835 = vmatprep.subr.bf16.mxu0 0
    %1836 = vmatpush1.bf16.msra.mxu0 0
    %1837 = vmatprep.subr.bf16.mxu0 0
    %1838 = vmatpush1.bf16.msra.mxu0 0
    %1839 = vmatprep.subr.bf16.mxu0 0
    %1840 = vmatpush1.bf16.msra.mxu0 0
    %1841 = vmatprep.subr.bf16.mxu0 0
    %1842 = vmatpush1.bf16.msra.mxu0 0
    %1843 = vmatprep.mubr.bf16.mxu0 0
    %1844 = vmatmul.mubr.bf16.gmra.mrb[0].mxu0 %v1639
    %v1845 = vpop.f32.mrb[0].mxu0
    %v1846 = vadd.f32 0.0, %v1845
    %v1847 = vpop.f32.mrb[0].mxu0
    %v1848 = vpop.f32.mrb[0].mxu0
    %v1849 = vpop.f32.mrb[0].mxu0
    %1850 = vdwg.mxu0
    %v1851 = vadd.f32 %v1745, %v1846
    %s1852 = scalar_lea.vmem [#allocation7], 80
    %v1853 = vld [vmem:[%s1852] sm:$0xf]
    %v1854 = vld [vmem:[%s1852 + $0x4] sm:$0xf]
    %v1855 = vld [vmem:[%s1852 + $0x8] sm:$0xf]
    %v1856 = vld [vmem:[%s1852 + $0xc] sm:$0xf]
    %s1857 = scalar_lea.vmem %s3, 5
    %v1858 = vld [vmem:[%s1857] sm:$0x1]
    %v1860 = vlaneseq
    %v1861 = vshrl.u32 %v1860, 7
    %v1862 = vsub.s32 0, %v1861
    %v1863 = vrot.slane %v1858, %v1862
    %v1869 = vunpack.c.l.b16 %v1853
    %v1870 = vunpack.c.l.b16 %v1854
    %v1871 = vunpack.c.l.b16 %v1855
    %v1872 = vunpack.c.l.b16 %v1856
    %v1873 = vpack.c.b16 %v1870, %v1869
    %v1874 = vpack.c.b16 %v1872, %v1871
    %1877 = vmatprep.subr.bf16.mxu0 0
    %1878 = vmatpush1.bf16.msra.mxu0 %v1873
    %1879 = vmatprep.subr.bf16.mxu0 0
    %1880 = vmatpush1.bf16.msra.mxu0 %v1874
    %1881 = vmatprep.subr.bf16.mxu0 0
    %1882 = vmatpush1.bf16.msra.mxu0 0
    %1883 = vmatprep.subr.bf16.mxu0 0
    %1884 = vmatpush1.bf16.msra.mxu0 0
    %1885 = vmatprep.subr.bf16.mxu0 0
    %1886 = vmatpush1.bf16.msra.mxu0 0
    %1887 = vmatprep.subr.bf16.mxu0 0
    %1888 = vmatpush1.bf16.msra.mxu0 0
    %1889 = vmatprep.subr.bf16.mxu0 0
    %1890 = vmatpush1.bf16.msra.mxu0 0
    %1891 = vmatprep.subr.bf16.mxu0 0
    %1892 = vmatpush1.bf16.msra.mxu0 0
    %1893 = vmatprep.subr.bf16.mxu0 0
    %1894 = vmatpush1.bf16.msra.mxu0 0
    %1895 = vmatprep.subr.bf16.mxu0 0
    %1896 = vmatpush1.bf16.msra.mxu0 0
    %1897 = vmatprep.subr.bf16.mxu0 0
    %1898 = vmatpush1.bf16.msra.mxu0 0
    %1899 = vmatprep.subr.bf16.mxu0 0
    %1900 = vmatpush1.bf16.msra.mxu0 0
    %1901 = vmatprep.subr.bf16.mxu0 0
    %1902 = vmatpush1.bf16.msra.mxu0 0
    %1903 = vmatprep.subr.bf16.mxu0 0
    %1904 = vmatpush1.bf16.msra.mxu0 0
    %1905 = vmatprep.subr.bf16.mxu0 0
    %1906 = vmatpush1.bf16.msra.mxu0 0
    %1907 = vmatprep.subr.bf16.mxu0 0
    %1908 = vmatpush1.bf16.msra.mxu0 0
    %1909 = vmatprep.mubr.bf16.mxu0 0
    %1910 = vmatmul.mubr.bf16.gmra.mrb[0].mxu0 %v146
    %v1911 = vpop.f32.mrb[0].mxu0
    %v1912 = vadd.f32 %v1863, %v1911
    %v1913 = vpop.f32.mrb[0].mxu0
    %v1914 = vpop.f32.mrb[0].mxu0
    %v1915 = vpop.f32.mrb[0].mxu0
    %1916 = vdwg.mxu0
    %s1917 = scalar_lea.vmem [#allocation8], 80
    %v1918 = vld [vmem:[%s1917] sm:$0xf]
    %v1919 = vld [vmem:[%s1917 + $0x4] sm:$0xf]
    %v1920 = vld [vmem:[%s1917 + $0x8] sm:$0xf]
    %v1921 = vld [vmem:[%s1917 + $0xc] sm:$0xf]
    %s1922 = scalar_lea.vmem %s5, 5
    %v1923 = vld [vmem:[%s1922] sm:$0x1]
    %v1925 = vlaneseq
    %v1926 = vshrl.u32 %v1925, 7
    %v1927 = vsub.s32 0, %v1926
    %v1928 = vrot.slane %v1923, %v1927
    %v1934 = vunpack.c.l.b16 %v1918
    %v1935 = vunpack.c.l.b16 %v1919
    %v1936 = vunpack.c.l.b16 %v1920
    %v1937 = vunpack.c.l.b16 %v1921
    %v1938 = vpack.c.b16 %v1935, %v1934
    %v1939 = vpack.c.b16 %v1937, %v1936
    %1942 = vmatprep.subr.bf16.mxu0 0
    %1943 = vmatpush1.bf16.msra.mxu0 %v1938
    %1944 = vmatprep.subr.bf16.mxu0 0
    %1945 = vmatpush1.bf16.msra.mxu0 %v1939
    %1946 = vmatprep.subr.bf16.mxu0 0
    %1947 = vmatpush1.bf16.msra.mxu0 0
    %1948 = vmatprep.subr.bf16.mxu0 0
    %1949 = vmatpush1.bf16.msra.mxu0 0
    %1950 = vmatprep.subr.bf16.mxu0 0
    %1951 = vmatpush1.bf16.msra.mxu0 0
    %1952 = vmatprep.subr.bf16.mxu0 0
    %1953 = vmatpush1.bf16.msra.mxu0 0
    %1954 = vmatprep.subr.bf16.mxu0 0
    %1955 = vmatpush1.bf16.msra.mxu0 0
    %1956 = vmatprep.subr.bf16.mxu0 0
    %1957 = vmatpush1.bf16.msra.mxu0 0
    %1958 = vmatprep.subr.bf16.mxu0 0
    %1959 = vmatpush1.bf16.msra.mxu0 0
    %1960 = vmatprep.subr.bf16.mxu0 0
    %1961 = vmatpush1.bf16.msra.mxu0 0
    %1962 = vmatprep.subr.bf16.mxu0 0
    %1963 = vmatpush1.bf16.msra.mxu0 0
    %1964 = vmatprep.subr.bf16.mxu0 0
    %1965 = vmatpush1.bf16.msra.mxu0 0
    %1966 = vmatprep.subr.bf16.mxu0 0
    %1967 = vmatpush1.bf16.msra.mxu0 0
    %1968 = vmatprep.subr.bf16.mxu0 0
    %1969 = vmatpush1.bf16.msra.mxu0 0
    %1970 = vmatprep.subr.bf16.mxu0 0
    %1971 = vmatpush1.bf16.msra.mxu0 0
    %1972 = vmatprep.subr.bf16.mxu0 0
    %1973 = vmatpush1.bf16.msra.mxu0 0
    %1974 = vmatprep.mubr.bf16.mxu0 0
    %1975 = vmatmul.mubr.bf16.gmra.mrb[0].mxu0 %v212
    %v1976 = vpop.f32.mrb[0].mxu0
    %v1977 = vadd.f32 %v1928, %v1976
    %v1978 = vpop.f32.mrb[0].mxu0
    %v1979 = vpop.f32.mrb[0].mxu0
    %v1980 = vpop.f32.mrb[0].mxu0
    %1981 = vdwg.mxu0
    %v1982 = vmax.f32 %v1912, 0.0
    %v1983 = vpack.c.bf16 %v1982, %v1982
    %v1984 = vmax.f32 %v1977, 0.0
    %v1985 = vpack.c.bf16 %v1984, %v1984
    %s1986 = scalar_lea.vmem [#allocation10], 320
    %v1987 = vld [vmem:[%s1986] sm:$0xf]
    %v1988 = vld [vmem:[%s1986 + $0x4] sm:$0xf]
    %v1989 = vld [vmem:[%s1986 + $0x8] sm:$0xf]
    %v1990 = vld [vmem:[%s1986 + $0xc] sm:$0xf]
    %v1991 = vld [vmem:[%s1986 + $0x10] sm:$0xf]
    %v1992 = vld [vmem:[%s1986 + $0x14] sm:$0xf]
    %v1993 = vld [vmem:[%s1986 + $0x18] sm:$0xf]
    %v1994 = vld [vmem:[%s1986 + $0x1c] sm:$0xf]
    %v1995 = vld [vmem:[%s1986 + $0x20] sm:$0xf]
    %v1996 = vld [vmem:[%s1986 + $0x24] sm:$0xf]
    %v1997 = vld [vmem:[%s1986 + $0x28] sm:$0xf]
    %v1998 = vld [vmem:[%s1986 + $0x2c] sm:$0xf]
    %v1999 = vld [vmem:[%s1986 + $0x30] sm:$0xf]
    %v2000 = vld [vmem:[%s1986 + $0x34] sm:$0xf]
    %v2001 = vld [vmem:[%s1986 + $0x38] sm:$0xf]
    %v2002 = vld [vmem:[%s1986 + $0x3c] sm:$0xf]
    %v2019 = vunpack.c.l.b16 %v1987
    %v2020 = vunpack.c.l.b16 %v1988
    %v2021 = vunpack.c.l.b16 %v1989
    %v2022 = vunpack.c.l.b16 %v1990
    %v2023 = vunpack.c.l.b16 %v1991
    %v2024 = vunpack.c.l.b16 %v1992
    %v2025 = vunpack.c.l.b16 %v1993
    %v2026 = vunpack.c.l.b16 %v1994
    %v2027 = vunpack.c.l.b16 %v1995
    %v2028 = vunpack.c.l.b16 %v1996
    %v2029 = vunpack.c.l.b16 %v1997
    %v2030 = vunpack.c.l.b16 %v1998
    %v2031 = vunpack.c.l.b16 %v1999
    %v2032 = vunpack.c.l.b16 %v2000
    %v2033 = vunpack.c.l.b16 %v2001
    %v2034 = vunpack.c.l.b16 %v2002
    %v2035 = vpack.c.b16 %v2020, %v2019
    %v2036 = vpack.c.b16 %v2022, %v2021
    %v2037 = vpack.c.b16 %v2024, %v2023
    %v2038 = vpack.c.b16 %v2026, %v2025
    %v2039 = vpack.c.b16 %v2028, %v2027
    %v2040 = vpack.c.b16 %v2030, %v2029
    %v2041 = vpack.c.b16 %v2032, %v2031
    %v2042 = vpack.c.b16 %v2034, %v2033
    %2051 = vmatprep.subr.bf16.mxu0 0
    %2052 = vmatpush1.bf16.msra.mxu0 %v2035
    %2053 = vmatprep.subr.bf16.mxu0 0
    %2054 = vmatpush1.bf16.msra.mxu0 %v2036
    %2055 = vmatprep.subr.bf16.mxu0 0
    %2056 = vmatpush1.bf16.msra.mxu0 %v2037
    %2057 = vmatprep.subr.bf16.mxu0 0
    %2058 = vmatpush1.bf16.msra.mxu0 %v2038
    %2059 = vmatprep.subr.bf16.mxu0 0
    %2060 = vmatpush1.bf16.msra.mxu0 %v2039
    %2061 = vmatprep.subr.bf16.mxu0 0
    %2062 = vmatpush1.bf16.msra.mxu0 %v2040
    %2063 = vmatprep.subr.bf16.mxu0 0
    %2064 = vmatpush1.bf16.msra.mxu0 %v2041
    %2065 = vmatprep.subr.bf16.mxu0 0
    %2066 = vmatpush1.bf16.msra.mxu0 %v2042
    %2067 = vmatprep.subr.bf16.mxu0 0
    %2068 = vmatpush1.bf16.msra.mxu0 0
    %2069 = vmatprep.subr.bf16.mxu0 0
    %2070 = vmatpush1.bf16.msra.mxu0 0
    %2071 = vmatprep.subr.bf16.mxu0 0
    %2072 = vmatpush1.bf16.msra.mxu0 0
    %2073 = vmatprep.subr.bf16.mxu0 0
    %2074 = vmatpush1.bf16.msra.mxu0 0
    %2075 = vmatprep.subr.bf16.mxu0 0
    %2076 = vmatpush1.bf16.msra.mxu0 0
    %2077 = vmatprep.subr.bf16.mxu0 0
    %2078 = vmatpush1.bf16.msra.mxu0 0
    %2079 = vmatprep.subr.bf16.mxu0 0
    %2080 = vmatpush1.bf16.msra.mxu0 0
    %2081 = vmatprep.subr.bf16.mxu0 0
    %2082 = vmatpush1.bf16.msra.mxu0 0
    %2083 = vmatprep.mubr.bf16.mxu0 0
    %2084 = vmatmul.mubr.bf16.gmra.mrb[0].mxu0 %v1983
    %v2085 = vpop.f32.mrb[0].mxu0
    %v2086 = vadd.f32 0.0, %v2085
    %v2087 = vpop.f32.mrb[0].mxu0
    %v2088 = vpop.f32.mrb[0].mxu0
    %v2089 = vpop.f32.mrb[0].mxu0
    %2090 = vdwg.mxu0
    %v2091 = vadd.f32 %v1851, %v2086
    %s2092 = scalar_lea.vmem [#allocation11], 320
    %v2093 = vld [vmem:[%s2092] sm:$0xf]
    %v2094 = vld [vmem:[%s2092 + $0x4] sm:$0xf]
    %v2095 = vld [vmem:[%s2092 + $0x8] sm:$0xf]
    %v2096 = vld [vmem:[%s2092 + $0xc] sm:$0xf]
    %v2097 = vld [vmem:[%s2092 + $0x10] sm:$0xf]
    %v2098 = vld [vmem:[%s2092 + $0x14] sm:$0xf]
    %v2099 = vld [vmem:[%s2092 + $0x18] sm:$0xf]
    %v2100 = vld [vmem:[%s2092 + $0x1c] sm:$0xf]
    %v2101 = vld [vmem:[%s2092 + $0x20] sm:$0xf]
    %v2102 = vld [vmem:[%s2092 + $0x24] sm:$0xf]
    %v2103 = vld [vmem:[%s2092 + $0x28] sm:$0xf]
    %v2104 = vld [vmem:[%s2092 + $0x2c] sm:$0xf]
    %v2105 = vld [vmem:[%s2092 + $0x30] sm:$0xf]
    %v2106 = vld [vmem:[%s2092 + $0x34] sm:$0xf]
    %v2107 = vld [vmem:[%s2092 + $0x38] sm:$0xf]
    %v2108 = vld [vmem:[%s2092 + $0x3c] sm:$0xf]
    %v2125 = vunpack.c.l.b16 %v2093
    %v2126 = vunpack.c.l.b16 %v2094
    %v2127 = vunpack.c.l.b16 %v2095
    %v2128 = vunpack.c.l.b16 %v2096
    %v2129 = vunpack.c.l.b16 %v2097
    %v2130 = vunpack.c.l.b16 %v2098
    %v2131 = vunpack.c.l.b16 %v2099
    %v2132 = vunpack.c.l.b16 %v2100
    %v2133 = vunpack.c.l.b16 %v2101
    %v2134 = vunpack.c.l.b16 %v2102
    %v2135 = vunpack.c.l.b16 %v2103
    %v2136 = vunpack.c.l.b16 %v2104
    %v2137 = vunpack.c.l.b16 %v2105
    %v2138 = vunpack.c.l.b16 %v2106
    %v2139 = vunpack.c.l.b16 %v2107
    %v2140 = vunpack.c.l.b16 %v2108
    %v2141 = vpack.c.b16 %v2126, %v2125
    %v2142 = vpack.c.b16 %v2128, %v2127
    %v2143 = vpack.c.b16 %v2130, %v2129
    %v2144 = vpack.c.b16 %v2132, %v2131
    %v2145 = vpack.c.b16 %v2134, %v2133
    %v2146 = vpack.c.b16 %v2136, %v2135
    %v2147 = vpack.c.b16 %v2138, %v2137
    %v2148 = vpack.c.b16 %v2140, %v2139
    %2157 = vmatprep.subr.bf16.mxu0 0
    %2158 = vmatpush1.bf16.msra.mxu0 %v2141
    %2159 = vmatprep.subr.bf16.mxu0 0
    %2160 = vmatpush1.bf16.msra.mxu0 %v2142
    %2161 = vmatprep.subr.bf16.mxu0 0
    %2162 = vmatpush1.bf16.msra.mxu0 %v2143
    %2163 = vmatprep.subr.bf16.mxu0 0
    %2164 = vmatpush1.bf16.msra.mxu0 %v2144
    %2165 = vmatprep.subr.bf16.mxu0 0
    %2166 = vmatpush1.bf16.msra.mxu0 %v2145
    %2167 = vmatprep.subr.bf16.mxu0 0
    %2168 = vmatpush1.bf16.msra.mxu0 %v2146
    %2169 = vmatprep.subr.bf16.mxu0 0
    %2170 = vmatpush1.bf16.msra.mxu0 %v2147
    %2171 = vmatprep.subr.bf16.mxu0 0
    %2172 = vmatpush1.bf16.msra.mxu0 %v2148
    %2173 = vmatprep.subr.bf16.mxu0 0
    %2174 = vmatpush1.bf16.msra.mxu0 0
    %2175 = vmatprep.subr.bf16.mxu0 0
    %2176 = vmatpush1.bf16.msra.mxu0 0
    %2177 = vmatprep.subr.bf16.mxu0 0
    %2178 = vmatpush1.bf16.msra.mxu0 0
    %2179 = vmatprep.subr.bf16.mxu0 0
    %2180 = vmatpush1.bf16.msra.mxu0 0
    %2181 = vmatprep.subr.bf16.mxu0 0
    %2182 = vmatpush1.bf16.msra.mxu0 0
    %2183 = vmatprep.subr.bf16.mxu0 0
    %2184 = vmatpush1.bf16.msra.mxu0 0
    %2185 = vmatprep.subr.bf16.mxu0 0
    %2186 = vmatpush1.bf16.msra.mxu0 0
    %2187 = vmatprep.subr.bf16.mxu0 0
    %2188 = vmatpush1.bf16.msra.mxu0 0
    %2189 = vmatprep.mubr.bf16.mxu0 0
    %2190 = vmatmul.mubr.bf16.gmra.mrb[0].mxu0 %v1985
    %v2191 = vpop.f32.mrb[0].mxu0
    %v2192 = vadd.f32 0.0, %v2191
    %v2193 = vpop.f32.mrb[0].mxu0
    %v2194 = vpop.f32.mrb[0].mxu0
    %v2195 = vpop.f32.mrb[0].mxu0
    %2196 = vdwg.mxu0
    %v2197 = vadd.f32 %v2091, %v2192
    %s2198 = scalar_lea.vmem [#allocation7], 96
    %v2199 = vld [vmem:[%s2198] sm:$0xf]
    %v2200 = vld [vmem:[%s2198 + $0x4] sm:$0xf]
    %v2201 = vld [vmem:[%s2198 + $0x8] sm:$0xf]
    %v2202 = vld [vmem:[%s2198 + $0xc] sm:$0xf]
    %s2203 = scalar_lea.vmem %s3, 6
    %v2204 = vld [vmem:[%s2203] sm:$0x1]
    %v2206 = vlaneseq
    %v2207 = vshrl.u32 %v2206, 7
    %v2208 = vsub.s32 0, %v2207
    %v2209 = vrot.slane %v2204, %v2208
    %v2215 = vunpack.c.l.b16 %v2199
    %v2216 = vunpack.c.l.b16 %v2200
    %v2217 = vunpack.c.l.b16 %v2201
    %v2218 = vunpack.c.l.b16 %v2202
    %v2219 = vpack.c.b16 %v2216, %v2215
    %v2220 = vpack.c.b16 %v2218, %v2217
    %2223 = vmatprep.subr.bf16.mxu0 0
    %2224 = vmatpush1.bf16.msra.mxu0 %v2219
    %2225 = vmatprep.subr.bf16.mxu0 0
    %2226 = vmatpush1.bf16.msra.mxu0 %v2220
    %2227 = vmatprep.subr.bf16.mxu0 0
    %2228 = vmatpush1.bf16.msra.mxu0 0
    %2229 = vmatprep.subr.bf16.mxu0 0
    %2230 = vmatpush1.bf16.msra.mxu0 0
    %2231 = vmatprep.subr.bf16.mxu0 0
    %2232 = vmatpush1.bf16.msra.mxu0 0
    %2233 = vmatprep.subr.bf16.mxu0 0
    %2234 = vmatpush1.bf16.msra.mxu0 0
    %2235 = vmatprep.subr.bf16.mxu0 0
    %2236 = vmatpush1.bf16.msra.mxu0 0
    %2237 = vmatprep.subr.bf16.mxu0 0
    %2238 = vmatpush1.bf16.msra.mxu0 0
    %2239 = vmatprep.subr.bf16.mxu0 0
    %2240 = vmatpush1.bf16.msra.mxu0 0
    %2241 = vmatprep.subr.bf16.mxu0 0
    %2242 = vmatpush1.bf16.msra.mxu0 0
    %2243 = vmatprep.subr.bf16.mxu0 0
    %2244 = vmatpush1.bf16.msra.mxu0 0
    %2245 = vmatprep.subr.bf16.mxu0 0
    %2246 = vmatpush1.bf16.msra.mxu0 0
    %2247 = vmatprep.subr.bf16.mxu0 0
    %2248 = vmatpush1.bf16.msra.mxu0 0
    %2249 = vmatprep.subr.bf16.mxu0 0
    %2250 = vmatpush1.bf16.msra.mxu0 0
    %2251 = vmatprep.subr.bf16.mxu0 0
    %2252 = vmatpush1.bf16.msra.mxu0 0
    %2253 = vmatprep.subr.bf16.mxu0 0
    %2254 = vmatpush1.bf16.msra.mxu0 0
    %2255 = vmatprep.mubr.bf16.mxu0 0
    %2256 = vmatmul.mubr.bf16.gmra.mrb[0].mxu0 %v146
    %v2257 = vpop.f32.mrb[0].mxu0
    %v2258 = vadd.f32 %v2209, %v2257
    %v2259 = vpop.f32.mrb[0].mxu0
    %v2260 = vpop.f32.mrb[0].mxu0
    %v2261 = vpop.f32.mrb[0].mxu0
    %2262 = vdwg.mxu0
    %s2263 = scalar_lea.vmem [#allocation8], 96
    %v2264 = vld [vmem:[%s2263] sm:$0xf]
    %v2265 = vld [vmem:[%s2263 + $0x4] sm:$0xf]
    %v2266 = vld [vmem:[%s2263 + $0x8] sm:$0xf]
    %v2267 = vld [vmem:[%s2263 + $0xc] sm:$0xf]
    %s2268 = scalar_lea.vmem %s5, 6
    %v2269 = vld [vmem:[%s2268] sm:$0x1]
    %v2271 = vlaneseq
    %v2272 = vshrl.u32 %v2271, 7
    %v2273 = vsub.s32 0, %v2272
    %v2274 = vrot.slane %v2269, %v2273
    %v2280 = vunpack.c.l.b16 %v2264
    %v2281 = vunpack.c.l.b16 %v2265
    %v2282 = vunpack.c.l.b16 %v2266
    %v2283 = vunpack.c.l.b16 %v2267
    %v2284 = vpack.c.b16 %v2281, %v2280
    %v2285 = vpack.c.b16 %v2283, %v2282
    %2288 = vmatprep.subr.bf16.mxu0 0
    %2289 = vmatpush1.bf16.msra.mxu0 %v2284
    %2290 = vmatprep.subr.bf16.mxu0 0
    %2291 = vmatpush1.bf16.msra.mxu0 %v2285
    %2292 = vmatprep.subr.bf16.mxu0 0
    %2293 = vmatpush1.bf16.msra.mxu0 0
    %2294 = vmatprep.subr.bf16.mxu0 0
    %2295 = vmatpush1.bf16.msra.mxu0 0
    %2296 = vmatprep.subr.bf16.mxu0 0
    %2297 = vmatpush1.bf16.msra.mxu0 0
    %2298 = vmatprep.subr.bf16.mxu0 0
    %2299 = vmatpush1.bf16.msra.mxu0 0
    %2300 = vmatprep.subr.bf16.mxu0 0
    %2301 = vmatpush1.bf16.msra.mxu0 0
    %2302 = vmatprep.subr.bf16.mxu0 0
    %2303 = vmatpush1.bf16.msra.mxu0 0
    %2304 = vmatprep.subr.bf16.mxu0 0
    %2305 = vmatpush1.bf16.msra.mxu0 0
    %2306 = vmatprep.subr.bf16.mxu0 0
    %2307 = vmatpush1.bf16.msra.mxu0 0
    %2308 = vmatprep.subr.bf16.mxu0 0
    %2309 = vmatpush1.bf16.msra.mxu0 0
    %2310 = vmatprep.subr.bf16.mxu0 0
    %2311 = vmatpush1.bf16.msra.mxu0 0
    %2312 = vmatprep.subr.bf16.mxu0 0
    %2313 = vmatpush1.bf16.msra.mxu0 0
    %2314 = vmatprep.subr.bf16.mxu0 0
    %2315 = vmatpush1.bf16.msra.mxu0 0
    %2316 = vmatprep.subr.bf16.mxu0 0
    %2317 = vmatpush1.bf16.msra.mxu0 0
    %2318 = vmatprep.subr.bf16.mxu0 0
    %2319 = vmatpush1.bf16.msra.mxu0 0
    %2320 = vmatprep.mubr.bf16.mxu0 0
    %2321 = vmatmul.mubr.bf16.gmra.mrb[0].mxu0 %v212
    %v2322 = vpop.f32.mrb[0].mxu0
    %v2323 = vadd.f32 %v2274, %v2322
    %v2324 = vpop.f32.mrb[0].mxu0
    %v2325 = vpop.f32.mrb[0].mxu0
    %v2326 = vpop.f32.mrb[0].mxu0
    %2327 = vdwg.mxu0
    %v2328 = vmax.f32 %v2258, 0.0
    %v2329 = vpack.c.bf16 %v2328, %v2328
    %v2330 = vmax.f32 %v2323, 0.0
    %v2331 = vpack.c.bf16 %v2330, %v2330
    %s2332 = scalar_lea.vmem [#allocation10], 384
    %v2333 = vld [vmem:[%s2332] sm:$0xf]
    %v2334 = vld [vmem:[%s2332 + $0x4] sm:$0xf]
    %v2335 = vld [vmem:[%s2332 + $0x8] sm:$0xf]
    %v2336 = vld [vmem:[%s2332 + $0xc] sm:$0xf]
    %v2337 = vld [vmem:[%s2332 + $0x10] sm:$0xf]
    %v2338 = vld [vmem:[%s2332 + $0x14] sm:$0xf]
    %v2339 = vld [vmem:[%s2332 + $0x18] sm:$0xf]
    %v2340 = vld [vmem:[%s2332 + $0x1c] sm:$0xf]
    %v2341 = vld [vmem:[%s2332 + $0x20] sm:$0xf]
    %v2342 = vld [vmem:[%s2332 + $0x24] sm:$0xf]
    %v2343 = vld [vmem:[%s2332 + $0x28] sm:$0xf]
    %v2344 = vld [vmem:[%s2332 + $0x2c] sm:$0xf]
    %v2345 = vld [vmem:[%s2332 + $0x30] sm:$0xf]
    %v2346 = vld [vmem:[%s2332 + $0x34] sm:$0xf]
    %v2347 = vld [vmem:[%s2332 + $0x38] sm:$0xf]
    %v2348 = vld [vmem:[%s2332 + $0x3c] sm:$0xf]
    %v2365 = vunpack.c.l.b16 %v2333
    %v2366 = vunpack.c.l.b16 %v2334
    %v2367 = vunpack.c.l.b16 %v2335
    %v2368 = vunpack.c.l.b16 %v2336
    %v2369 = vunpack.c.l.b16 %v2337
    %v2370 = vunpack.c.l.b16 %v2338
    %v2371 = vunpack.c.l.b16 %v2339
    %v2372 = vunpack.c.l.b16 %v2340
    %v2373 = vunpack.c.l.b16 %v2341
    %v2374 = vunpack.c.l.b16 %v2342
    %v2375 = vunpack.c.l.b16 %v2343
    %v2376 = vunpack.c.l.b16 %v2344
    %v2377 = vunpack.c.l.b16 %v2345
    %v2378 = vunpack.c.l.b16 %v2346
    %v2379 = vunpack.c.l.b16 %v2347
    %v2380 = vunpack.c.l.b16 %v2348
    %v2381 = vpack.c.b16 %v2366, %v2365
    %v2382 = vpack.c.b16 %v2368, %v2367
    %v2383 = vpack.c.b16 %v2370, %v2369
    %v2384 = vpack.c.b16 %v2372, %v2371
    %v2385 = vpack.c.b16 %v2374, %v2373
    %v2386 = vpack.c.b16 %v2376, %v2375
    %v2387 = vpack.c.b16 %v2378, %v2377
    %v2388 = vpack.c.b16 %v2380, %v2379
    %2397 = vmatprep.subr.bf16.mxu0 0
    %2398 = vmatpush1.bf16.msra.mxu0 %v2381
    %2399 = vmatprep.subr.bf16.mxu0 0
    %2400 = vmatpush1.bf16.msra.mxu0 %v2382
    %2401 = vmatprep.subr.bf16.mxu0 0
    %2402 = vmatpush1.bf16.msra.mxu0 %v2383
    %2403 = vmatprep.subr.bf16.mxu0 0
    %2404 = vmatpush1.bf16.msra.mxu0 %v2384
    %2405 = vmatprep.subr.bf16.mxu0 0
    %2406 = vmatpush1.bf16.msra.mxu0 %v2385
    %2407 = vmatprep.subr.bf16.mxu0 0
    %2408 = vmatpush1.bf16.msra.mxu0 %v2386
    %2409 = vmatprep.subr.bf16.mxu0 0
    %2410 = vmatpush1.bf16.msra.mxu0 %v2387
    %2411 = vmatprep.subr.bf16.mxu0 0
    %2412 = vmatpush1.bf16.msra.mxu0 %v2388
    %2413 = vmatprep.subr.bf16.mxu0 0
    %2414 = vmatpush1.bf16.msra.mxu0 0
    %2415 = vmatprep.subr.bf16.mxu0 0
    %2416 = vmatpush1.bf16.msra.mxu0 0
    %2417 = vmatprep.subr.bf16.mxu0 0
    %2418 = vmatpush1.bf16.msra.mxu0 0
    %2419 = vmatprep.subr.bf16.mxu0 0
    %2420 = vmatpush1.bf16.msra.mxu0 0
    %2421 = vmatprep.subr.bf16.mxu0 0
    %2422 = vmatpush1.bf16.msra.mxu0 0
    %2423 = vmatprep.subr.bf16.mxu0 0
    %2424 = vmatpush1.bf16.msra.mxu0 0
    %2425 = vmatprep.subr.bf16.mxu0 0
    %2426 = vmatpush1.bf16.msra.mxu0 0
    %2427 = vmatprep.subr.bf16.mxu0 0
    %2428 = vmatpush1.bf16.msra.mxu0 0
    %2429 = vmatprep.mubr.bf16.mxu0 0
    %2430 = vmatmul.mubr.bf16.gmra.mrb[0].mxu0 %v2329
    %v2431 = vpop.f32.mrb[0].mxu0
    %v2432 = vadd.f32 0.0, %v2431
    %v2433 = vpop.f32.mrb[0].mxu0
    %v2434 = vpop.f32.mrb[0].mxu0
    %v2435 = vpop.f32.mrb[0].mxu0
    %2436 = vdwg.mxu0
    %v2437 = vadd.f32 %v2197, %v2432
    %s2438 = scalar_lea.vmem [#allocation11], 384
    %v2439 = vld [vmem:[%s2438] sm:$0xf]
    %v2440 = vld [vmem:[%s2438 + $0x4] sm:$0xf]
    %v2441 = vld [vmem:[%s2438 + $0x8] sm:$0xf]
    %v2442 = vld [vmem:[%s2438 + $0xc] sm:$0xf]
    %v2443 = vld [vmem:[%s2438 + $0x10] sm:$0xf]
    %v2444 = vld [vmem:[%s2438 + $0x14] sm:$0xf]
    %v2445 = vld [vmem:[%s2438 + $0x18] sm:$0xf]
    %v2446 = vld [vmem:[%s2438 + $0x1c] sm:$0xf]
    %v2447 = vld [vmem:[%s2438 + $0x20] sm:$0xf]
    %v2448 = vld [vmem:[%s2438 + $0x24] sm:$0xf]
    %v2449 = vld [vmem:[%s2438 + $0x28] sm:$0xf]
    %v2450 = vld [vmem:[%s2438 + $0x2c] sm:$0xf]
    %v2451 = vld [vmem:[%s2438 + $0x30] sm:$0xf]
    %v2452 = vld [vmem:[%s2438 + $0x34] sm:$0xf]
    %v2453 = vld [vmem:[%s2438 + $0x38] sm:$0xf]
    %v2454 = vld [vmem:[%s2438 + $0x3c] sm:$0xf]
    %v2471 = vunpack.c.l.b16 %v2439
    %v2472 = vunpack.c.l.b16 %v2440
    %v2473 = vunpack.c.l.b16 %v2441
    %v2474 = vunpack.c.l.b16 %v2442
    %v2475 = vunpack.c.l.b16 %v2443
    %v2476 = vunpack.c.l.b16 %v2444
    %v2477 = vunpack.c.l.b16 %v2445
    %v2478 = vunpack.c.l.b16 %v2446
    %v2479 = vunpack.c.l.b16 %v2447
    %v2480 = vunpack.c.l.b16 %v2448
    %v2481 = vunpack.c.l.b16 %v2449
    %v2482 = vunpack.c.l.b16 %v2450
    %v2483 = vunpack.c.l.b16 %v2451
    %v2484 = vunpack.c.l.b16 %v2452
    %v2485 = vunpack.c.l.b16 %v2453
    %v2486 = vunpack.c.l.b16 %v2454
    %v2487 = vpack.c.b16 %v2472, %v2471
    %v2488 = vpack.c.b16 %v2474, %v2473
    %v2489 = vpack.c.b16 %v2476, %v2475
    %v2490 = vpack.c.b16 %v2478, %v2477
    %v2491 = vpack.c.b16 %v2480, %v2479
    %v2492 = vpack.c.b16 %v2482, %v2481
    %v2493 = vpack.c.b16 %v2484, %v2483
    %v2494 = vpack.c.b16 %v2486, %v2485
    %2503 = vmatprep.subr.bf16.mxu0 0
    %2504 = vmatpush1.bf16.msra.mxu0 %v2487
    %2505 = vmatprep.subr.bf16.mxu0 0
    %2506 = vmatpush1.bf16.msra.mxu0 %v2488
    %2507 = vmatprep.subr.bf16.mxu0 0
    %2508 = vmatpush1.bf16.msra.mxu0 %v2489
    %2509 = vmatprep.subr.bf16.mxu0 0
    %2510 = vmatpush1.bf16.msra.mxu0 %v2490
    %2511 = vmatprep.subr.bf16.mxu0 0
    %2512 = vmatpush1.bf16.msra.mxu0 %v2491
    %2513 = vmatprep.subr.bf16.mxu0 0
    %2514 = vmatpush1.bf16.msra.mxu0 %v2492
    %2515 = vmatprep.subr.bf16.mxu0 0
    %2516 = vmatpush1.bf16.msra.mxu0 %v2493
    %2517 = vmatprep.subr.bf16.mxu0 0
    %2518 = vmatpush1.bf16.msra.mxu0 %v2494
    %2519 = vmatprep.subr.bf16.mxu0 0
    %2520 = vmatpush1.bf16.msra.mxu0 0
    %2521 = vmatprep.subr.bf16.mxu0 0
    %2522 = vmatpush1.bf16.msra.mxu0 0
    %2523 = vmatprep.subr.bf16.mxu0 0
    %2524 = vmatpush1.bf16.msra.mxu0 0
    %2525 = vmatprep.subr.bf16.mxu0 0
    %2526 = vmatpush1.bf16.msra.mxu0 0
    %2527 = vmatprep.subr.bf16.mxu0 0
    %2528 = vmatpush1.bf16.msra.mxu0 0
    %2529 = vmatprep.subr.bf16.mxu0 0
    %2530 = vmatpush1.bf16.msra.mxu0 0
    %2531 = vmatprep.subr.bf16.mxu0 0
    %2532 = vmatpush1.bf16.msra.mxu0 0
    %2533 = vmatprep.subr.bf16.mxu0 0
    %2534 = vmatpush1.bf16.msra.mxu0 0
    %2535 = vmatprep.mubr.bf16.mxu0 0
    %2536 = vmatmul.mubr.bf16.gmra.mrb[0].mxu0 %v2331
    %v2537 = vpop.f32.mrb[0].mxu0
    %v2538 = vadd.f32 0.0, %v2537
    %v2539 = vpop.f32.mrb[0].mxu0
    %v2540 = vpop.f32.mrb[0].mxu0
    %v2541 = vpop.f32.mrb[0].mxu0
    %2542 = vdwg.mxu0
    %v2543 = vadd.f32 %v2437, %v2538
    %s2544 = scalar_lea.vmem [#allocation7], 112
    %v2545 = vld [vmem:[%s2544] sm:$0xf]
    %v2546 = vld [vmem:[%s2544 + $0x4] sm:$0xf]
    %v2547 = vld [vmem:[%s2544 + $0x8] sm:$0xf]
    %v2548 = vld [vmem:[%s2544 + $0xc] sm:$0xf]
    %s2549 = scalar_lea.vmem %s3, 7
    %v2550 = vld [vmem:[%s2549] sm:$0x1]
    %v2552 = vlaneseq
    %v2553 = vshrl.u32 %v2552, 7
    %v2554 = vsub.s32 0, %v2553
    %v2555 = vrot.slane %v2550, %v2554
    %v2561 = vunpack.c.l.b16 %v2545
    %v2562 = vunpack.c.l.b16 %v2546
    %v2563 = vunpack.c.l.b16 %v2547
    %v2564 = vunpack.c.l.b16 %v2548
    %v2565 = vpack.c.b16 %v2562, %v2561
    %v2566 = vpack.c.b16 %v2564, %v2563
    %2569 = vmatprep.subr.bf16.mxu0 0
    %2570 = vmatpush1.bf16.msra.mxu0 %v2565
    %2571 = vmatprep.subr.bf16.mxu0 0
    %2572 = vmatpush1.bf16.msra.mxu0 %v2566
    %2573 = vmatprep.subr.bf16.mxu0 0
    %2574 = vmatpush1.bf16.msra.mxu0 0
    %2575 = vmatprep.subr.bf16.mxu0 0
    %2576 = vmatpush1.bf16.msra.mxu0 0
    %2577 = vmatprep.subr.bf16.mxu0 0
    %2578 = vmatpush1.bf16.msra.mxu0 0
    %2579 = vmatprep.subr.bf16.mxu0 0
    %2580 = vmatpush1.bf16.msra.mxu0 0
    %2581 = vmatprep.subr.bf16.mxu0 0
    %2582 = vmatpush1.bf16.msra.mxu0 0
    %2583 = vmatprep.subr.bf16.mxu0 0
    %2584 = vmatpush1.bf16.msra.mxu0 0
    %2585 = vmatprep.subr.bf16.mxu0 0
    %2586 = vmatpush1.bf16.msra.mxu0 0
    %2587 = vmatprep.subr.bf16.mxu0 0
    %2588 = vmatpush1.bf16.msra.mxu0 0
    %2589 = vmatprep.subr.bf16.mxu0 0
    %2590 = vmatpush1.bf16.msra.mxu0 0
    %2591 = vmatprep.subr.bf16.mxu0 0
    %2592 = vmatpush1.bf16.msra.mxu0 0
    %2593 = vmatprep.subr.bf16.mxu0 0
    %2594 = vmatpush1.bf16.msra.mxu0 0
    %2595 = vmatprep.subr.bf16.mxu0 0
    %2596 = vmatpush1.bf16.msra.mxu0 0
    %2597 = vmatprep.subr.bf16.mxu0 0
    %2598 = vmatpush1.bf16.msra.mxu0 0
    %2599 = vmatprep.subr.bf16.mxu0 0
    %2600 = vmatpush1.bf16.msra.mxu0 0
    %2601 = vmatprep.mubr.bf16.mxu0 0
    %2602 = vmatmul.mubr.bf16.gmra.mrb[0].mxu0 %v146
    %v2603 = vpop.f32.mrb[0].mxu0
    %v2604 = vadd.f32 %v2555, %v2603
    %v2605 = vpop.f32.mrb[0].mxu0
    %v2606 = vpop.f32.mrb[0].mxu0
    %v2607 = vpop.f32.mrb[0].mxu0
    %2608 = vdwg.mxu0
    %s2609 = scalar_lea.vmem [#allocation8], 112
    %v2610 = vld [vmem:[%s2609] sm:$0xf]
    %v2611 = vld [vmem:[%s2609 + $0x4] sm:$0xf]
    %v2612 = vld [vmem:[%s2609 + $0x8] sm:$0xf]
    %v2613 = vld [vmem:[%s2609 + $0xc] sm:$0xf]
    %s2614 = scalar_lea.vmem %s5, 7
    %v2615 = vld [vmem:[%s2614] sm:$0x1]
    %v2617 = vlaneseq
    %v2618 = vshrl.u32 %v2617, 7
    %v2619 = vsub.s32 0, %v2618
    %v2620 = vrot.slane %v2615, %v2619
    %v2626 = vunpack.c.l.b16 %v2610
    %v2627 = vunpack.c.l.b16 %v2611
    %v2628 = vunpack.c.l.b16 %v2612
    %v2629 = vunpack.c.l.b16 %v2613
    %v2630 = vpack.c.b16 %v2627, %v2626
    %v2631 = vpack.c.b16 %v2629, %v2628
    %2634 = vmatprep.subr.bf16.mxu0 0
    %2635 = vmatpush1.bf16.msra.mxu0 %v2630
    %2636 = vmatprep.subr.bf16.mxu0 0
    %2637 = vmatpush1.bf16.msra.mxu0 %v2631
    %2638 = vmatprep.subr.bf16.mxu0 0
    %2639 = vmatpush1.bf16.msra.mxu0 0
    %2640 = vmatprep.subr.bf16.mxu0 0
    %2641 = vmatpush1.bf16.msra.mxu0 0
    %2642 = vmatprep.subr.bf16.mxu0 0
    %2643 = vmatpush1.bf16.msra.mxu0 0
    %2644 = vmatprep.subr.bf16.mxu0 0
    %2645 = vmatpush1.bf16.msra.mxu0 0
    %2646 = vmatprep.subr.bf16.mxu0 0
    %2647 = vmatpush1.bf16.msra.mxu0 0
    %2648 = vmatprep.subr.bf16.mxu0 0
    %2649 = vmatpush1.bf16.msra.mxu0 0
    %2650 = vmatprep.subr.bf16.mxu0 0
    %2651 = vmatpush1.bf16.msra.mxu0 0
    %2652 = vmatprep.subr.bf16.mxu0 0
    %2653 = vmatpush1.bf16.msra.mxu0 0
    %2654 = vmatprep.subr.bf16.mxu0 0
    %2655 = vmatpush1.bf16.msra.mxu0 0
    %2656 = vmatprep.subr.bf16.mxu0 0
    %2657 = vmatpush1.bf16.msra.mxu0 0
    %2658 = vmatprep.subr.bf16.mxu0 0
    %2659 = vmatpush1.bf16.msra.mxu0 0
    %2660 = vmatprep.subr.bf16.mxu0 0
    %2661 = vmatpush1.bf16.msra.mxu0 0
    %2662 = vmatprep.subr.bf16.mxu0 0
    %2663 = vmatpush1.bf16.msra.mxu0 0
    %2664 = vmatprep.subr.bf16.mxu0 0
    %2665 = vmatpush1.bf16.msra.mxu0 0
    %2666 = vmatprep.mubr.bf16.mxu0 0
    %2667 = vmatmul.mubr.bf16.gmra.mrb[0].mxu0 %v212
    %v2668 = vpop.f32.mrb[0].mxu0
    %v2669 = vadd.f32 %v2620, %v2668
    %v2670 = vpop.f32.mrb[0].mxu0
    %v2671 = vpop.f32.mrb[0].mxu0
    %v2672 = vpop.f32.mrb[0].mxu0
    %2673 = vdwg.mxu0
    %v2674 = vmax.f32 %v2604, 0.0
    %v2675 = vpack.c.bf16 %v2674, %v2674
    %v2676 = vmax.f32 %v2669, 0.0
    %v2677 = vpack.c.bf16 %v2676, %v2676
    %s2678 = scalar_lea.vmem [#allocation10], 448
    %v2679 = vld [vmem:[%s2678] sm:$0xf]
    %v2680 = vld [vmem:[%s2678 + $0x4] sm:$0xf]
    %v2681 = vld [vmem:[%s2678 + $0x8] sm:$0xf]
    %v2682 = vld [vmem:[%s2678 + $0xc] sm:$0xf]
    %v2683 = vld [vmem:[%s2678 + $0x10] sm:$0xf]
    %v2684 = vld [vmem:[%s2678 + $0x14] sm:$0xf]
    %v2685 = vld [vmem:[%s2678 + $0x18] sm:$0xf]
    %v2686 = vld [vmem:[%s2678 + $0x1c] sm:$0xf]
    %v2687 = vld [vmem:[%s2678 + $0x20] sm:$0xf]
    %v2688 = vld [vmem:[%s2678 + $0x24] sm:$0xf]
    %v2689 = vld [vmem:[%s2678 + $0x28] sm:$0xf]
    %v2690 = vld [vmem:[%s2678 + $0x2c] sm:$0xf]
    %v2691 = vld [vmem:[%s2678 + $0x30] sm:$0xf]
    %v2692 = vld [vmem:[%s2678 + $0x34] sm:$0xf]
    %v2693 = vld [vmem:[%s2678 + $0x38] sm:$0xf]
    %v2694 = vld [vmem:[%s2678 + $0x3c] sm:$0xf]
    %v2711 = vunpack.c.l.b16 %v2679
    %v2712 = vunpack.c.l.b16 %v2680
    %v2713 = vunpack.c.l.b16 %v2681
    %v2714 = vunpack.c.l.b16 %v2682
    %v2715 = vunpack.c.l.b16 %v2683
    %v2716 = vunpack.c.l.b16 %v2684
    %v2717 = vunpack.c.l.b16 %v2685
    %v2718 = vunpack.c.l.b16 %v2686
    %v2719 = vunpack.c.l.b16 %v2687
    %v2720 = vunpack.c.l.b16 %v2688
    %v2721 = vunpack.c.l.b16 %v2689
    %v2722 = vunpack.c.l.b16 %v2690
    %v2723 = vunpack.c.l.b16 %v2691
    %v2724 = vunpack.c.l.b16 %v2692
    %v2725 = vunpack.c.l.b16 %v2693
    %v2726 = vunpack.c.l.b16 %v2694
    %v2727 = vpack.c.b16 %v2712, %v2711
    %v2728 = vpack.c.b16 %v2714, %v2713
    %v2729 = vpack.c.b16 %v2716, %v2715
    %v2730 = vpack.c.b16 %v2718, %v2717
    %v2731 = vpack.c.b16 %v2720, %v2719
    %v2732 = vpack.c.b16 %v2722, %v2721
    %v2733 = vpack.c.b16 %v2724, %v2723
    %v2734 = vpack.c.b16 %v2726, %v2725
    %2743 = vmatprep.subr.bf16.mxu0 0
    %2744 = vmatpush1.bf16.msra.mxu0 %v2727
    %2745 = vmatprep.subr.bf16.mxu0 0
    %2746 = vmatpush1.bf16.msra.mxu0 %v2728
    %2747 = vmatprep.subr.bf16.mxu0 0
    %2748 = vmatpush1.bf16.msra.mxu0 %v2729
    %2749 = vmatprep.subr.bf16.mxu0 0
    %2750 = vmatpush1.bf16.msra.mxu0 %v2730
    %2751 = vmatprep.subr.bf16.mxu0 0
    %2752 = vmatpush1.bf16.msra.mxu0 %v2731
    %2753 = vmatprep.subr.bf16.mxu0 0
    %2754 = vmatpush1.bf16.msra.mxu0 %v2732
    %2755 = vmatprep.subr.bf16.mxu0 0
    %2756 = vmatpush1.bf16.msra.mxu0 %v2733
    %2757 = vmatprep.subr.bf16.mxu0 0
    %2758 = vmatpush1.bf16.msra.mxu0 %v2734
    %2759 = vmatprep.subr.bf16.mxu0 0
    %2760 = vmatpush1.bf16.msra.mxu0 0
    %2761 = vmatprep.subr.bf16.mxu0 0
    %2762 = vmatpush1.bf16.msra.mxu0 0
    %2763 = vmatprep.subr.bf16.mxu0 0
    %2764 = vmatpush1.bf16.msra.mxu0 0
    %2765 = vmatprep.subr.bf16.mxu0 0
    %2766 = vmatpush1.bf16.msra.mxu0 0
    %2767 = vmatprep.subr.bf16.mxu0 0
    %2768 = vmatpush1.bf16.msra.mxu0 0
    %2769 = vmatprep.subr.bf16.mxu0 0
    %2770 = vmatpush1.bf16.msra.mxu0 0
    %2771 = vmatprep.subr.bf16.mxu0 0
    %2772 = vmatpush1.bf16.msra.mxu0 0
    %2773 = vmatprep.subr.bf16.mxu0 0
    %2774 = vmatpush1.bf16.msra.mxu0 0
    %2775 = vmatprep.mubr.bf16.mxu0 0
    %2776 = vmatmul.mubr.bf16.gmra.mrb[0].mxu0 %v2675
    %v2777 = vpop.f32.mrb[0].mxu0
    %v2778 = vadd.f32 0.0, %v2777
    %v2779 = vpop.f32.mrb[0].mxu0
    %v2780 = vpop.f32.mrb[0].mxu0
    %v2781 = vpop.f32.mrb[0].mxu0
    %2782 = vdwg.mxu0
    %v2783 = vadd.f32 %v2543, %v2778
    %s2784 = scalar_lea.vmem [#allocation11], 448
    %v2785 = vld [vmem:[%s2784] sm:$0xf]
    %v2786 = vld [vmem:[%s2784 + $0x4] sm:$0xf]
    %v2787 = vld [vmem:[%s2784 + $0x8] sm:$0xf]
    %v2788 = vld [vmem:[%s2784 + $0xc] sm:$0xf]
    %v2789 = vld [vmem:[%s2784 + $0x10] sm:$0xf]
    %v2790 = vld [vmem:[%s2784 + $0x14] sm:$0xf]
    %v2791 = vld [vmem:[%s2784 + $0x18] sm:$0xf]
    %v2792 = vld [vmem:[%s2784 + $0x1c] sm:$0xf]
    %v2793 = vld [vmem:[%s2784 + $0x20] sm:$0xf]
    %v2794 = vld [vmem:[%s2784 + $0x24] sm:$0xf]
    %v2795 = vld [vmem:[%s2784 + $0x28] sm:$0xf]
    %v2796 = vld [vmem:[%s2784 + $0x2c] sm:$0xf]
    %v2797 = vld [vmem:[%s2784 + $0x30] sm:$0xf]
    %v2798 = vld [vmem:[%s2784 + $0x34] sm:$0xf]
    %v2799 = vld [vmem:[%s2784 + $0x38] sm:$0xf]
    %v2800 = vld [vmem:[%s2784 + $0x3c] sm:$0xf]
    %v2817 = vunpack.c.l.b16 %v2785
    %v2818 = vunpack.c.l.b16 %v2786
    %v2819 = vunpack.c.l.b16 %v2787
    %v2820 = vunpack.c.l.b16 %v2788
    %v2821 = vunpack.c.l.b16 %v2789
    %v2822 = vunpack.c.l.b16 %v2790
    %v2823 = vunpack.c.l.b16 %v2791
    %v2824 = vunpack.c.l.b16 %v2792
    %v2825 = vunpack.c.l.b16 %v2793
    %v2826 = vunpack.c.l.b16 %v2794
    %v2827 = vunpack.c.l.b16 %v2795
    %v2828 = vunpack.c.l.b16 %v2796
    %v2829 = vunpack.c.l.b16 %v2797
    %v2830 = vunpack.c.l.b16 %v2798
    %v2831 = vunpack.c.l.b16 %v2799
    %v2832 = vunpack.c.l.b16 %v2800
    %v2833 = vpack.c.b16 %v2818, %v2817
    %v2834 = vpack.c.b16 %v2820, %v2819
    %v2835 = vpack.c.b16 %v2822, %v2821
    %v2836 = vpack.c.b16 %v2824, %v2823
    %v2837 = vpack.c.b16 %v2826, %v2825
    %v2838 = vpack.c.b16 %v2828, %v2827
    %v2839 = vpack.c.b16 %v2830, %v2829
    %v2840 = vpack.c.b16 %v2832, %v2831
    %2849 = vmatprep.subr.bf16.mxu0 0
    %2850 = vmatpush1.bf16.msra.mxu0 %v2833
    %2851 = vmatprep.subr.bf16.mxu0 0
    %2852 = vmatpush1.bf16.msra.mxu0 %v2834
    %2853 = vmatprep.subr.bf16.mxu0 0
    %2854 = vmatpush1.bf16.msra.mxu0 %v2835
    %2855 = vmatprep.subr.bf16.mxu0 0
    %2856 = vmatpush1.bf16.msra.mxu0 %v2836
    %2857 = vmatprep.subr.bf16.mxu0 0
    %2858 = vmatpush1.bf16.msra.mxu0 %v2837
    %2859 = vmatprep.subr.bf16.mxu0 0
    %2860 = vmatpush1.bf16.msra.mxu0 %v2838
    %2861 = vmatprep.subr.bf16.mxu0 0
    %2862 = vmatpush1.bf16.msra.mxu0 %v2839
    %2863 = vmatprep.subr.bf16.mxu0 0
    %2864 = vmatpush1.bf16.msra.mxu0 %v2840
    %2865 = vmatprep.subr.bf16.mxu0 0
    %2866 = vmatpush1.bf16.msra.mxu0 0
    %2867 = vmatprep.subr.bf16.mxu0 0
    %2868 = vmatpush1.bf16.msra.mxu0 0
    %2869 = vmatprep.subr.bf16.mxu0 0
    %2870 = vmatpush1.bf16.msra.mxu0 0
    %2871 = vmatprep.subr.bf16.mxu0 0
    %2872 = vmatpush1.bf16.msra.mxu0 0
    %2873 = vmatprep.subr.bf16.mxu0 0
    %2874 = vmatpush1.bf16.msra.mxu0 0
    %2875 = vmatprep.subr.bf16.mxu0 0
    %2876 = vmatpush1.bf16.msra.mxu0 0
    %2877 = vmatprep.subr.bf16.mxu0 0
    %2878 = vmatpush1.bf16.msra.mxu0 0
    %2879 = vmatprep.subr.bf16.mxu0 0
    %2880 = vmatpush1.bf16.msra.mxu0 0
    %2881 = vmatprep.mubr.bf16.mxu0 0
    %2882 = vmatmul.mubr.bf16.gmra.mrb[0].mxu0 %v2677
    %v2883 = vpop.f32.mrb[0].mxu0
    %v2884 = vadd.f32 0.0, %v2883
    %v2885 = vpop.f32.mrb[0].mxu0
    %v2886 = vpop.f32.mrb[0].mxu0
    %v2887 = vpop.f32.mrb[0].mxu0
    %2888 = vdwg.mxu0
    %v2889 = vadd.f32 %v2783, %v2884
    %v2890 = vpack.c.bf16 %v2889, %v2889
    %2891 = vst [vmem:[#allocation13] sm:$0xf] %v2890
    // Predicated region
    $region62: #{tpu_custom_call.1} parent=1 // pred_check
      _
    $region63: #{tpu_custom_call.1} parent=1 // pred_check_branch
      %2893 = sbr.rel (0) target = $region65
    $region64: #{tpu_custom_call.1} parent=1 // pred_region
      %s2895 = ssub.s32 64, 64
      %2896 = vsyncadd [#allocation4], %s2895
      %s2898 = sshll.u32 [#allocation13], 4
      %s2899 = int_to_ptr.vmem [resolvable:$true] %s2898
      %2901 = dma.vmem_to_hbm [thread:$0]  %s2899, 64, %s9, [#allocation4]
    $region65: #{tpu_custom_call.1} parent=1 // pred_fallthru
      _
    // Predicated region
    $region66: #{tpu_custom_call.1} parent=1 // pred_check
      _
    $region67: #{tpu_custom_call.1} parent=1 // pred_check_branch
      %2903 = sbr.rel (0) target = $region69
    $region68: #{tpu_custom_call.1} parent=1 // pred_region
      %2904 = dma.done [#allocation4], 64
    $region69: #{tpu_custom_call.1} parent=1 // pred_fallthru
      _
    %2905 = vsyncpa [#allocation3], 1
    %2906 = vsyncpa [#allocation6], 1
    %2907 = vsyncpa [#allocation9], 1
    %2908 = vsyncpa [#allocation12], 1
    %2909 = vsyncpa [#allocation4], 1

</llo_original>
